<compile_context>
chip_gen: v7x
topology: tpu7x:2x2x1
jax: 0.10.0
libtpu: 0.0.40
codegen_flags: <defaults>
</compile_context>

<pallas_src>
import jax
import jax.numpy as jnp
from jax import lax
from jax.experimental import pallas as pl
from jax.experimental.pallas import tpu as pltpu


def _pick_tile_rows(H, W, C, Cmid, itemsize, budget_bytes):
    """Largest divisor of H whose per-step VMEM footprint fits the budget."""
    per_row = (
        4 * W * C * itemsize            # x tile + out tile, double-buffered by the pipeline
        + (W + 10) * Cmid * 4           # padded ypad scratch row (f32 upper bound)
        + W * (3 * Cmid + 2 * C) * 4    # f32 temporaries (y1, acc, y2, y3, residual)
    )
    max_rows = max(1, budget_bytes // per_row)
    if H > 1:
        # Keep >= 2 row tiles so both v7x TensorCores have work even at batch 1 and the
        # input/output pipeline has some depth.
        max_rows = min(max_rows, max(1, H // 2))
    th = 1
    for d in range(1, H + 1):
        if H % d == 0 and d <= max_rows:
            th = d
    return th


def rbb_kernel(x_ref, x_top_ref, x_bot_ref, w1_ref, b1_ref, w2_ref, b2_ref,
               w3_ref, b3_ref, o_ref, ypad_ref):
    # x_ref:     (1, TH, W, C)     current row tile of the NHWC input
    # x_top_ref: (1, 1,  W, C)     input row just above the tile (clamped at the border)
    # x_bot_ref: (1, 1,  W, C)     input row just below the tile (clamped at the border)
    # w1_ref:    (C, Cmid)         conv1x1 #1 as (Cin, Cout)
    # w2_ref:    (9, Cmid, Cmid)   conv3x3 taps, tap t = ky*3+kx, each (Cin, Cout)
    # w3_ref:    (Cmid, C)         conv1x1 #2
    # b*_ref:    (1, Cout)         biases (f32)
    # ypad_ref:  (TH+2, Wp, Cmid)  VMEM scratch: zero-padded conv2 input, Wp = rup(W+2, 8)
    TH = x_ref.shape[1]
    W = x_ref.shape[2]
    C = x_ref.shape[3]
    Cmid = w1_ref.shape[1]
    Wp = ypad_ref.shape[1]
    cdt = ypad_ref.dtype                 # MXU input dtype (== model dtype, bf16-ready)

    i = pl.program_id(1)
    last = pl.num_programs(1) - 1
    w1 = w1_ref[...]
    b1 = b1_ref[...]

    # ---- conv1x1 (C -> Cmid) + ReLU, staged into the padded scratch ---------------
    x_main = x_ref[...].reshape(TH, W, C)
    y1 = jnp.dot(x_main.reshape(TH * W, C), w1,
                 preferred_element_type=jnp.float32) + b1
    y1 = jnp.maximum(y1, 0.0)
    ypad_ref[1:TH + 1, 1:W + 1, :] = y1.reshape(TH, W, Cmid).astype(cdt)

    # Halo rows: conv1 of the neighbouring input rows.  conv2's zero padding applies to
    # the conv1 *output*, so the border halo must be exactly zero (mask after bias+ReLU).
    x_top = x_top_ref[...].reshape(W, C)
    y1_top = jnp.maximum(
        jnp.dot(x_top, w1, preferred_element_type=jnp.float32) + b1, 0.0)
    y1_top = jnp.where(i > 0, y1_top, 0.0)
    ypad_ref[0:1, 1:W + 1, :] = y1_top.reshape(1, W, Cmid).astype(cdt)

    x_bot = x_bot_ref[...].reshape(W, C)
    y1_bot = jnp.maximum(
        jnp.dot(x_bot, w1, preferred_element_type=jnp.float32) + b1, 0.0)
    y1_bot = jnp.where(i < last, y1_bot, 0.0)
    ypad_ref[TH + 1:TH + 2, 1:W + 1, :] = y1_bot.reshape(1, W, Cmid).astype(cdt)

    # Zero only the W-halo columns.  Everything else is fully overwritten every step, so
    # no full-scratch memset; doing it per step keeps it correct under megacore sharding.
    ypad_ref[:, 0:1, :] = jnp.zeros((TH + 2, 1, Cmid), dtype=cdt)
    ypad_ref[:, W + 1:Wp, :] = jnp.zeros((TH + 2, Wp - W - 1, Cmid), dtype=cdt)

    # ---- conv3x3 (Cmid -> Cmid, padding=1) + ReLU ----------------------------------
    # 3 contiguous H-strips; 9 tap matmuls over the full strip (no strided input
    # copies); the kx shift is applied on the output slice while accumulating.
    acc = None
    for ky in range(3):
        strip = ypad_ref[ky:ky + TH, :, :].reshape(TH * Wp, Cmid)
        for kx in range(3):
            m = jnp.dot(strip, w2_ref[ky * 3 + kx],
                        preferred_element_type=jnp.float32).reshape(TH, Wp, Cmid)
            tap = m[:, kx:kx + W, :]
            acc = tap if acc is None else acc + tap
    y2 = jnp.maximum(acc + b2_ref[...], 0.0)                          # (TH, W, Cmid)

    # ---- conv1x1 (Cmid -> C) + bias + residual -------------------------------------
    y3 = jnp.dot(y2.reshape(TH * W, Cmid).astype(cdt), w3_ref[...],
                 preferred_element_type=jnp.float32) + b3_ref[...]
    out = y3 + x_main.reshape(TH * W, C).astype(jnp.float32)          # single f32 cast of x
    o_ref[...] = out.reshape(1, TH, W, C).astype(o_ref.dtype)


def residual_bottleneck_pallas(x, w1, b1, w2, b2, w3, b3):
    """x: (B, C, H, W) NCHW (PyTorch layout); weights in PyTorch OIHW layout.

    w1: (C/2, C, 1, 1), b1: (C/2,)
    w2: (C/2, C/2, 3, 3), b2: (C/2,)
    w3: (C, C/2, 1, 1), b3: (C,)
    """
    B, C, H, W = x.shape
    Cmid = w1.shape[0]
    cdt = x.dtype
    itemsize = jnp.dtype(cdt).itemsize

    # Host-side layout plumbing (one-time, tiny): NHWC activations, (Cin, Cout) weight
    # matrices so every conv is a lane-dense MXU matmul inside the kernel.  Weights stay
    # in the model dtype (bf16 models keep bf16 MXU inputs); only accumulation is f32.
    x_nhwc = jnp.transpose(x, (0, 2, 3, 1))                               # (B, H, W, C)
    w1m = jnp.transpose(w1[:, :, 0, 0], (1, 0)).astype(cdt)               # (C, Cmid)
    w2m = jnp.transpose(w2, (2, 3, 1, 0)).reshape(9, Cmid, Cmid).astype(cdt)
    w3m = jnp.transpose(w3[:, :, 0, 0], (1, 0)).astype(cdt)               # (Cmid, C)
    b1m = b1.reshape(1, Cmid).astype(jnp.float32)
    b2m = b2.reshape(1, Cmid).astype(jnp.float32)
    b3m = b3.reshape(1, C).astype(jnp.float32)

    # Explicit VMEM budget: derived from device capacity (128 MiB on v5e/v6e, 64 MiB on
    # v7x), with headroom; the row-tile size is picked from the same budget.
    try:
        vmem_cap = int(pltpu.get_tpu_info().vmem_capacity_bytes)
    except Exception:
        vmem_cap = 64 * 1024 * 1024      # conservative fallback (v7x-sized)
    vmem_limit = int(min(vmem_cap * 3 // 4, 100 * 1024 * 1024))

    TH = _pick_tile_rows(H, W, C, Cmid, itemsize, budget_bytes=vmem_limit // 4)
    n_row_tiles = H // TH
    Wp = ((W + 2 + 7) // 8) * 8          # scratch W rounded up -> layout-free strip reshapes

    in_specs = [
        # Current row tile.
        pl.BlockSpec((1, TH, W, C), lambda b, i: (b, i, 0, 0)),
        # Single halo rows above / below (block size 1 along H => block index == row
        # index); clamped at the image border, masked to zero inside the kernel.
        pl.BlockSpec((1, 1, W, C), lambda b, i: (b, jnp.maximum(i * TH - 1, 0), 0, 0)),
        pl.BlockSpec((1, 1, W, C), lambda b, i: (b, jnp.minimum((i + 1) * TH, H - 1), 0, 0)),
        # Grid-invariant weights / biases.
        pl.BlockSpec((C, Cmid), lambda b, i: (0, 0)),
        pl.BlockSpec((1, Cmid), lambda b, i: (0, 0)),
        pl.BlockSpec((9, Cmid, Cmid), lambda b, i: (0, 0, 0)),
        pl.BlockSpec((1, Cmid), lambda b, i: (0, 0)),
        pl.BlockSpec((Cmid, C), lambda b, i: (0, 0)),
        pl.BlockSpec((1, C), lambda b, i: (0, 0)),
    ]

    out_nhwc = pl.pallas_call(
        rbb_kernel,
        out_shape=jax.ShapeDtypeStruct((B, H, W, C), x.dtype),
        grid_spec=pltpu.PrefetchScalarGridSpec(
            num_scalar_prefetch=0,
            grid=(B, n_row_tiles),
            in_specs=in_specs,
            out_specs=pl.BlockSpec((1, TH, W, C), lambda b, i: (b, i, 0, 0)),
            scratch_shapes=[pltpu.VMEM((TH + 2, Wp, Cmid), cdt)],
        ),
        compiler_params=pltpu.CompilerParams(
            dimension_semantics=("parallel", "parallel"),
            vmem_limit_bytes=vmem_limit,
        ),
    )(x_nhwc, x_nhwc, x_nhwc, w1m, b1m, w2m, b2m, w3m, b3m)

    return jnp.transpose(out_nhwc, (0, 3, 1, 2))   # back to NCHW


def residual_bottleneck_reference(x, w1, b1, w2, b2, w3, b3):
    """Pure-JAX reference matching the PyTorch forward exactly (cross-correlation)."""
    dn = ("NCHW", "OIHW", "NCHW")
    y = lax.conv_general_dilated(
        x, w1, (1, 1), "VALID",
        dimension_numbers=lax.conv_dimension_numbers(x.shape, w1.shape, dn))
    y = jnp.maximum(y + b1[None, :, None, None], 0.0)
    y = lax.conv_general_dilated(
        y, w2, (1, 1), ((1, 1), (1, 1)),
        dimension_numbers=lax.conv_dimension_numbers(y.shape, w2.shape, dn))
    y = jnp.maximum(y + b2[None, :, None, None], 0.0)
    y = lax.conv_general_dilated(
        y, w3, (1, 1), "VALID",
        dimension_numbers=lax.conv_dimension_numbers(y.shape, w3.shape, dn))
    y = y + b3[None, :, None, None]
    return y + x


if __name__ == "__main__":
    key = jax.random.PRNGKey(0)
    ks = jax.random.split(key, 7)

    B, C, H, W = 2, 32, 16, 16
    Cmid = C // 2

    x = jax.random.normal(ks[0], (B, C, H, W), dtype=jnp.float32)
    # PyTorch-layout parameters (OIHW weights, 1-D biases), deterministic.
    w1 = jax.random.normal(ks[1], (Cmid, C, 1, 1), dtype=jnp.float32) * 0.1
    b1 = jax.random.normal(ks[2], (Cmid,), dtype=jnp.float32) * 0.1
    w2 = jax.random.normal(ks[3], (Cmid, Cmid, 3, 3), dtype=jnp.float32) * 0.1
    b2 = jax.random.normal(ks[4], (Cmid,), dtype=jnp.float32) * 0.1
    w3 = jax.random.normal(ks[5], (C, Cmid, 1, 1), dtype=jnp.float32) * 0.1
    b3 = jax.random.normal(ks[6], (C,), dtype=jnp.float32) * 0.1

    out = residual_bottleneck_pallas(x, w1, b1, w2, b2, w3, b3)
    out = jax.block_until_ready(out)

    ref = residual_bottleneck_reference(x, w1, b1, w2, b2, w3, b3)
    assert out.shape == x.shape and out.dtype == x.dtype
    max_err = float(jnp.max(jnp.abs(out - ref)))
    assert jnp.allclose(out, ref, atol=2e-3, rtol=2e-3), f"Pallas mismatch, max|err|={max_err}"

    print("KERNEL_OK")
</pallas_src>

<mosaic_0001>
module attributes {stable_mosaic.version = 11 : i64} {
  func.func @rbb_kernel(%arg0: i32, %arg1: i32, %arg2: memref<1x8x16x32xf32, #tpu.memory_space<vmem>>, %arg3: memref<1x1x16x32xf32, #tpu.memory_space<vmem>>, %arg4: memref<1x1x16x32xf32, #tpu.memory_space<vmem>>, %arg5: memref<32x16xf32, #tpu.memory_space<vmem>>, %arg6: memref<1x16xf32, #tpu.memory_space<vmem>>, %arg7: memref<9x16x16xf32, #tpu.memory_space<vmem>>, %arg8: memref<1x16xf32, #tpu.memory_space<vmem>>, %arg9: memref<16x32xf32, #tpu.memory_space<vmem>>, %arg10: memref<1x32xf32, #tpu.memory_space<vmem>>, %arg11: memref<1x8x16x32xf32, #tpu.memory_space<vmem>>, %arg12: memref<10x24x16xf32, #tpu.memory_space<vmem>>) attributes {dimension_semantics = [#tpu.dimension_semantics<parallel>, #tpu.dimension_semantics<parallel>], iteration_bounds = array<i64: 2, 2>, scalar_prefetch = 0 : i64, scratch_operands = 1 : i64, tpu.core_type = #tpu.core_type<tc>, window_params = [{transform_indices = @transform_0, window_bounds = array<i64: 1, 8, 16, 32>}, {transform_indices = @transform_1, window_bounds = array<i64: 1, 1, 16, 32>}, {transform_indices = @transform_2, window_bounds = array<i64: 1, 1, 16, 32>}, {pipeline_mode = #tpu.pipeline_mode<synchronous>, transform_indices = @transform_3, window_bounds = array<i64: 32, 16>}, {pipeline_mode = #tpu.pipeline_mode<synchronous>, transform_indices = @transform_4, window_bounds = array<i64: 1, 16>}, {pipeline_mode = #tpu.pipeline_mode<synchronous>, transform_indices = @transform_5, window_bounds = array<i64: 9, 16, 16>}, {pipeline_mode = #tpu.pipeline_mode<synchronous>, transform_indices = @transform_6, window_bounds = array<i64: 1, 16>}, {pipeline_mode = #tpu.pipeline_mode<synchronous>, transform_indices = @transform_7, window_bounds = array<i64: 16, 32>}, {pipeline_mode = #tpu.pipeline_mode<synchronous>, transform_indices = @transform_8, window_bounds = array<i64: 1, 32>}, {transform_indices = @transform_9, window_bounds = array<i64: 1, 8, 16, 32>}]} {
    %c0 = arith.constant 0 : index
    %c0_0 = arith.constant 0 : index
    %0 = vector.load %arg5[%c0, %c0_0] : memref<32x16xf32, #tpu.memory_space<vmem>>, vector<32x16xf32>
    %c0_1 = arith.constant 0 : index
    %c0_2 = arith.constant 0 : index
    %1 = vector.load %arg6[%c0_1, %c0_2] : memref<1x16xf32, #tpu.memory_space<vmem>>, vector<1x16xf32>
    %c0_3 = arith.constant 0 : index
    %c0_4 = arith.constant 0 : index
    %c0_5 = arith.constant 0 : index
    %c0_6 = arith.constant 0 : index
    %2 = vector.load %arg2[%c0_3, %c0_4, %c0_5, %c0_6] : memref<1x8x16x32xf32, #tpu.memory_space<vmem>>, vector<1x8x16x32xf32>
    %3 = vector.shape_cast %2 : vector<1x8x16x32xf32> to vector<8x16x32xf32>
    %4 = vector.shape_cast %3 : vector<8x16x32xf32> to vector<128x32xf32>
    %cst = arith.constant dense<0.000000e+00> : vector<128x16xf32>
    %5 = tpu.matmul %4, %0, %cst {dimension_numbers = #tpu.dot_dimension_numbers<[1], [0], [0], [1], [0, 0, 1, 1], [], []>} : vector<128x32xf32>, vector<32x16xf32>, vector<128x16xf32> -> vector<128x16xf32>
    %6 = vector.broadcast %1 : vector<1x16xf32> to vector<128x16xf32>
    %7 = arith.addf %5, %6 : vector<128x16xf32>
    %cst_7 = arith.constant 0.000000e+00 : f32
    %8 = vector.broadcast %cst_7 : f32 to vector<128x16xf32>
    %9 = arith.maximumf %7, %8 : vector<128x16xf32>
    %10 = vector.shape_cast %9 : vector<128x16xf32> to vector<8x16x16xf32>
    %c1 = arith.constant 1 : index
    %c1_8 = arith.constant 1 : index
    %c0_9 = arith.constant 0 : index
    %11 = vector.load %arg12[%c1, %c1_8, %c0_9] : memref<10x24x16xf32, #tpu.memory_space<vmem>>, vector<8x16x16xf32>
    tpu.vector_store %arg12[%c1, %c1_8, %c0_9], %10 {strides = array<i32>} : memref<10x24x16xf32, #tpu.memory_space<vmem>>, vector<8x16x16xf32>,
    %c0_10 = arith.constant 0 : index
    %c0_11 = arith.constant 0 : index
    %c0_12 = arith.constant 0 : index
    %c0_13 = arith.constant 0 : index
    %12 = vector.load %arg3[%c0_10, %c0_11, %c0_12, %c0_13] : memref<1x1x16x32xf32, #tpu.memory_space<vmem>>, vector<1x1x16x32xf32>
    %13 = vector.shape_cast %12 : vector<1x1x16x32xf32> to vector<16x32xf32>
    %cst_14 = arith.constant dense<0.000000e+00> : vector<16x16xf32>
    %14 = tpu.matmul %13, %0, %cst_14 {dimension_numbers = #tpu.dot_dimension_numbers<[1], [0], [0], [1], [0, 0, 1, 1], [], []>} : vector<16x32xf32>, vector<32x16xf32>, vector<16x16xf32> -> vector<16x16xf32>
    %15 = vector.broadcast %1 : vector<1x16xf32> to vector<16x16xf32>
    %16 = arith.addf %14, %15 : vector<16x16xf32>
    %cst_15 = arith.constant 0.000000e+00 : f32
    %17 = vector.broadcast %cst_15 : f32 to vector<16x16xf32>
    %18 = arith.maximumf %16, %17 : vector<16x16xf32>
    %c0_i32 = arith.constant 0 : i32
    %19 = arith.cmpi sgt, %arg1, %c0_i32 : i32
    %cst_16 = arith.constant 0.000000e+00 : f32
    %20 = vector.broadcast %cst_16 : f32 to vector<16x16xf32>
    %21 = arith.select %19, %18, %20 : vector<16x16xf32>
    %22 = vector.shape_cast %21 : vector<16x16xf32> to vector<1x16x16xf32>
    %c0_17 = arith.constant 0 : index
    %c1_18 = arith.constant 1 : index
    %c0_19 = arith.constant 0 : index
    %23 = vector.load %arg12[%c0_17, %c1_18, %c0_19] : memref<10x24x16xf32, #tpu.memory_space<vmem>>, vector<1x16x16xf32>
    tpu.vector_store %arg12[%c0_17, %c1_18, %c0_19], %22 {strides = array<i32>} : memref<10x24x16xf32, #tpu.memory_space<vmem>>, vector<1x16x16xf32>,
    %c0_20 = arith.constant 0 : index
    %c0_21 = arith.constant 0 : index
    %c0_22 = arith.constant 0 : index
    %c0_23 = arith.constant 0 : index
    %24 = vector.load %arg4[%c0_20, %c0_21, %c0_22, %c0_23] : memref<1x1x16x32xf32, #tpu.memory_space<vmem>>, vector<1x1x16x32xf32>
    %25 = vector.shape_cast %24 : vector<1x1x16x32xf32> to vector<16x32xf32>
    %cst_24 = arith.constant dense<0.000000e+00> : vector<16x16xf32>
    %26 = tpu.matmul %25, %0, %cst_24 {dimension_numbers = #tpu.dot_dimension_numbers<[1], [0], [0], [1], [0, 0, 1, 1], [], []>} : vector<16x32xf32>, vector<32x16xf32>, vector<16x16xf32> -> vector<16x16xf32>
    %27 = vector.broadcast %1 : vector<1x16xf32> to vector<16x16xf32>
    %28 = arith.addf %26, %27 : vector<16x16xf32>
    %cst_25 = arith.constant 0.000000e+00 : f32
    %29 = vector.broadcast %cst_25 : f32 to vector<16x16xf32>
    %30 = arith.maximumf %28, %29 : vector<16x16xf32>
    %c1_i32 = arith.constant 1 : i32
    %31 = arith.cmpi slt, %arg1, %c1_i32 : i32
    %cst_26 = arith.constant 0.000000e+00 : f32
    %32 = vector.broadcast %cst_26 : f32 to vector<16x16xf32>
    %33 = arith.select %31, %30, %32 : vector<16x16xf32>
    %34 = vector.shape_cast %33 : vector<16x16xf32> to vector<1x16x16xf32>
    %c9 = arith.constant 9 : index
    %c1_27 = arith.constant 1 : index
    %c0_28 = arith.constant 0 : index
    %35 = vector.load %arg12[%c9, %c1_27, %c0_28] : memref<10x24x16xf32, #tpu.memory_space<vmem>>, vector<1x16x16xf32>
    tpu.vector_store %arg12[%c9, %c1_27, %c0_28], %34 {strides = array<i32>} : memref<10x24x16xf32, #tpu.memory_space<vmem>>, vector<1x16x16xf32>,
    %cst_29 = arith.constant 0.000000e+00 : f32
    %36 = vector.broadcast %cst_29 : f32 to vector<10x1x16xf32>
    %c0_30 = arith.constant 0 : index
    %c0_31 = arith.constant 0 : index
    %c0_32 = arith.constant 0 : index
    %37 = vector.load %arg12[%c0_30, %c0_31, %c0_32] : memref<10x24x16xf32, #tpu.memory_space<vmem>>, vector<10x1x16xf32>
    tpu.vector_store %arg12[%c0_30, %c0_31, %c0_32], %36 {strides = array<i32>} : memref<10x24x16xf32, #tpu.memory_space<vmem>>, vector<10x1x16xf32>,
    %cst_33 = arith.constant 0.000000e+00 : f32
    %38 = vector.broadcast %cst_33 : f32 to vector<10x7x16xf32>
    %c0_34 = arith.constant 0 : index
    %c17 = arith.constant 17 : index
    %c0_35 = arith.constant 0 : index
    %39 = vector.load %arg12[%c0_34, %c17, %c0_35] : memref<10x24x16xf32, #tpu.memory_space<vmem>>, vector<10x7x16xf32>
    tpu.vector_store %arg12[%c0_34, %c17, %c0_35], %38 {strides = array<i32>} : memref<10x24x16xf32, #tpu.memory_space<vmem>>, vector<10x7x16xf32>,
    %c0_36 = arith.constant 0 : index
    %c0_37 = arith.constant 0 : index
    %c0_38 = arith.constant 0 : index
    %40 = vector.load %arg12[%c0_36, %c0_37, %c0_38] : memref<10x24x16xf32, #tpu.memory_space<vmem>>, vector<8x24x16xf32>
    %41 = vector.shape_cast %40 : vector<8x24x16xf32> to vector<192x16xf32>
    %c0_39 = arith.constant 0 : index
    %c0_40 = arith.constant 0 : index
    %c0_41 = arith.constant 0 : index
    %42 = vector.load %arg7[%c0_39, %c0_40, %c0_41] : memref<9x16x16xf32, #tpu.memory_space<vmem>>, vector<1x16x16xf32>
    %43 = vector.shape_cast %42 : vector<1x16x16xf32> to vector<16x16xf32>
    %cst_42 = arith.constant dense<0.000000e+00> : vector<192x16xf32>
    %44 = tpu.matmul %41, %43, %cst_42 {dimension_numbers = #tpu.dot_dimension_numbers<[1], [0], [0], [1], [0, 0, 1, 1], [], []>} : vector<192x16xf32>, vector<16x16xf32>, vector<192x16xf32> -> vector<192x16xf32>
    %45 = vector.shape_cast %44 : vector<192x16xf32> to vector<8x24x16xf32>
    %46 = vector.extract_strided_slice %45 {offsets = [0, 0, 0], sizes = [8, 16, 16], strides = [1, 1, 1]} : vector<8x24x16xf32> to vector<8x16x16xf32>
    %c1_43 = arith.constant 1 : index
    %c0_44 = arith.constant 0 : index
    %c0_45 = arith.constant 0 : index
    %47 = vector.load %arg7[%c1_43, %c0_44, %c0_45] : memref<9x16x16xf32, #tpu.memory_space<vmem>>, vector<1x16x16xf32>
    %48 = vector.shape_cast %47 : vector<1x16x16xf32> to vector<16x16xf32>
    %cst_46 = arith.constant dense<0.000000e+00> : vector<192x16xf32>
    %49 = tpu.matmul %41, %48, %cst_46 {dimension_numbers = #tpu.dot_dimension_numbers<[1], [0], [0], [1], [0, 0, 1, 1], [], []>} : vector<192x16xf32>, vector<16x16xf32>, vector<192x16xf32> -> vector<192x16xf32>
    %50 = vector.shape_cast %49 : vector<192x16xf32> to vector<8x24x16xf32>
    %51 = vector.extract_strided_slice %50 {offsets = [0, 1, 0], sizes = [8, 16, 16], strides = [1, 1, 1]} : vector<8x24x16xf32> to vector<8x16x16xf32>
    %52 = arith.addf %46, %51 : vector<8x16x16xf32>
    %c2 = arith.constant 2 : index
    %c0_47 = arith.constant 0 : index
    %c0_48 = arith.constant 0 : index
    %53 = vector.load %arg7[%c2, %c0_47, %c0_48] : memref<9x16x16xf32, #tpu.memory_space<vmem>>, vector<1x16x16xf32>
    %54 = vector.shape_cast %53 : vector<1x16x16xf32> to vector<16x16xf32>
    %cst_49 = arith.constant dense<0.000000e+00> : vector<192x16xf32>
    %55 = tpu.matmul %41, %54, %cst_49 {dimension_numbers = #tpu.dot_dimension_numbers<[1], [0], [0], [1], [0, 0, 1, 1], [], []>} : vector<192x16xf32>, vector<16x16xf32>, vector<192x16xf32> -> vector<192x16xf32>
    %56 = vector.shape_cast %55 : vector<192x16xf32> to vector<8x24x16xf32>
    %57 = vector.extract_strided_slice %56 {offsets = [0, 2, 0], sizes = [8, 16, 16], strides = [1, 1, 1]} : vector<8x24x16xf32> to vector<8x16x16xf32>
    %58 = arith.addf %52, %57 : vector<8x16x16xf32>
    %c1_50 = arith.constant 1 : index
    %c0_51 = arith.constant 0 : index
    %c0_52 = arith.constant 0 : index
    %59 = vector.load %arg12[%c1_50, %c0_51, %c0_52] : memref<10x24x16xf32, #tpu.memory_space<vmem>>, vector<8x24x16xf32>
    %60 = vector.shape_cast %59 : vector<8x24x16xf32> to vector<192x16xf32>
    %c3 = arith.constant 3 : index
    %c0_53 = arith.constant 0 : index
    %c0_54 = arith.constant 0 : index
    %61 = vector.load %arg7[%c3, %c0_53, %c0_54] : memref<9x16x16xf32, #tpu.memory_space<vmem>>, vector<1x16x16xf32>
    %62 = vector.shape_cast %61 : vector<1x16x16xf32> to vector<16x16xf32>
    %cst_55 = arith.constant dense<0.000000e+00> : vector<192x16xf32>
    %63 = tpu.matmul %60, %62, %cst_55 {dimension_numbers = #tpu.dot_dimension_numbers<[1], [0], [0], [1], [0, 0, 1, 1], [], []>} : vector<192x16xf32>, vector<16x16xf32>, vector<192x16xf32> -> vector<192x16xf32>
    %64 = vector.shape_cast %63 : vector<192x16xf32> to vector<8x24x16xf32>
    %65 = vector.extract_strided_slice %64 {offsets = [0, 0, 0], sizes = [8, 16, 16], strides = [1, 1, 1]} : vector<8x24x16xf32> to vector<8x16x16xf32>
    %66 = arith.addf %58, %65 : vector<8x16x16xf32>
    %c4 = arith.constant 4 : index
    %c0_56 = arith.constant 0 : index
    %c0_57 = arith.constant 0 : index
    %67 = vector.load %arg7[%c4, %c0_56, %c0_57] : memref<9x16x16xf32, #tpu.memory_space<vmem>>, vector<1x16x16xf32>
    %68 = vector.shape_cast %67 : vector<1x16x16xf32> to vector<16x16xf32>
    %cst_58 = arith.constant dense<0.000000e+00> : vector<192x16xf32>
    %69 = tpu.matmul %60, %68, %cst_58 {dimension_numbers = #tpu.dot_dimension_numbers<[1], [0], [0], [1], [0, 0, 1, 1], [], []>} : vector<192x16xf32>, vector<16x16xf32>, vector<192x16xf32> -> vector<192x16xf32>
    %70 = vector.shape_cast %69 : vector<192x16xf32> to vector<8x24x16xf32>
    %71 = vector.extract_strided_slice %70 {offsets = [0, 1, 0], sizes = [8, 16, 16], strides = [1, 1, 1]} : vector<8x24x16xf32> to vector<8x16x16xf32>
    %72 = arith.addf %66, %71 : vector<8x16x16xf32>
    %c5 = arith.constant 5 : index
    %c0_59 = arith.constant 0 : index
    %c0_60 = arith.constant 0 : index
    %73 = vector.load %arg7[%c5, %c0_59, %c0_60] : memref<9x16x16xf32, #tpu.memory_space<vmem>>, vector<1x16x16xf32>
    %74 = vector.shape_cast %73 : vector<1x16x16xf32> to vector<16x16xf32>
    %cst_61 = arith.constant dense<0.000000e+00> : vector<192x16xf32>
    %75 = tpu.matmul %60, %74, %cst_61 {dimension_numbers = #tpu.dot_dimension_numbers<[1], [0], [0], [1], [0, 0, 1, 1], [], []>} : vector<192x16xf32>, vector<16x16xf32>, vector<192x16xf32> -> vector<192x16xf32>
    %76 = vector.shape_cast %75 : vector<192x16xf32> to vector<8x24x16xf32>
    %77 = vector.extract_strided_slice %76 {offsets = [0, 2, 0], sizes = [8, 16, 16], strides = [1, 1, 1]} : vector<8x24x16xf32> to vector<8x16x16xf32>
    %78 = arith.addf %72, %77 : vector<8x16x16xf32>
    %c2_62 = arith.constant 2 : index
    %c0_63 = arith.constant 0 : index
    %c0_64 = arith.constant 0 : index
    %79 = vector.load %arg12[%c2_62, %c0_63, %c0_64] : memref<10x24x16xf32, #tpu.memory_space<vmem>>, vector<8x24x16xf32>
    %80 = vector.shape_cast %79 : vector<8x24x16xf32> to vector<192x16xf32>
    %c6 = arith.constant 6 : index
    %c0_65 = arith.constant 0 : index
    %c0_66 = arith.constant 0 : index
    %81 = vector.load %arg7[%c6, %c0_65, %c0_66] : memref<9x16x16xf32, #tpu.memory_space<vmem>>, vector<1x16x16xf32>
    %82 = vector.shape_cast %81 : vector<1x16x16xf32> to vector<16x16xf32>
    %cst_67 = arith.constant dense<0.000000e+00> : vector<192x16xf32>
    %83 = tpu.matmul %80, %82, %cst_67 {dimension_numbers = #tpu.dot_dimension_numbers<[1], [0], [0], [1], [0, 0, 1, 1], [], []>} : vector<192x16xf32>, vector<16x16xf32>, vector<192x16xf32> -> vector<192x16xf32>
    %84 = vector.shape_cast %83 : vector<192x16xf32> to vector<8x24x16xf32>
    %85 = vector.extract_strided_slice %84 {offsets = [0, 0, 0], sizes = [8, 16, 16], strides = [1, 1, 1]} : vector<8x24x16xf32> to vector<8x16x16xf32>
    %86 = arith.addf %78, %85 : vector<8x16x16xf32>
    %c7 = arith.constant 7 : index
    %c0_68 = arith.constant 0 : index
    %c0_69 = arith.constant 0 : index
    %87 = vector.load %arg7[%c7, %c0_68, %c0_69] : memref<9x16x16xf32, #tpu.memory_space<vmem>>, vector<1x16x16xf32>
    %88 = vector.shape_cast %87 : vector<1x16x16xf32> to vector<16x16xf32>
    %cst_70 = arith.constant dense<0.000000e+00> : vector<192x16xf32>
    %89 = tpu.matmul %80, %88, %cst_70 {dimension_numbers = #tpu.dot_dimension_numbers<[1], [0], [0], [1], [0, 0, 1, 1], [], []>} : vector<192x16xf32>, vector<16x16xf32>, vector<192x16xf32> -> vector<192x16xf32>
    %90 = vector.shape_cast %89 : vector<192x16xf32> to vector<8x24x16xf32>
    %91 = vector.extract_strided_slice %90 {offsets = [0, 1, 0], sizes = [8, 16, 16], strides = [1, 1, 1]} : vector<8x24x16xf32> to vector<8x16x16xf32>
    %92 = arith.addf %86, %91 : vector<8x16x16xf32>
    %c8 = arith.constant 8 : index
    %c0_71 = arith.constant 0 : index
    %c0_72 = arith.constant 0 : index
    %93 = vector.load %arg7[%c8, %c0_71, %c0_72] : memref<9x16x16xf32, #tpu.memory_space<vmem>>, vector<1x16x16xf32>
    %94 = vector.shape_cast %93 : vector<1x16x16xf32> to vector<16x16xf32>
    %cst_73 = arith.constant dense<0.000000e+00> : vector<192x16xf32>
    %95 = tpu.matmul %80, %94, %cst_73 {dimension_numbers = #tpu.dot_dimension_numbers<[1], [0], [0], [1], [0, 0, 1, 1], [], []>} : vector<192x16xf32>, vector<16x16xf32>, vector<192x16xf32> -> vector<192x16xf32>
    %96 = vector.shape_cast %95 : vector<192x16xf32> to vector<8x24x16xf32>
    %97 = vector.extract_strided_slice %96 {offsets = [0, 2, 0], sizes = [8, 16, 16], strides = [1, 1, 1]} : vector<8x24x16xf32> to vector<8x16x16xf32>
    %98 = arith.addf %92, %97 : vector<8x16x16xf32>
    %c0_74 = arith.constant 0 : index
    %c0_75 = arith.constant 0 : index
    %99 = vector.load %arg8[%c0_74, %c0_75] : memref<1x16xf32, #tpu.memory_space<vmem>>, vector<1x16xf32>
    %100 = vector.shape_cast %99 : vector<1x16xf32> to vector<1x1x16xf32>
    %101 = vector.broadcast %100 : vector<1x1x16xf32> to vector<8x16x16xf32>
    %102 = arith.addf %98, %101 : vector<8x16x16xf32>
    %cst_76 = arith.constant 0.000000e+00 : f32
    %103 = vector.broadcast %cst_76 : f32 to vector<8x16x16xf32>
    %104 = arith.maximumf %102, %103 : vector<8x16x16xf32>
    %105 = vector.shape_cast %104 : vector<8x16x16xf32> to vector<128x16xf32>
    %c0_77 = arith.constant 0 : index
    %c0_78 = arith.constant 0 : index
    %106 = vector.load %arg9[%c0_77, %c0_78] : memref<16x32xf32, #tpu.memory_space<vmem>>, vector<16x32xf32>
    %cst_79 = arith.constant dense<0.000000e+00> : vector<128x32xf32>
    %107 = tpu.matmul %105, %106, %cst_79 {dimension_numbers = #tpu.dot_dimension_numbers<[1], [0], [0], [1], [0, 0, 1, 1], [], []>} : vector<128x16xf32>, vector<16x32xf32>, vector<128x32xf32> -> vector<128x32xf32>
    %c0_80 = arith.constant 0 : index
    %c0_81 = arith.constant 0 : index
    %108 = vector.load %arg10[%c0_80, %c0_81] : memref<1x32xf32, #tpu.memory_space<vmem>>, vector<1x32xf32>
    %109 = vector.broadcast %108 : vector<1x32xf32> to vector<128x32xf32>
    %110 = arith.addf %107, %109 : vector<128x32xf32>
    %111 = vector.shape_cast %3 : vector<8x16x32xf32> to vector<128x32xf32>
    %112 = arith.addf %110, %111 : vector<128x32xf32>
    %113 = vector.shape_cast %112 : vector<128x32xf32> to vector<1x8x16x32xf32>
    %c0_82 = arith.constant 0 : index
    %c0_83 = arith.constant 0 : index
    %c0_84 = arith.constant 0 : index
    %c0_85 = arith.constant 0 : index
    %114 = vector.load %arg11[%c0_82, %c0_83, %c0_84, %c0_85] : memref<1x8x16x32xf32, #tpu.memory_space<vmem>>, vector<1x8x16x32xf32>
    tpu.vector_store %arg11[%c0_82, %c0_83, %c0_84, %c0_85], %113 {strides = array<i32>} : memref<1x8x16x32xf32, #tpu.memory_space<vmem>>, vector<1x8x16x32xf32>,
    return
  }
  func.func @transform_0(%arg0: i32, %arg1: i32) -> (i32, i32, i32, i32) {
    %c0_i32 = arith.constant 0 : i32
    %c0_i32_0 = arith.constant 0 : i32
    %c0_i32_1 = arith.constant 0 : i32
    return %arg0, %arg1, %c0_i32, %c0_i32_0 : i32, i32, i32, i32
  }
  func.func @transform_1(%arg0: i32, %arg1: i32) -> (i32, i32, i32, i32) {
    %c8_i32 = arith.constant 8 : i32
    %0 = arith.muli %arg1, %c8_i32 : i32
    %c1_i32 = arith.constant 1 : i32
    %1 = arith.subi %0, %c1_i32 : i32
    %c0_i32 = arith.constant 0 : i32
    %2 = arith.maxsi %1, %c0_i32 : i32
    %c0_i32_0 = arith.constant 0 : i32
    %c0_i32_1 = arith.constant 0 : i32
    %c0_i32_2 = arith.constant 0 : i32
    return %arg0, %2, %c0_i32_0, %c0_i32_1 : i32, i32, i32, i32
  }
  func.func @transform_2(%arg0: i32, %arg1: i32) -> (i32, i32, i32, i32) {
    %c1_i32 = arith.constant 1 : i32
    %0 = arith.addi %arg1, %c1_i32 : i32
    %c8_i32 = arith.constant 8 : i32
    %1 = arith.muli %0, %c8_i32 : i32
    %c15_i32 = arith.constant 15 : i32
    %2 = arith.minsi %1, %c15_i32 : i32
    %c0_i32 = arith.constant 0 : i32
    %c0_i32_0 = arith.constant 0 : i32
    %c0_i32_1 = arith.constant 0 : i32
    return %arg0, %2, %c0_i32, %c0_i32_0 : i32, i32, i32, i32
  }
  func.func @transform_3(%arg0: i32, %arg1: i32) -> (i32, i32) {
    %c0_i32 = arith.constant 0 : i32
    %c0_i32_0 = arith.constant 0 : i32
    %c0_i32_1 = arith.constant 0 : i32
    return %c0_i32, %c0_i32_0 : i32, i32
  }
  func.func @transform_4(%arg0: i32, %arg1: i32) -> (i32, i32) {
    %c0_i32 = arith.constant 0 : i32
    %c0_i32_0 = arith.constant 0 : i32
    %c0_i32_1 = arith.constant 0 : i32
    return %c0_i32, %c0_i32_0 : i32, i32
  }
  func.func @transform_5(%arg0: i32, %arg1: i32) -> (i32, i32, i32) {
    %c0_i32 = arith.constant 0 : i32
    %c0_i32_0 = arith.constant 0 : i32
    %c0_i32_1 = arith.constant 0 : i32
    %c0_i32_2 = arith.constant 0 : i32
    return %c0_i32, %c0_i32_0, %c0_i32_1 : i32, i32, i32
  }
  func.func @transform_6(%arg0: i32, %arg1: i32) -> (i32, i32) {
    %c0_i32 = arith.constant 0 : i32
    %c0_i32_0 = arith.constant 0 : i32
    %c0_i32_1 = arith.constant 0 : i32
    return %c0_i32, %c0_i32_0 : i32, i32
  }
  func.func @transform_7(%arg0: i32, %arg1: i32) -> (i32, i32) {
    %c0_i32 = arith.constant 0 : i32
    %c0_i32_0 = arith.constant 0 : i32
    %c0_i32_1 = arith.constant 0 : i32
    return %c0_i32, %c0_i32_0 : i32, i32
  }
  func.func @transform_8(%arg0: i32, %arg1: i32) -> (i32, i32) {
    %c0_i32 = arith.constant 0 : i32
    %c0_i32_0 = arith.constant 0 : i32
    %c0_i32_1 = arith.constant 0 : i32
    return %c0_i32, %c0_i32_0 : i32, i32
  }
  func.func @transform_9(%arg0: i32, %arg1: i32) -> (i32, i32, i32, i32) {
    %c0_i32 = arith.constant 0 : i32
    %c0_i32_0 = arith.constant 0 : i32
    %c0_i32_1 = arith.constant 0 : i32
    return %arg0, %arg1, %c0_i32, %c0_i32_0 : i32, i32, i32, i32
  }
}

</mosaic_0001>

<llo_original>
// kernel: tpu_custom_call.1
$region0: #{tpu_custom_call.1}
  #allocation0 [shape = 'u32[]', space=smem, size = 0x4, offset = 0x4, fixed_abs, tag = 'smem constant byte address 0x4 - core index']
  #allocation1 [shape = 'u32[144,128]{1,0:T(1,128)}', space=vmem, size = 0x12000, scoped, tag = 'internal scratch']
  #allocation2 [shape = 'f32[10,24,16]{2,1,0:T(8,128)}', space=vmem, size = 0x1e000, scoped, tag = 'scratch operand']
  %s0 = inlined_call_operand.hbm [shape: f32[2,16,16,32], index: 0, kind: input, shape index: {}]
  %s1 = inlined_call_operand.hbm [shape: f32[2,16,16,32], index: 1, kind: input, shape index: {}]
  %s2 = inlined_call_operand.hbm [shape: f32[2,16,16,32], index: 2, kind: input, shape index: {}]
  %s3 = inlined_call_operand.vmem [shape: f32[32,16], index: 3, kind: input, shape index: {}]
  %s4 = inlined_call_operand.vmem [shape: f32[1,16], index: 4, kind: input, shape index: {}]
  %s5 = inlined_call_operand.hbm [shape: f32[9,16,16], index: 5, kind: input, shape index: {}]
  %s6 = inlined_call_operand.vmem [shape: f32[1,16], index: 6, kind: input, shape index: {}]
  %s7 = inlined_call_operand.vmem [shape: f32[16,32], index: 7, kind: input, shape index: {}]
  %s8 = inlined_call_operand.vmem [shape: f32[1,32], index: 8, kind: input, shape index: {}]
  %s9 = inlined_call_operand.hbm [shape: f32[2,16,16,32], index: 9, kind: output, shape index: {}]
  %s10 = sld [smem:[#allocation0]]
  $region85: #{tpu_custom_call.1} parent=0
    _
  %s12 = ssub.s32 1, %s10
  %s13 = scalar_select 0, %s12, %s10
  $region1: #{tpu_custom_call.1} parent=0
    #allocation3 [shape = 'u8[131072]{0}', space=vmem, size = 0x20000, scoped, tag = 'input window, operand 0']
    #allocation4 [shape = 's32[2]{0}', space=sflag, size = 0x8, scoped, tag = 'scoped memory for tpu_custom_call.1']
    #allocation5 [shape = 's32[2]{0}', space=sflag, size = 0x8, scoped, tag = 'scoped memory for tpu_custom_call.1']
    #allocation6 [shape = 'u8[16384]{0}', space=vmem, size = 0x4000, scoped, tag = 'input window, operand 1']
    #allocation7 [shape = 's32[2]{0}', space=sflag, size = 0x8, scoped, tag = 'scoped memory for tpu_custom_call.1']
    #allocation8 [shape = 'u8[16384]{0}', space=vmem, size = 0x4000, scoped, tag = 'input window, operand 2']
    #allocation9 [shape = 'u8[73728]{0}', space=vmem, size = 0x12000, scoped, tag = 'input window, operand 5, single buffered']
    #allocation10 [shape = 's32[1]{0}', space=sflag, size = 0x4, scoped, tag = 'scoped memory for tpu_custom_call.1']
    #allocation11 [shape = 'u8[131072]{0}', space=vmem, size = 0x20000, scoped, tag = 'output window, operand 0']
    %14 = vsyncpa [#allocation4], 0
    %s15 = scalar_lea.sflag [#allocation4], 1
    %16 = vsyncpa %s15, 0
    %17 = vsyncpa [#allocation7], 0
    %s18 = scalar_lea.sflag [#allocation7], 1
    %19 = vsyncpa %s18, 0
    %20 = vsyncpa [#allocation10], 0
    %21 = vsyncpa [#allocation5], 0
    %s22 = scalar_lea.sflag [#allocation5], 1
    %23 = vsyncpa %s22, 0
    loop: start=0, step=1, limit=6
    $region2: #{tpu_custom_call.1} parent=1 // loop_pre_header
      _
    $region3: #{tpu_custom_call.1} parent=1 // loop_header
      %s25 = sphi 0, %s29
      %p26 = scmp.ge.s32.totalorder %s25, 6
      %s32 = sphi 0, %s44
      %s33 = sphi 0, %s40
      %s34 = sphi 0, %s32
      %s35 = sphi 0, %s33
      %s36 = sphi 0, %s34
      %s37 = sphi 0, %s35
      %s49 = sphi 0, %s51
      %s52 = sphi 0, %s49
      %s53 = sphi 0, %s52
      %s69 = sphi 0, %s53
      %s85 = sphi 0, %s87
      %s88 = sphi 0, %s85
      %s89 = sphi 0, %s88
      %s105 = sphi 0, %s89
      %s121 = sphi 0, %s123
      %s124 = sphi 0, %s121
      %s125 = sphi 0, %s124
      %s141 = sphi 0, %s125
      %s145 = sphi 0, %s145
      %s147 = sphi 0, %s145
      %s148 = sphi 0, %s147
      %s162 = sphi 0, %s148
      %s166 = sphi 0, %s166
      %s168 = sphi 0, %s166
      %s169 = sphi 0, %s168
      %s183 = sphi 0, %s169
      %s187 = sphi 0, %s187
      %s189 = sphi 0, %s187
      %s190 = sphi 0, %s189
      %s204 = sphi 0, %s190
      %s208 = sphi 0, %s208
      %s210 = sphi 0, %s208
      %s211 = sphi 0, %s210
      %s225 = sphi 0, %s211
      %s229 = sphi 0, %s229
      %s231 = sphi 0, %s229
      %s232 = sphi 0, %s231
      %s246 = sphi 0, %s232
      %s250 = sphi 0, %s250
      %s252 = sphi 0, %s250
      %s253 = sphi 0, %s252
      %s267 = sphi 0, %s253
      %s275 = sphi 0, %s277
      %s278 = sphi 0, %s275
      %s279 = sphi 0, %s278
      %s295 = sphi 0, %s279
    $region4: #{tpu_custom_call.1} parent=1 // loop_header_branch
      %28 = sbr.rel (%p26) target = $region8
    $region5: #{tpu_custom_call.1} parent=1 // loop_body
      %s30 = ssub.s32 %s25, 1
      %s31 = ssub.s32 %s25, 2
      %s38 = sadd.s32 1, %s33
      %p39 = scmp.ge.s32.totalorder %s38, 2
      %s40 = scalar_select %p39, 0, %s38
      %s41 = sadd.s32 1, %s32
      %s42 = scalar_select %p39, %s41, %s32
      %p43 = scmp.ge.s32.totalorder %s42, 2
      %s44 = scalar_select %p43, 0, %s42
      %s45 = ssub.s32 %s32, %s44
      %s46 = ssub.s32 %s33, %s40
      %s47 = sor.u32 %s45, %s46
      %p48 = scmp.eq.s32.totalorder %s47, 0
      %s50 = sadd.s32 %s49, 1
      %s51 = scalar_select %p48, %s49, %s50
      %p54 = pneg %p48
      %p55 = scmp.eq.s32.totalorder %s25, 3
      %p56 = por %p54, %p55
      %p57 = scmp.ne.s32.totalorder %s49, %s52
      %p58 = scmp.eq.s32.totalorder %s25, 0
      %p59 = por %p57, %p58
      %p60 = scmp.ne.s32.totalorder %s49, %s52
      %p61 = scmp.eq.s32.totalorder %s30, 3
      %p62 = por %p60, %p61
      %p63 = scmp.ne.s32.totalorder %s52, %s53
      %p64 = scmp.eq.s32.totalorder %s30, 0
      %p65 = por %p63, %p64
      %p66 = scmp.ne.s32.totalorder %s52, %s53
      %p67 = scmp.eq.s32.totalorder %s31, 3
      %p68 = por %p66, %p67
      %p70 = scmp.ne.s32.totalorder %s53, %s69
      %p71 = scmp.eq.s32.totalorder %s31, 0
      %p72 = por %p70, %p71
      %s73 = smul.u32 %s33, 8
      %s74 = ssub.s32 %s73, 1
      %p75 = scmp.gt.s32.totalorder %s74, 0
      %s76 = scalar_select %p75, %s74, 0
      %s77 = smul.u32 %s40, 8
      %s78 = ssub.s32 %s77, 1
      %p79 = scmp.gt.s32.totalorder %s78, 0
      %s80 = scalar_select %p79, %s78, 0
      %s81 = ssub.s32 %s32, %s44
      %s82 = ssub.s32 %s76, %s80
      %s83 = sor.u32 %s81, %s82
      %p84 = scmp.eq.s32.totalorder %s83, 0
      %s86 = sadd.s32 %s85, 1
      %s87 = scalar_select %p84, %s85, %s86
      %p90 = pneg %p84
      %p91 = scmp.eq.s32.totalorder %s25, 3
      %p92 = por %p90, %p91
      %p93 = scmp.ne.s32.totalorder %s85, %s88
      %p94 = scmp.eq.s32.totalorder %s25, 0
      %p95 = por %p93, %p94
      %p96 = scmp.ne.s32.totalorder %s85, %s88
      %p97 = scmp.eq.s32.totalorder %s30, 3
      %p98 = por %p96, %p97
      %p99 = scmp.ne.s32.totalorder %s88, %s89
      %p100 = scmp.eq.s32.totalorder %s30, 0
      %p101 = por %p99, %p100
      %p102 = scmp.ne.s32.totalorder %s88, %s89
      %p103 = scmp.eq.s32.totalorder %s31, 3
      %p104 = por %p102, %p103
      %p106 = scmp.ne.s32.totalorder %s89, %s105
      %p107 = scmp.eq.s32.totalorder %s31, 0
      %p108 = por %p106, %p107
      %s109 = sadd.s32 %s33, 1
      %s110 = smul.u32 %s109, 8
      %p111 = scmp.lt.s32.totalorder %s110, 15
      %s112 = scalar_select %p111, %s110, 15
      %s113 = sadd.s32 %s40, 1
      %s114 = smul.u32 %s113, 8
      %p115 = scmp.lt.s32.totalorder %s114, 15
      %s116 = scalar_select %p115, %s114, 15
      %s117 = ssub.s32 %s32, %s44
      %s118 = ssub.s32 %s112, %s116
      %s119 = sor.u32 %s117, %s118
      %p120 = scmp.eq.s32.totalorder %s119, 0
      %s122 = sadd.s32 %s121, 1
      %s123 = scalar_select %p120, %s121, %s122
      %p126 = pneg %p120
      %p127 = scmp.eq.s32.totalorder %s25, 3
      %p128 = por %p126, %p127
      %p129 = scmp.ne.s32.totalorder %s121, %s124
      %p130 = scmp.eq.s32.totalorder %s25, 0
      %p131 = por %p129, %p130
      %p132 = scmp.ne.s32.totalorder %s121, %s124
      %p133 = scmp.eq.s32.totalorder %s30, 3
      %p134 = por %p132, %p133
      %p135 = scmp.ne.s32.totalorder %s124, %s125
      %p136 = scmp.eq.s32.totalorder %s30, 0
      %p137 = por %p135, %p136
      %p138 = scmp.ne.s32.totalorder %s124, %s125
      %p139 = scmp.eq.s32.totalorder %s31, 3
      %p140 = por %p138, %p139
      %p142 = scmp.ne.s32.totalorder %s125, %s141
      %p143 = scmp.eq.s32.totalorder %s31, 0
      %p144 = por %p142, %p143
      %s146 = sadd.s32 %s145, 1
      %p149 = scmp.eq.s32.totalorder %s25, 3
      %p150 = scmp.ne.s32.totalorder %s145, %s147
      %p151 = scmp.eq.s32.totalorder %s25, 0
      %p152 = por %p150, %p151
      %p153 = scmp.ne.s32.totalorder %s145, %s147
      %p154 = scmp.eq.s32.totalorder %s30, 3
      %p155 = por %p153, %p154
      %p156 = scmp.ne.s32.totalorder %s147, %s148
      %p157 = scmp.eq.s32.totalorder %s30, 0
      %p158 = por %p156, %p157
      %p159 = scmp.ne.s32.totalorder %s147, %s148
      %p160 = scmp.eq.s32.totalorder %s31, 3
      %p161 = por %p159, %p160
      %p163 = scmp.ne.s32.totalorder %s148, %s162
      %p164 = scmp.eq.s32.totalorder %s31, 0
      %p165 = por %p163, %p164
      %s167 = sadd.s32 %s166, 1
      %p170 = scmp.eq.s32.totalorder %s25, 3
      %p171 = scmp.ne.s32.totalorder %s166, %s168
      %p172 = scmp.eq.s32.totalorder %s25, 0
      %p173 = por %p171, %p172
      %p174 = scmp.ne.s32.totalorder %s166, %s168
      %p175 = scmp.eq.s32.totalorder %s30, 3
      %p176 = por %p174, %p175
      %p177 = scmp.ne.s32.totalorder %s168, %s169
      %p178 = scmp.eq.s32.totalorder %s30, 0
      %p179 = por %p177, %p178
      %p180 = scmp.ne.s32.totalorder %s168, %s169
      %p181 = scmp.eq.s32.totalorder %s31, 3
      %p182 = por %p180, %p181
      %p184 = scmp.ne.s32.totalorder %s169, %s183
      %p185 = scmp.eq.s32.totalorder %s31, 0
      %p186 = por %p184, %p185
      %s188 = sadd.s32 %s187, 1
      %p191 = scmp.eq.s32.totalorder %s25, 3
      %p192 = scmp.ne.s32.totalorder %s187, %s189
      %p193 = scmp.eq.s32.totalorder %s25, 0
      %p194 = por %p192, %p193
      %p195 = scmp.ne.s32.totalorder %s187, %s189
      %p196 = scmp.eq.s32.totalorder %s30, 3
      %p197 = por %p195, %p196
      %p198 = scmp.ne.s32.totalorder %s189, %s190
      %p199 = scmp.eq.s32.totalorder %s30, 0
      %p200 = por %p198, %p199
      %p201 = scmp.ne.s32.totalorder %s189, %s190
      %p202 = scmp.eq.s32.totalorder %s31, 3
      %p203 = por %p201, %p202
      %p205 = scmp.ne.s32.totalorder %s190, %s204
      %p206 = scmp.eq.s32.totalorder %s31, 0
      %p207 = por %p205, %p206
      %s209 = sadd.s32 %s208, 1
      %p212 = scmp.eq.s32.totalorder %s25, 3
      %p213 = scmp.ne.s32.totalorder %s208, %s210
      %p214 = scmp.eq.s32.totalorder %s25, 0
      %p215 = por %p213, %p214
      %p216 = scmp.ne.s32.totalorder %s208, %s210
      %p217 = scmp.eq.s32.totalorder %s30, 3
      %p218 = por %p216, %p217
      %p219 = scmp.ne.s32.totalorder %s210, %s211
      %p220 = scmp.eq.s32.totalorder %s30, 0
      %p221 = por %p219, %p220
      %p222 = scmp.ne.s32.totalorder %s210, %s211
      %p223 = scmp.eq.s32.totalorder %s31, 3
      %p224 = por %p222, %p223
      %p226 = scmp.ne.s32.totalorder %s211, %s225
      %p227 = scmp.eq.s32.totalorder %s31, 0
      %p228 = por %p226, %p227
      %s230 = sadd.s32 %s229, 1
      %p233 = scmp.eq.s32.totalorder %s25, 3
      %p234 = scmp.ne.s32.totalorder %s229, %s231
      %p235 = scmp.eq.s32.totalorder %s25, 0
      %p236 = por %p234, %p235
      %p237 = scmp.ne.s32.totalorder %s229, %s231
      %p238 = scmp.eq.s32.totalorder %s30, 3
      %p239 = por %p237, %p238
      %p240 = scmp.ne.s32.totalorder %s231, %s232
      %p241 = scmp.eq.s32.totalorder %s30, 0
      %p242 = por %p240, %p241
      %p243 = scmp.ne.s32.totalorder %s231, %s232
      %p244 = scmp.eq.s32.totalorder %s31, 3
      %p245 = por %p243, %p244
      %p247 = scmp.ne.s32.totalorder %s232, %s246
      %p248 = scmp.eq.s32.totalorder %s31, 0
      %p249 = por %p247, %p248
      %s251 = sadd.s32 %s250, 1
      %p254 = scmp.eq.s32.totalorder %s25, 3
      %p255 = scmp.ne.s32.totalorder %s250, %s252
      %p256 = scmp.eq.s32.totalorder %s25, 0
      %p257 = por %p255, %p256
      %p258 = scmp.ne.s32.totalorder %s250, %s252
      %p259 = scmp.eq.s32.totalorder %s30, 3
      %p260 = por %p258, %p259
      %p261 = scmp.ne.s32.totalorder %s252, %s253
      %p262 = scmp.eq.s32.totalorder %s30, 0
      %p263 = por %p261, %p262
      %p264 = scmp.ne.s32.totalorder %s252, %s253
      %p265 = scmp.eq.s32.totalorder %s31, 3
      %p266 = por %p264, %p265
      %p268 = scmp.ne.s32.totalorder %s253, %s267
      %p269 = scmp.eq.s32.totalorder %s31, 0
      %p270 = por %p268, %p269
      %s271 = ssub.s32 %s32, %s44
      %s272 = ssub.s32 %s33, %s40
      %s273 = sor.u32 %s271, %s272
      %p274 = scmp.eq.s32.totalorder %s273, 0
      %s276 = sadd.s32 %s275, 1
      %s277 = scalar_select %p274, %s275, %s276
      %p280 = pneg %p274
      %p281 = scmp.eq.s32.totalorder %s25, 3
      %p282 = por %p280, %p281
      %p283 = scmp.ne.s32.totalorder %s275, %s278
      %p284 = scmp.eq.s32.totalorder %s25, 0
      %p285 = por %p283, %p284
      %p286 = scmp.ne.s32.totalorder %s275, %s278
      %p287 = scmp.eq.s32.totalorder %s30, 3
      %p288 = por %p286, %p287
      %p289 = scmp.ne.s32.totalorder %s278, %s279
      %p290 = scmp.eq.s32.totalorder %s30, 0
      %p291 = por %p289, %p290
      %p292 = scmp.ne.s32.totalorder %s278, %s279
      %p293 = scmp.eq.s32.totalorder %s31, 3
      %p294 = por %p292, %p293
      %p296 = scmp.ne.s32.totalorder %s279, %s295
      %p297 = scmp.eq.s32.totalorder %s31, 0
      %p298 = por %p296, %p297
      %p299 = scmp.le.s32.totalorder 1, %s25
      %p300 = scmp.lt.s32.totalorder %s25, 5
      %p301 = pnand %p299, %p300
      %p302 = pneg %p301
      // Predicated region
      $region9: #{tpu_custom_call.1} parent=5 // pred_check
        _
      $region10: #{tpu_custom_call.1} parent=5 // pred_check_branch
        %304 = sbr.rel (%p301) target = $region12
      $region11: #{tpu_custom_call.1} parent=5 // pred_region
        %s305 = ssub.s32 %s25, 1
        // Predicated region
        $region13: #{tpu_custom_call.1} parent=11 // pred_check
          %p306 = pneg %p158
        $region14: #{tpu_custom_call.1} parent=11 // pred_check_branch
          %308 = sbr.rel (%p306) target = $region16
        $region15: #{tpu_custom_call.1} parent=11 // pred_region
          _
        $region16: #{tpu_custom_call.1} parent=11 // pred_fallthru
          _
        // Predicated region
        $region17: #{tpu_custom_call.1} parent=11 // pred_check
          %p309 = pneg %p179
        $region18: #{tpu_custom_call.1} parent=11 // pred_check_branch
          %311 = sbr.rel (%p309) target = $region20
        $region19: #{tpu_custom_call.1} parent=11 // pred_region
          _
        $region20: #{tpu_custom_call.1} parent=11 // pred_fallthru
          _
        // Predicated region
        $region21: #{tpu_custom_call.1} parent=11 // pred_check
          %p312 = pneg %p200
        $region22: #{tpu_custom_call.1} parent=11 // pred_check_branch
          %314 = sbr.rel (%p312) target = $region24
        $region23: #{tpu_custom_call.1} parent=11 // pred_region
          %s316 = ssub.s32 2304, 2304
          %317 = vsyncadd [#allocation10], %s316
          %s318 = sshll.u32 [#allocation9], 4
          %s319 = int_to_ptr.vmem [resolvable:$true] %s318
          %324 = dma.hbm_to_vmem [thread:$0]  %s5, 2304, %s319, [#allocation10], 128, 128, 8
        $region24: #{tpu_custom_call.1} parent=11 // pred_fallthru
          _
        // Predicated region
        $region25: #{tpu_custom_call.1} parent=11 // pred_check
          %p325 = pneg %p221
        $region26: #{tpu_custom_call.1} parent=11 // pred_check_branch
          %327 = sbr.rel (%p325) target = $region28
        $region27: #{tpu_custom_call.1} parent=11 // pred_region
          _
        $region28: #{tpu_custom_call.1} parent=11 // pred_fallthru
          _
        // Predicated region
        $region29: #{tpu_custom_call.1} parent=11 // pred_check
          %p328 = pneg %p242
        $region30: #{tpu_custom_call.1} parent=11 // pred_check_branch
          %330 = sbr.rel (%p328) target = $region32
        $region31: #{tpu_custom_call.1} parent=11 // pred_region
          _
        $region32: #{tpu_custom_call.1} parent=11 // pred_fallthru
          _
        // Predicated region
        $region33: #{tpu_custom_call.1} parent=11 // pred_check
          %p331 = pneg %p263
        $region34: #{tpu_custom_call.1} parent=11 // pred_check_branch
          %333 = sbr.rel (%p331) target = $region36
        $region35: #{tpu_custom_call.1} parent=11 // pred_region
          _
        $region36: #{tpu_custom_call.1} parent=11 // pred_fallthru
          _
      $region12: #{tpu_custom_call.1} parent=5 // pred_fallthru
        _
      %p334 = scmp.lt.s32.totalorder %s25, 4
      // Predicated region
      $region37: #{tpu_custom_call.1} parent=5 // pred_check
        %p335 = pneg %p334
      $region38: #{tpu_custom_call.1} parent=5 // pred_check_branch
        %337 = sbr.rel (%p335) target = $region40
      $region39: #{tpu_custom_call.1} parent=5 // pred_region
        // Predicated region
        $region41: #{tpu_custom_call.1} parent=39 // pred_check
          %p338 = pneg %p59
        $region42: #{tpu_custom_call.1} parent=39 // pred_check_branch
          %340 = sbr.rel (%p338) target = $region44
        $region43: #{tpu_custom_call.1} parent=39 // pred_region
          %s341 = sand.u32 %s49, 1
          %s342 = scalar_lea.sflag [#allocation4], %s341
          %s343 = sand.u32 %s49, 1
          %s344 = smul.addr %s343, 128
          %s345 = scalar_lea.vmem [#allocation3], %s344
          %s346 = smul.u32 8, %s33
          %s348 = ssub.s32 2048, 2048
          %349 = vsyncadd %s342, %s348
          %s350 = smul.addr %s346, 2
          %s351 = smul.addr %s32, 32
          %s352 = sadd.s32 %s350, %s351
          %s353 = smul.addr %s352, 128
          %s354 = scalar_lea.hbm %s0, %s353
          %s355 = sshll.u32 %s345, 4
          %s356 = int_to_ptr.vmem [resolvable:$true] %s355
          %361 = dma.hbm_to_vmem [thread:$0]  %s354, 2048, %s356, %s342, 128, 128, 8
        $region44: #{tpu_custom_call.1} parent=39 // pred_fallthru
          _
        // Predicated region
        $region45: #{tpu_custom_call.1} parent=39 // pred_check
          %p362 = pneg %p95
        $region46: #{tpu_custom_call.1} parent=39 // pred_check_branch
          %364 = sbr.rel (%p362) target = $region48
        $region47: #{tpu_custom_call.1} parent=39 // pred_region
          %s365 = sand.u32 %s25, 1
          %s366 = scalar_lea.sflag [#allocation7], %s365
          %s367 = sand.u32 %s85, 1
          %s368 = smul.addr %s367, 16
          %s369 = scalar_lea.vmem [#allocation6], %s368
          %s370 = smul.u32 %s33, 8
          %s371 = ssub.s32 %s370, 1
          %p372 = scmp.gt.s32.totalorder %s371, 0
          %s373 = scalar_select %p372, %s371, 0
          %s375 = ssub.s32 256, 256
          %376 = vsyncadd %s366, %s375
          %s377 = smul.addr %s373, 2
          %s378 = smul.addr %s32, 32
          %s379 = sadd.s32 %s377, %s378
          %s380 = smul.addr %s379, 128
          %s381 = scalar_lea.hbm %s1, %s380
          %s382 = sshll.u32 %s369, 4
          %s383 = int_to_ptr.vmem [resolvable:$true] %s382
          %388 = dma.hbm_to_vmem [thread:$0]  %s381, 256, %s383, %s366, 128, 128, 8
        $region48: #{tpu_custom_call.1} parent=39 // pred_fallthru
          _
        // Predicated region
        $region49: #{tpu_custom_call.1} parent=39 // pred_check
          %p389 = pneg %p131
        $region50: #{tpu_custom_call.1} parent=39 // pred_check_branch
          %391 = sbr.rel (%p389) target = $region52
        $region51: #{tpu_custom_call.1} parent=39 // pred_region
          %s392 = sand.u32 %s25, 1
          %s393 = scalar_lea.sflag [#allocation7], %s392
          %s394 = sand.u32 %s121, 1
          %s395 = smul.addr %s394, 16
          %s396 = scalar_lea.vmem [#allocation8], %s395
          %s397 = sadd.s32 %s33, 1
          %s398 = smul.u32 %s397, 8
          %p399 = scmp.lt.s32.totalorder %s398, 15
          %s400 = scalar_select %p399, %s398, 15
          %s402 = ssub.s32 256, 256
          %403 = vsyncadd %s393, %s402
          %s404 = smul.addr %s400, 2
          %s405 = smul.addr %s32, 32
          %s406 = sadd.s32 %s404, %s405
          %s407 = smul.addr %s406, 128
          %s408 = scalar_lea.hbm %s2, %s407
          %s409 = sshll.u32 %s396, 4
          %s410 = int_to_ptr.vmem [resolvable:$true] %s409
          %415 = dma.hbm_to_vmem [thread:$0]  %s408, 256, %s410, %s393, 128, 128, 8
        $region52: #{tpu_custom_call.1} parent=39 // pred_fallthru
          _
      $region40: #{tpu_custom_call.1} parent=5 // pred_fallthru
        _
      %p416 = scmp.le.s32.totalorder 1, %s25
      %p417 = scmp.lt.s32.totalorder %s25, 5
      %p418 = pnand %p416, %p417
      %p419 = pneg %p418
      // Predicated region
      $region53: #{tpu_custom_call.1} parent=5 // pred_check
        _
      $region54: #{tpu_custom_call.1} parent=5 // pred_check_branch
        %421 = sbr.rel (%p418) target = $region56
      $region55: #{tpu_custom_call.1} parent=5 // pred_region
        %s422 = ssub.s32 %s25, 1
        %s423 = sand.u32 %s52, 1
        %s424 = scalar_lea.sflag [#allocation4], %s423
        %s425 = sand.u32 %s52, 1
        %s426 = smul.addr %s425, 128
        %s427 = scalar_lea.vmem [#allocation3], %s426
        // Predicated region
        $region57: #{tpu_custom_call.1} parent=55 // pred_check
          %p428 = pneg %p65
        $region58: #{tpu_custom_call.1} parent=55 // pred_check_branch
          %430 = sbr.rel (%p428) target = $region60
        $region59: #{tpu_custom_call.1} parent=55 // pred_region
          %431 = dma.done %s424, 2048
        $region60: #{tpu_custom_call.1} parent=55 // pred_fallthru
          _
        %s432 = sand.u32 %s30, 1
        %s433 = scalar_lea.sflag [#allocation7], %s432
        %s434 = sand.u32 %s88, 1
        %s435 = smul.addr %s434, 16
        %s436 = scalar_lea.vmem [#allocation6], %s435
        // Predicated region
        $region61: #{tpu_custom_call.1} parent=55 // pred_check
          %p437 = pneg %p101
        $region62: #{tpu_custom_call.1} parent=55 // pred_check_branch
          %439 = sbr.rel (%p437) target = $region64
        $region63: #{tpu_custom_call.1} parent=55 // pred_region
          %440 = dma.done %s433, 256
        $region64: #{tpu_custom_call.1} parent=55 // pred_fallthru
          _
        %s441 = sand.u32 %s30, 1
        %s442 = scalar_lea.sflag [#allocation7], %s441
        %s443 = sand.u32 %s124, 1
        %s444 = smul.addr %s443, 16
        %s445 = scalar_lea.vmem [#allocation8], %s444
        // Predicated region
        $region65: #{tpu_custom_call.1} parent=55 // pred_check
          %p446 = pneg %p137
        $region66: #{tpu_custom_call.1} parent=55 // pred_check_branch
          %448 = sbr.rel (%p446) target = $region68
        $region67: #{tpu_custom_call.1} parent=55 // pred_region
          %449 = dma.done %s442, 256
        $region68: #{tpu_custom_call.1} parent=55 // pred_fallthru
          _
        // Predicated region
        $region69: #{tpu_custom_call.1} parent=55 // pred_check
          %p450 = pneg %p200
        $region70: #{tpu_custom_call.1} parent=55 // pred_check_branch
          %452 = sbr.rel (%p450) target = $region72
        $region71: #{tpu_custom_call.1} parent=55 // pred_region
          %453 = dma.done [#allocation10], 2304
        $region72: #{tpu_custom_call.1} parent=55 // pred_fallthru
          _
        %s454 = sand.u32 %s52, 1
        %s455 = scalar_lea.sflag [#allocation4], %s454
        %s456 = sand.u32 %s52, 1
        %s457 = smul.addr %s456, 128
        %s458 = scalar_lea.vmem [#allocation3], %s457
        %p459 = pneg %p65
        %p460 = pneg %p62
        %s461 = sand.u32 %s30, 1
        %s462 = scalar_lea.sflag [#allocation7], %s461
        %s463 = sand.u32 %s88, 1
        %s464 = smul.addr %s463, 16
        %s465 = scalar_lea.vmem [#allocation6], %s464
        %p466 = pneg %p101
        %p467 = pneg %p98
        %s468 = sand.u32 %s30, 1
        %s469 = scalar_lea.sflag [#allocation7], %s468
        %s470 = sand.u32 %s124, 1
        %s471 = smul.addr %s470, 16
        %s472 = scalar_lea.vmem [#allocation8], %s471
        %p473 = pneg %p137
        %p474 = pneg %p134
        %p475 = pneg %p158
        %p476 = pneg %p155
        %p477 = pneg %p179
        %p478 = pneg %p176
        %p479 = pneg %p200
        %p480 = pneg %p197
        %p481 = pneg %p221
        %p482 = pneg %p218
        %p483 = pneg %p242
        %p484 = pneg %p239
        %p485 = pneg %p263
        %p486 = pneg %p260
        %p487 = pneg %p291
        %p488 = pneg %p288
        %s489 = sand.u32 %s278, 1
        %s490 = scalar_lea.sflag [#allocation5], %s489
        %s491 = sand.u32 %s278, 1
        %s492 = smul.addr %s491, 128
        %s493 = scalar_lea.vmem [#allocation11], %s492
        %s494 = smul.u32 8, %s35
        %s495 = smul.u32 %s35, 8
        %s496 = ssub.s32 %s495, 1
        %p497 = scmp.gt.s32.totalorder %s496, 0
        %s498 = scalar_select %p497, %s496, 0
        %s499 = sadd.s32 %s35, 1
        %s500 = smul.u32 %s499, 8
        %p501 = scmp.lt.s32.totalorder %s500, 15
        %s502 = scalar_select %p501, %s500, 15
        %s503 = smul.u32 8, %s35
        %v504 = vld [vmem:[%s3] sm:$0xff]
        %v505 = vld [vmem:[%s3 + $0x8] sm:$0xff]
        %v506 = vld [vmem:[%s3 + $0x10] sm:$0xff]
        %v507 = vld [vmem:[%s3 + $0x18] sm:$0xff]
        %v508 = vld [vmem:[%s4] sm:$0x1]
        %v509 = vld [vmem:[%s427] sm:$0xff]
        %v510 = vld [vmem:[%s427 + $0x8] sm:$0xff]
        %v511 = vld [vmem:[%s427 + $0x10] sm:$0xff]
        %v512 = vld [vmem:[%s427 + $0x18] sm:$0xff]
        %v513 = vld [vmem:[%s427 + $0x20] sm:$0xff]
        %v514 = vld [vmem:[%s427 + $0x28] sm:$0xff]
        %v515 = vld [vmem:[%s427 + $0x30] sm:$0xff]
        %v516 = vld [vmem:[%s427 + $0x38] sm:$0xff]
        %v517 = vld [vmem:[%s427 + $0x40] sm:$0xff]
        %v518 = vld [vmem:[%s427 + $0x48] sm:$0xff]
        %v519 = vld [vmem:[%s427 + $0x50] sm:$0xff]
        %v520 = vld [vmem:[%s427 + $0x58] sm:$0xff]
        %v521 = vld [vmem:[%s427 + $0x60] sm:$0xff]
        %v522 = vld [vmem:[%s427 + $0x68] sm:$0xff]
        %v523 = vld [vmem:[%s427 + $0x70] sm:$0xff]
        %v524 = vld [vmem:[%s427 + $0x78] sm:$0xff]
        %v526 = vlaneseq
        %v527 = vshrl.u32 %v526, 7
        %v528 = vsub.s32 0, %v527
        %v529 = vrot.slane %v508, %v528
        %vm531 = vcmask 261120
        %v533 = vsel %vm531, %v509, 0
        %v536 = vsel %vm531, %v510, 0
        %v539 = vsel %vm531, %v511, 0
        %v542 = vsel %vm531, %v512, 0
        %v545 = vsel %vm531, %v513, 0
        %v548 = vsel %vm531, %v514, 0
        %v551 = vsel %vm531, %v515, 0
        %v554 = vsel %vm531, %v516, 0
        %v557 = vsel %vm531, %v517, 0
        %v560 = vsel %vm531, %v518, 0
        %v563 = vsel %vm531, %v519, 0
        %v566 = vsel %vm531, %v520, 0
        %v569 = vsel %vm531, %v521, 0
        %v572 = vsel %vm531, %v522, 0
        %v575 = vsel %vm531, %v523, 0
        %v578 = vsel %vm531, %v524, 0
        %580 = vmatprep.subr.mxu0 0.0
        %581 = vmatpush1.msra.mxu0 %v504
        %582 = vmatprep.subr.mxu0 0.0
        %583 = vmatpush1.msra.mxu0 %v505
        %584 = vmatprep.subr.mxu0 0.0
        %585 = vmatpush1.msra.mxu0 %v506
        %586 = vmatprep.subr.mxu0 0.0
        %587 = vmatpush1.msra.mxu0 %v507
        %588 = vmatprep.subr.mxu0 0.0
        %589 = vmatpush1.msra.mxu0 0.0
        %590 = vmatprep.subr.mxu0 0.0
        %591 = vmatpush1.msra.mxu0 0.0
        %592 = vmatprep.subr.mxu0 0.0
        %593 = vmatpush1.msra.mxu0 0.0
        %594 = vmatprep.subr.mxu0 0.0
        %595 = vmatpush1.msra.mxu0 0.0
        %596 = vmatprep.subr.mxu0 0.0
        %597 = vmatpush1.msra.mxu0 0.0
        %598 = vmatprep.subr.mxu0 0.0
        %599 = vmatpush1.msra.mxu0 0.0
        %600 = vmatprep.subr.mxu0 0.0
        %601 = vmatpush1.msra.mxu0 0.0
        %602 = vmatprep.subr.mxu0 0.0
        %603 = vmatpush1.msra.mxu0 0.0
        %604 = vmatprep.subr.mxu0 0.0
        %605 = vmatpush1.msra.mxu0 0.0
        %606 = vmatprep.subr.mxu0 0.0
        %607 = vmatpush1.msra.mxu0 0.0
        %608 = vmatprep.subr.mxu0 0.0
        %609 = vmatpush1.msra.mxu0 0.0
        %610 = vmatprep.subr.mxu0 0.0
        %611 = vmatpush1.msra.mxu0 0.0
        %612 = vmatprep.subr.mxu0 0.0
        %613 = vmatpush1.msra.mxu0 0.0
        %614 = vmatprep.subr.mxu0 0.0
        %615 = vmatpush1.msra.mxu0 0.0
        %616 = vmatprep.subr.mxu0 0.0
        %617 = vmatpush1.msra.mxu0 0.0
        %618 = vmatprep.subr.mxu0 0.0
        %619 = vmatpush1.msra.mxu0 0.0
        %620 = vmatprep.subr.mxu0 0.0
        %621 = vmatpush1.msra.mxu0 0.0
        %622 = vmatprep.subr.mxu0 0.0
        %623 = vmatpush1.msra.mxu0 0.0
        %624 = vmatprep.subr.mxu0 0.0
        %625 = vmatpush1.msra.mxu0 0.0
        %626 = vmatprep.subr.mxu0 0.0
        %627 = vmatpush1.msra.mxu0 0.0
        %628 = vmatprep.subr.mxu0 0.0
        %629 = vmatpush1.msra.mxu0 0.0
        %630 = vmatprep.subr.mxu0 0.0
        %631 = vmatpush1.msra.mxu0 0.0
        %632 = vmatprep.subr.mxu0 0.0
        %633 = vmatpush1.msra.mxu0 0.0
        %634 = vmatprep.subr.mxu0 0.0
        %635 = vmatpush1.msra.mxu0 0.0
        %636 = vmatprep.subr.mxu0 0.0
        %637 = vmatpush1.msra.mxu0 0.0
        %638 = vmatprep.subr.mxu0 0.0
        %639 = vmatpush1.msra.mxu0 0.0
        %640 = vmatprep.subr.mxu0 0.0
        %641 = vmatpush1.msra.mxu0 0.0
        %642 = vmatprep.subr.mxu0 0.0
        %643 = vmatpush1.msra.mxu0 0.0
        %644 = vmatprep.mubr.f32.mxu0 0.0
        %645 = vmatmul.mubr.f32.gmra.mrb[0].mxu0 %v533
        %v646 = vpop.f32.mrb[0].mxu0
        %v647 = vadd.f32 %v529, %v646
        %v648 = vpop.f32.mrb[0].mxu0
        %649 = vmatprep.mubr.f32.mxu0 0.0
        %650 = vmatmul.mubr.f32.gmra.mrb[0].mxu0 %v536
        %v651 = vpop.f32.mrb[0].mxu0
        %v652 = vadd.f32 %v529, %v651
        %v653 = vpop.f32.mrb[0].mxu0
        %654 = vmatprep.mubr.f32.mxu0 0.0
        %655 = vmatmul.mubr.f32.gmra.mrb[0].mxu0 %v539
        %v656 = vpop.f32.mrb[0].mxu0
        %v657 = vadd.f32 %v529, %v656
        %v658 = vpop.f32.mrb[0].mxu0
        %659 = vmatprep.mubr.f32.mxu0 0.0
        %660 = vmatmul.mubr.f32.gmra.mrb[0].mxu0 %v542
        %v661 = vpop.f32.mrb[0].mxu0
        %v662 = vadd.f32 %v529, %v661
        %v663 = vpop.f32.mrb[0].mxu0
        %664 = vmatprep.mubr.f32.mxu0 0.0
        %665 = vmatmul.mubr.f32.gmra.mrb[0].mxu0 %v545
        %v666 = vpop.f32.mrb[0].mxu0
        %v667 = vadd.f32 %v529, %v666
        %v668 = vpop.f32.mrb[0].mxu0
        %669 = vmatprep.mubr.f32.mxu0 0.0
        %670 = vmatmul.mubr.f32.gmra.mrb[0].mxu0 %v548
        %v671 = vpop.f32.mrb[0].mxu0
        %v672 = vadd.f32 %v529, %v671
        %v673 = vpop.f32.mrb[0].mxu0
        %674 = vmatprep.mubr.f32.mxu0 0.0
        %675 = vmatmul.mubr.f32.gmra.mrb[0].mxu0 %v551
        %v676 = vpop.f32.mrb[0].mxu0
        %v677 = vadd.f32 %v529, %v676
        %v678 = vpop.f32.mrb[0].mxu0
        %679 = vmatprep.mubr.f32.mxu0 0.0
        %680 = vmatmul.mubr.f32.gmra.mrb[0].mxu0 %v554
        %v681 = vpop.f32.mrb[0].mxu0
        %v682 = vadd.f32 %v529, %v681
        %v683 = vpop.f32.mrb[0].mxu0
        %684 = vmatprep.mubr.f32.mxu0 0.0
        %685 = vmatmul.mubr.f32.gmra.mrb[0].mxu0 %v557
        %v686 = vpop.f32.mrb[0].mxu0
        %v687 = vadd.f32 %v529, %v686
        %v688 = vpop.f32.mrb[0].mxu0
        %689 = vmatprep.mubr.f32.mxu0 0.0
        %690 = vmatmul.mubr.f32.gmra.mrb[0].mxu0 %v560
        %v691 = vpop.f32.mrb[0].mxu0
        %v692 = vadd.f32 %v529, %v691
        %v693 = vpop.f32.mrb[0].mxu0
        %694 = vmatprep.mubr.f32.mxu0 0.0
        %695 = vmatmul.mubr.f32.gmra.mrb[0].mxu0 %v563
        %v696 = vpop.f32.mrb[0].mxu0
        %v697 = vadd.f32 %v529, %v696
        %v698 = vpop.f32.mrb[0].mxu0
        %699 = vmatprep.mubr.f32.mxu0 0.0
        %700 = vmatmul.mubr.f32.gmra.mrb[0].mxu0 %v566
        %v701 = vpop.f32.mrb[0].mxu0
        %v702 = vadd.f32 %v529, %v701
        %v703 = vpop.f32.mrb[0].mxu0
        %704 = vmatprep.mubr.f32.mxu0 0.0
        %705 = vmatmul.mubr.f32.gmra.mrb[0].mxu0 %v569
        %v706 = vpop.f32.mrb[0].mxu0
        %v707 = vadd.f32 %v529, %v706
        %v708 = vpop.f32.mrb[0].mxu0
        %709 = vmatprep.mubr.f32.mxu0 0.0
        %710 = vmatmul.mubr.f32.gmra.mrb[0].mxu0 %v572
        %v711 = vpop.f32.mrb[0].mxu0
        %v712 = vadd.f32 %v529, %v711
        %v713 = vpop.f32.mrb[0].mxu0
        %714 = vmatprep.mubr.f32.mxu0 0.0
        %715 = vmatmul.mubr.f32.gmra.mrb[0].mxu0 %v575
        %v716 = vpop.f32.mrb[0].mxu0
        %v717 = vadd.f32 %v529, %v716
        %v718 = vpop.f32.mrb[0].mxu0
        %719 = vmatprep.mubr.f32.mxu0 0.0
        %720 = vmatmul.mubr.f32.gmra.mrb[0].mxu0 %v578
        %v721 = vpop.f32.mrb[0].mxu0
        %v722 = vadd.f32 %v529, %v721
        %v723 = vpop.f32.mrb[0].mxu0
        %724 = vdwg.mxu0
        %v725 = vmax.f32 %v647, 0.0
        %v726 = vmax.f32 %v652, 0.0
        %v727 = vmax.f32 %v657, 0.0
        %v728 = vmax.f32 %v662, 0.0
        %v729 = vmax.f32 %v667, 0.0
        %v730 = vmax.f32 %v672, 0.0
        %v731 = vmax.f32 %v677, 0.0
        %v732 = vmax.f32 %v682, 0.0
        %v733 = vmax.f32 %v687, 0.0
        %v734 = vmax.f32 %v692, 0.0
        %v735 = vmax.f32 %v697, 0.0
        %v736 = vmax.f32 %v702, 0.0
        %v737 = vmax.f32 %v707, 0.0
        %v738 = vmax.f32 %v712, 0.0
        %v739 = vmax.f32 %v717, 0.0
        %v740 = vmax.f32 %v722, 0.0
        %s741 = scalar_lea.vmem [#allocation2], 24
        %vm742 = vcmask 130048
        %743 = vst.msk [vmem:[%s741 + $0x1] sm:$0xff] %vm742, %v725
        %744 = vst.msk [vmem:[%s741 + $0x9] sm:$0xff] %vm742, %v726
        %745 = vst.msk [vmem:[%s741 + $0x19] sm:$0xff] %vm742, %v727
        %746 = vst.msk [vmem:[%s741 + $0x21] sm:$0xff] %vm742, %v728
        %747 = vst.msk [vmem:[%s741 + $0x31] sm:$0xff] %vm742, %v729
        %748 = vst.msk [vmem:[%s741 + $0x39] sm:$0xff] %vm742, %v730
        %749 = vst.msk [vmem:[%s741 + $0x49] sm:$0xff] %vm742, %v731
        %750 = vst.msk [vmem:[%s741 + $0x51] sm:$0xff] %vm742, %v732
        %751 = vst.msk [vmem:[%s741 + $0x61] sm:$0xff] %vm742, %v733
        %752 = vst.msk [vmem:[%s741 + $0x69] sm:$0xff] %vm742, %v734
        %753 = vst.msk [vmem:[%s741 + $0x79] sm:$0xff] %vm742, %v735
        %754 = vst.msk [vmem:[%s741 + $0x81] sm:$0xff] %vm742, %v736
        %755 = vst.msk [vmem:[%s741 + $0x91] sm:$0xff] %vm742, %v737
        %756 = vst.msk [vmem:[%s741 + $0x99] sm:$0xff] %vm742, %v738
        %757 = vst.msk [vmem:[%s741 + $0xa9] sm:$0xff] %vm742, %v739
        %758 = vst.msk [vmem:[%s741 + $0xb1] sm:$0xff] %vm742, %v740
        %v759 = vld [vmem:[%s436] sm:$0xff]
        %v760 = vld [vmem:[%s436 + $0x8] sm:$0xff]
        %v762 = vsel %vm531, %v759, 0
        %v765 = vsel %vm531, %v760, 0
        %767 = vmatprep.subr.mxu0 0.0
        %768 = vmatpush1.msra.mxu0 %v504
        %769 = vmatprep.subr.mxu0 0.0
        %770 = vmatpush1.msra.mxu0 %v505
        %771 = vmatprep.subr.mxu0 0.0
        %772 = vmatpush1.msra.mxu0 %v506
        %773 = vmatprep.subr.mxu0 0.0
        %774 = vmatpush1.msra.mxu0 %v507
        %775 = vmatprep.subr.mxu0 0.0
        %776 = vmatpush1.msra.mxu0 0.0
        %777 = vmatprep.subr.mxu0 0.0
        %778 = vmatpush1.msra.mxu0 0.0
        %779 = vmatprep.subr.mxu0 0.0
        %780 = vmatpush1.msra.mxu0 0.0
        %781 = vmatprep.subr.mxu0 0.0
        %782 = vmatpush1.msra.mxu0 0.0
        %783 = vmatprep.subr.mxu0 0.0
        %784 = vmatpush1.msra.mxu0 0.0
        %785 = vmatprep.subr.mxu0 0.0
        %786 = vmatpush1.msra.mxu0 0.0
        %787 = vmatprep.subr.mxu0 0.0
        %788 = vmatpush1.msra.mxu0 0.0
        %789 = vmatprep.subr.mxu0 0.0
        %790 = vmatpush1.msra.mxu0 0.0
        %791 = vmatprep.subr.mxu0 0.0
        %792 = vmatpush1.msra.mxu0 0.0
        %793 = vmatprep.subr.mxu0 0.0
        %794 = vmatpush1.msra.mxu0 0.0
        %795 = vmatprep.subr.mxu0 0.0
        %796 = vmatpush1.msra.mxu0 0.0
        %797 = vmatprep.subr.mxu0 0.0
        %798 = vmatpush1.msra.mxu0 0.0
        %799 = vmatprep.subr.mxu0 0.0
        %800 = vmatpush1.msra.mxu0 0.0
        %801 = vmatprep.subr.mxu0 0.0
        %802 = vmatpush1.msra.mxu0 0.0
        %803 = vmatprep.subr.mxu0 0.0
        %804 = vmatpush1.msra.mxu0 0.0
        %805 = vmatprep.subr.mxu0 0.0
        %806 = vmatpush1.msra.mxu0 0.0
        %807 = vmatprep.subr.mxu0 0.0
        %808 = vmatpush1.msra.mxu0 0.0
        %809 = vmatprep.subr.mxu0 0.0
        %810 = vmatpush1.msra.mxu0 0.0
        %811 = vmatprep.subr.mxu0 0.0
        %812 = vmatpush1.msra.mxu0 0.0
        %813 = vmatprep.subr.mxu0 0.0
        %814 = vmatpush1.msra.mxu0 0.0
        %815 = vmatprep.subr.mxu0 0.0
        %816 = vmatpush1.msra.mxu0 0.0
        %817 = vmatprep.subr.mxu0 0.0
        %818 = vmatpush1.msra.mxu0 0.0
        %819 = vmatprep.subr.mxu0 0.0
        %820 = vmatpush1.msra.mxu0 0.0
        %821 = vmatprep.subr.mxu0 0.0
        %822 = vmatpush1.msra.mxu0 0.0
        %823 = vmatprep.subr.mxu0 0.0
        %824 = vmatpush1.msra.mxu0 0.0
        %825 = vmatprep.subr.mxu0 0.0
        %826 = vmatpush1.msra.mxu0 0.0
        %827 = vmatprep.subr.mxu0 0.0
        %828 = vmatpush1.msra.mxu0 0.0
        %829 = vmatprep.subr.mxu0 0.0
        %830 = vmatpush1.msra.mxu0 0.0
        %831 = vmatprep.mubr.f32.mxu0 0.0
        %832 = vmatmul.mubr.f32.gmra.mrb[0].mxu0 %v762
        %v833 = vpop.f32.mrb[0].mxu0
        %v834 = vadd.f32 %v529, %v833
        %v835 = vpop.f32.mrb[0].mxu0
        %836 = vmatprep.mubr.f32.mxu0 0.0
        %837 = vmatmul.mubr.f32.gmra.mrb[0].mxu0 %v765
        %v838 = vpop.f32.mrb[0].mxu0
        %v839 = vadd.f32 %v529, %v838
        %v840 = vpop.f32.mrb[0].mxu0
        %841 = vdwg.mxu0
        %v842 = vmax.f32 %v834, 0.0
        %v843 = vmax.f32 %v839, 0.0
        %p844 = scmp.gt.s32.totalorder %s35, 0
        %s845 = scalar_select %p844, 1, 0
        %v846 = vstv %s845
        %vm847 = vcmp.eq.s32.totalorder %v846, 1
        %v848 = vsel %vm847, %v842, 0.0
        %v849 = vsel %vm847, %v843, 0.0
        %850 = vst.msk [vmem:[#allocation2 + $0x1] sm:$0xff] %vm742, %v848
        %851 = vst.msk [vmem:[#allocation2 + $0x9] sm:$0xff] %vm742, %v849
        %v852 = vld [vmem:[%s445] sm:$0xff]
        %v853 = vld [vmem:[%s445 + $0x8] sm:$0xff]
        %v855 = vsel %vm531, %v852, 0
        %v858 = vsel %vm531, %v853, 0
        %860 = vmatprep.subr.mxu0 0.0
        %861 = vmatpush1.msra.mxu0 %v504
        %862 = vmatprep.subr.mxu0 0.0
        %863 = vmatpush1.msra.mxu0 %v505
        %864 = vmatprep.subr.mxu0 0.0
        %865 = vmatpush1.msra.mxu0 %v506
        %866 = vmatprep.subr.mxu0 0.0
        %867 = vmatpush1.msra.mxu0 %v507
        %868 = vmatprep.subr.mxu0 0.0
        %869 = vmatpush1.msra.mxu0 0.0
        %870 = vmatprep.subr.mxu0 0.0
        %871 = vmatpush1.msra.mxu0 0.0
        %872 = vmatprep.subr.mxu0 0.0
        %873 = vmatpush1.msra.mxu0 0.0
        %874 = vmatprep.subr.mxu0 0.0
        %875 = vmatpush1.msra.mxu0 0.0
        %876 = vmatprep.subr.mxu0 0.0
        %877 = vmatpush1.msra.mxu0 0.0
        %878 = vmatprep.subr.mxu0 0.0
        %879 = vmatpush1.msra.mxu0 0.0
        %880 = vmatprep.subr.mxu0 0.0
        %881 = vmatpush1.msra.mxu0 0.0
        %882 = vmatprep.subr.mxu0 0.0
        %883 = vmatpush1.msra.mxu0 0.0
        %884 = vmatprep.subr.mxu0 0.0
        %885 = vmatpush1.msra.mxu0 0.0
        %886 = vmatprep.subr.mxu0 0.0
        %887 = vmatpush1.msra.mxu0 0.0
        %888 = vmatprep.subr.mxu0 0.0
        %889 = vmatpush1.msra.mxu0 0.0
        %890 = vmatprep.subr.mxu0 0.0
        %891 = vmatpush1.msra.mxu0 0.0
        %892 = vmatprep.subr.mxu0 0.0
        %893 = vmatpush1.msra.mxu0 0.0
        %894 = vmatprep.subr.mxu0 0.0
        %895 = vmatpush1.msra.mxu0 0.0
        %896 = vmatprep.subr.mxu0 0.0
        %897 = vmatpush1.msra.mxu0 0.0
        %898 = vmatprep.subr.mxu0 0.0
        %899 = vmatpush1.msra.mxu0 0.0
        %900 = vmatprep.subr.mxu0 0.0
        %901 = vmatpush1.msra.mxu0 0.0
        %902 = vmatprep.subr.mxu0 0.0
        %903 = vmatpush1.msra.mxu0 0.0
        %904 = vmatprep.subr.mxu0 0.0
        %905 = vmatpush1.msra.mxu0 0.0
        %906 = vmatprep.subr.mxu0 0.0
        %907 = vmatpush1.msra.mxu0 0.0
        %908 = vmatprep.subr.mxu0 0.0
        %909 = vmatpush1.msra.mxu0 0.0
        %910 = vmatprep.subr.mxu0 0.0
        %911 = vmatpush1.msra.mxu0 0.0
        %912 = vmatprep.subr.mxu0 0.0
        %913 = vmatpush1.msra.mxu0 0.0
        %914 = vmatprep.subr.mxu0 0.0
        %915 = vmatpush1.msra.mxu0 0.0
        %916 = vmatprep.subr.mxu0 0.0
        %917 = vmatpush1.msra.mxu0 0.0
        %918 = vmatprep.subr.mxu0 0.0
        %919 = vmatpush1.msra.mxu0 0.0
        %920 = vmatprep.subr.mxu0 0.0
        %921 = vmatpush1.msra.mxu0 0.0
        %922 = vmatprep.subr.mxu0 0.0
        %923 = vmatpush1.msra.mxu0 0.0
        %924 = vmatprep.mubr.f32.mxu0 0.0
        %925 = vmatmul.mubr.f32.gmra.mrb[0].mxu0 %v855
        %v926 = vpop.f32.mrb[0].mxu0
        %v927 = vadd.f32 %v529, %v926
        %v928 = vpop.f32.mrb[0].mxu0
        %929 = vmatprep.mubr.f32.mxu0 0.0
        %930 = vmatmul.mubr.f32.gmra.mrb[0].mxu0 %v858
        %v931 = vpop.f32.mrb[0].mxu0
        %v932 = vadd.f32 %v529, %v931
        %v933 = vpop.f32.mrb[0].mxu0
        %934 = vdwg.mxu0
        %v935 = vmax.f32 %v927, 0.0
        %v936 = vmax.f32 %v932, 0.0
        %p937 = scmp.lt.s32.totalorder %s35, 1
        %s938 = scalar_select %p937, 1, 0
        %v939 = vstv %s938
        %vm940 = vcmp.eq.s32.totalorder %v939, 1
        %v941 = vsel %vm940, %v935, 0.0
        %v942 = vsel %vm940, %v936, 0.0
        %s943 = scalar_lea.vmem [#allocation2], 216
        %944 = vst.msk [vmem:[%s943 + $0x1] sm:$0xff] %vm742, %v941
        %945 = vst.msk [vmem:[%s943 + $0x9] sm:$0xff] %vm742, %v942
        %vm946 = vcmask 122880
        %947 = vst.msk [vmem:[#allocation2] sm:$0x1] %vm946, 0.0
        %948 = vst.msk [vmem:[#allocation2 + $0x18] sm:$0x1] %vm946, 0.0
        %949 = vst.msk [vmem:[#allocation2 + $0x30] sm:$0x1] %vm946, 0.0
        %950 = vst.msk [vmem:[#allocation2 + $0x48] sm:$0x1] %vm946, 0.0
        %951 = vst.msk [vmem:[#allocation2 + $0x60] sm:$0x1] %vm946, 0.0
        %952 = vst.msk [vmem:[#allocation2 + $0x78] sm:$0x1] %vm946, 0.0
        %953 = vst.msk [vmem:[#allocation2 + $0x90] sm:$0x1] %vm946, 0.0
        %954 = vst.msk [vmem:[#allocation2 + $0xa8] sm:$0x1] %vm946, 0.0
        %955 = vst.msk [vmem:[#allocation2 + $0xc0] sm:$0x1] %vm946, 0.0
        %956 = vst.msk [vmem:[#allocation2 + $0xd8] sm:$0x1] %vm946, 0.0
        %vm957 = vcmask 129024
        %958 = vst.msk [vmem:[#allocation2 + $0x11] sm:$0x7f] %vm957, 0.0
        %959 = vst.msk [vmem:[#allocation2 + $0x29] sm:$0x7f] %vm957, 0.0
        %960 = vst.msk [vmem:[#allocation2 + $0x41] sm:$0x7f] %vm957, 0.0
        %961 = vst.msk [vmem:[#allocation2 + $0x59] sm:$0x7f] %vm957, 0.0
        %962 = vst.msk [vmem:[#allocation2 + $0x71] sm:$0x7f] %vm957, 0.0
        %963 = vst.msk [vmem:[#allocation2 + $0x89] sm:$0x7f] %vm957, 0.0
        %964 = vst.msk [vmem:[#allocation2 + $0xa1] sm:$0x7f] %vm957, 0.0
        %965 = vst.msk [vmem:[#allocation2 + $0xb9] sm:$0x7f] %vm957, 0.0
        %966 = vst.msk [vmem:[#allocation2 + $0xd1] sm:$0x7f] %vm957, 0.0
        %967 = vst.msk [vmem:[#allocation2 + $0xe9] sm:$0x7f] %vm957, 0.0
        %v968 = vld [vmem:[#allocation2] sm:$0xff]
        %v969 = vld [vmem:[#allocation2 + $0x8] sm:$0xff]
        %v970 = vld [vmem:[#allocation2 + $0x10] sm:$0xff]
        %v971 = vld [vmem:[#allocation2 + $0x18] sm:$0xff]
        %v972 = vld [vmem:[#allocation2 + $0x20] sm:$0xff]
        %v973 = vld [vmem:[#allocation2 + $0x28] sm:$0xff]
        %v974 = vld [vmem:[#allocation2 + $0x30] sm:$0xff]
        %v975 = vld [vmem:[#allocation2 + $0x38] sm:$0xff]
        %v976 = vld [vmem:[#allocation2 + $0x40] sm:$0xff]
        %v977 = vld [vmem:[#allocation2 + $0x48] sm:$0xff]
        %v978 = vld [vmem:[#allocation2 + $0x50] sm:$0xff]
        %v979 = vld [vmem:[#allocation2 + $0x58] sm:$0xff]
        %v980 = vld [vmem:[#allocation2 + $0x60] sm:$0xff]
        %v981 = vld [vmem:[#allocation2 + $0x68] sm:$0xff]
        %v982 = vld [vmem:[#allocation2 + $0x70] sm:$0xff]
        %v983 = vld [vmem:[#allocation2 + $0x78] sm:$0xff]
        %v984 = vld [vmem:[#allocation2 + $0x80] sm:$0xff]
        %v985 = vld [vmem:[#allocation2 + $0x88] sm:$0xff]
        %v986 = vld [vmem:[#allocation2 + $0x90] sm:$0xff]
        %v987 = vld [vmem:[#allocation2 + $0x98] sm:$0xff]
        %v988 = vld [vmem:[#allocation2 + $0xa0] sm:$0xff]
        %v989 = vld [vmem:[#allocation2 + $0xa8] sm:$0xff]
        %v990 = vld [vmem:[#allocation2 + $0xb0] sm:$0xff]
        %v991 = vld [vmem:[#allocation2 + $0xb8] sm:$0xff]
        %v992 = vld [vmem:[#allocation9] sm:$0xff]
        %v993 = vld [vmem:[#allocation9 + $0x8] sm:$0xff]
        %v995 = vsel %vm742, %v968, 0
        %v998 = vsel %vm742, %v969, 0
        %v1001 = vsel %vm742, %v970, 0
        %v1004 = vsel %vm742, %v971, 0
        %v1007 = vsel %vm742, %v972, 0
        %v1010 = vsel %vm742, %v973, 0
        %v1013 = vsel %vm742, %v974, 0
        %v1016 = vsel %vm742, %v975, 0
        %v1019 = vsel %vm742, %v976, 0
        %v1022 = vsel %vm742, %v977, 0
        %v1025 = vsel %vm742, %v978, 0
        %v1028 = vsel %vm742, %v979, 0
        %v1031 = vsel %vm742, %v980, 0
        %v1034 = vsel %vm742, %v981, 0
        %v1037 = vsel %vm742, %v982, 0
        %v1040 = vsel %vm742, %v983, 0
        %v1043 = vsel %vm742, %v984, 0
        %v1046 = vsel %vm742, %v985, 0
        %v1049 = vsel %vm742, %v986, 0
        %v1052 = vsel %vm742, %v987, 0
        %v1055 = vsel %vm742, %v988, 0
        %v1058 = vsel %vm742, %v989, 0
        %v1061 = vsel %vm742, %v990, 0
        %v1064 = vsel %vm742, %v991, 0
        %1066 = vmatprep.subr.mxu0 0.0
        %1067 = vmatpush1.msra.mxu0 %v992
        %1068 = vmatprep.subr.mxu0 0.0
        %1069 = vmatpush1.msra.mxu0 %v993
        %1070 = vmatprep.subr.mxu0 0.0
        %1071 = vmatpush1.msra.mxu0 0.0
        %1072 = vmatprep.subr.mxu0 0.0
        %1073 = vmatpush1.msra.mxu0 0.0
        %1074 = vmatprep.subr.mxu0 0.0
        %1075 = vmatpush1.msra.mxu0 0.0
        %1076 = vmatprep.subr.mxu0 0.0
        %1077 = vmatpush1.msra.mxu0 0.0
        %1078 = vmatprep.subr.mxu0 0.0
        %1079 = vmatpush1.msra.mxu0 0.0
        %1080 = vmatprep.subr.mxu0 0.0
        %1081 = vmatpush1.msra.mxu0 0.0
        %1082 = vmatprep.subr.mxu0 0.0
        %1083 = vmatpush1.msra.mxu0 0.0
        %1084 = vmatprep.subr.mxu0 0.0
        %1085 = vmatpush1.msra.mxu0 0.0
        %1086 = vmatprep.subr.mxu0 0.0
        %1087 = vmatpush1.msra.mxu0 0.0
        %1088 = vmatprep.subr.mxu0 0.0
        %1089 = vmatpush1.msra.mxu0 0.0
        %1090 = vmatprep.subr.mxu0 0.0
        %1091 = vmatpush1.msra.mxu0 0.0
        %1092 = vmatprep.subr.mxu0 0.0
        %1093 = vmatpush1.msra.mxu0 0.0
        %1094 = vmatprep.subr.mxu0 0.0
        %1095 = vmatpush1.msra.mxu0 0.0
        %1096 = vmatprep.subr.mxu0 0.0
        %1097 = vmatpush1.msra.mxu0 0.0
        %1098 = vmatprep.subr.mxu0 0.0
        %1099 = vmatpush1.msra.mxu0 0.0
        %1100 = vmatprep.subr.mxu0 0.0
        %1101 = vmatpush1.msra.mxu0 0.0
        %1102 = vmatprep.subr.mxu0 0.0
        %1103 = vmatpush1.msra.mxu0 0.0
        %1104 = vmatprep.subr.mxu0 0.0
        %1105 = vmatpush1.msra.mxu0 0.0
        %1106 = vmatprep.subr.mxu0 0.0
        %1107 = vmatpush1.msra.mxu0 0.0
        %1108 = vmatprep.subr.mxu0 0.0
        %1109 = vmatpush1.msra.mxu0 0.0
        %1110 = vmatprep.subr.mxu0 0.0
        %1111 = vmatpush1.msra.mxu0 0.0
        %1112 = vmatprep.subr.mxu0 0.0
        %1113 = vmatpush1.msra.mxu0 0.0
        %1114 = vmatprep.subr.mxu0 0.0
        %1115 = vmatpush1.msra.mxu0 0.0
        %1116 = vmatprep.subr.mxu0 0.0
        %1117 = vmatpush1.msra.mxu0 0.0
        %1118 = vmatprep.subr.mxu0 0.0
        %1119 = vmatpush1.msra.mxu0 0.0
        %1120 = vmatprep.subr.mxu0 0.0
        %1121 = vmatpush1.msra.mxu0 0.0
        %1122 = vmatprep.subr.mxu0 0.0
        %1123 = vmatpush1.msra.mxu0 0.0
        %1124 = vmatprep.subr.mxu0 0.0
        %1125 = vmatpush1.msra.mxu0 0.0
        %1126 = vmatprep.subr.mxu0 0.0
        %1127 = vmatpush1.msra.mxu0 0.0
        %1128 = vmatprep.subr.mxu0 0.0
        %1129 = vmatpush1.msra.mxu0 0.0
        %1130 = vmatprep.mubr.f32.mxu0 0.0
        %1131 = vmatmul.mubr.f32.gmra.mrb[0].mxu0 %v995
        %v1132 = vpop.f32.mrb[0].mxu0
        %v1133 = vadd.f32 0.0, %v1132
        %v1134 = vpop.f32.mrb[0].mxu0
        %1135 = vmatprep.mubr.f32.mxu0 0.0
        %1136 = vmatmul.mubr.f32.gmra.mrb[0].mxu0 %v998
        %v1137 = vpop.f32.mrb[0].mxu0
        %v1138 = vadd.f32 0.0, %v1137
        %v1139 = vpop.f32.mrb[0].mxu0
        %1140 = vmatprep.mubr.f32.mxu0 0.0
        %1141 = vmatmul.mubr.f32.gmra.mrb[0].mxu0 %v1001
        %v1142 = vpop.f32.mrb[0].mxu0
        %v1143 = vpop.f32.mrb[0].mxu0
        %1144 = vmatprep.mubr.f32.mxu0 0.0
        %1145 = vmatmul.mubr.f32.gmra.mrb[0].mxu0 %v1004
        %v1146 = vpop.f32.mrb[0].mxu0
        %v1147 = vadd.f32 0.0, %v1146
        %v1148 = vpop.f32.mrb[0].mxu0
        %1149 = vmatprep.mubr.f32.mxu0 0.0
        %1150 = vmatmul.mubr.f32.gmra.mrb[0].mxu0 %v1007
        %v1151 = vpop.f32.mrb[0].mxu0
        %v1152 = vadd.f32 0.0, %v1151
        %v1153 = vpop.f32.mrb[0].mxu0
        %1154 = vmatprep.mubr.f32.mxu0 0.0
        %1155 = vmatmul.mubr.f32.gmra.mrb[0].mxu0 %v1010
        %v1156 = vpop.f32.mrb[0].mxu0
        %v1157 = vpop.f32.mrb[0].mxu0
        %1158 = vmatprep.mubr.f32.mxu0 0.0
        %1159 = vmatmul.mubr.f32.gmra.mrb[0].mxu0 %v1013
        %v1160 = vpop.f32.mrb[0].mxu0
        %v1161 = vadd.f32 0.0, %v1160
        %v1162 = vpop.f32.mrb[0].mxu0
        %1163 = vmatprep.mubr.f32.mxu0 0.0
        %1164 = vmatmul.mubr.f32.gmra.mrb[0].mxu0 %v1016
        %v1165 = vpop.f32.mrb[0].mxu0
        %v1166 = vadd.f32 0.0, %v1165
        %v1167 = vpop.f32.mrb[0].mxu0
        %1168 = vmatprep.mubr.f32.mxu0 0.0
        %1169 = vmatmul.mubr.f32.gmra.mrb[0].mxu0 %v1019
        %v1170 = vpop.f32.mrb[0].mxu0
        %v1171 = vpop.f32.mrb[0].mxu0
        %1172 = vmatprep.mubr.f32.mxu0 0.0
        %1173 = vmatmul.mubr.f32.gmra.mrb[0].mxu0 %v1022
        %v1174 = vpop.f32.mrb[0].mxu0
        %v1175 = vadd.f32 0.0, %v1174
        %v1176 = vpop.f32.mrb[0].mxu0
        %1177 = vmatprep.mubr.f32.mxu0 0.0
        %1178 = vmatmul.mubr.f32.gmra.mrb[0].mxu0 %v1025
        %v1179 = vpop.f32.mrb[0].mxu0
        %v1180 = vadd.f32 0.0, %v1179
        %v1181 = vpop.f32.mrb[0].mxu0
        %1182 = vmatprep.mubr.f32.mxu0 0.0
        %1183 = vmatmul.mubr.f32.gmra.mrb[0].mxu0 %v1028
        %v1184 = vpop.f32.mrb[0].mxu0
        %v1185 = vpop.f32.mrb[0].mxu0
        %1186 = vmatprep.mubr.f32.mxu0 0.0
        %1187 = vmatmul.mubr.f32.gmra.mrb[0].mxu0 %v1031
        %v1188 = vpop.f32.mrb[0].mxu0
        %v1189 = vadd.f32 0.0, %v1188
        %v1190 = vpop.f32.mrb[0].mxu0
        %1191 = vmatprep.mubr.f32.mxu0 0.0
        %1192 = vmatmul.mubr.f32.gmra.mrb[0].mxu0 %v1034
        %v1193 = vpop.f32.mrb[0].mxu0
        %v1194 = vadd.f32 0.0, %v1193
        %v1195 = vpop.f32.mrb[0].mxu0
        %1196 = vmatprep.mubr.f32.mxu0 0.0
        %1197 = vmatmul.mubr.f32.gmra.mrb[0].mxu0 %v1037
        %v1198 = vpop.f32.mrb[0].mxu0
        %v1199 = vpop.f32.mrb[0].mxu0
        %1200 = vmatprep.mubr.f32.mxu0 0.0
        %1201 = vmatmul.mubr.f32.gmra.mrb[0].mxu0 %v1040
        %v1202 = vpop.f32.mrb[0].mxu0
        %v1203 = vadd.f32 0.0, %v1202
        %v1204 = vpop.f32.mrb[0].mxu0
        %1205 = vmatprep.mubr.f32.mxu0 0.0
        %1206 = vmatmul.mubr.f32.gmra.mrb[0].mxu0 %v1043
        %v1207 = vpop.f32.mrb[0].mxu0
        %v1208 = vadd.f32 0.0, %v1207
        %v1209 = vpop.f32.mrb[0].mxu0
        %1210 = vmatprep.mubr.f32.mxu0 0.0
        %1211 = vmatmul.mubr.f32.gmra.mrb[0].mxu0 %v1046
        %v1212 = vpop.f32.mrb[0].mxu0
        %v1213 = vpop.f32.mrb[0].mxu0
        %1214 = vmatprep.mubr.f32.mxu0 0.0
        %1215 = vmatmul.mubr.f32.gmra.mrb[0].mxu0 %v1049
        %v1216 = vpop.f32.mrb[0].mxu0
        %v1217 = vadd.f32 0.0, %v1216
        %v1218 = vpop.f32.mrb[0].mxu0
        %1219 = vmatprep.mubr.f32.mxu0 0.0
        %1220 = vmatmul.mubr.f32.gmra.mrb[0].mxu0 %v1052
        %v1221 = vpop.f32.mrb[0].mxu0
        %v1222 = vadd.f32 0.0, %v1221
        %v1223 = vpop.f32.mrb[0].mxu0
        %1224 = vmatprep.mubr.f32.mxu0 0.0
        %1225 = vmatmul.mubr.f32.gmra.mrb[0].mxu0 %v1055
        %v1226 = vpop.f32.mrb[0].mxu0
        %v1227 = vpop.f32.mrb[0].mxu0
        %1228 = vmatprep.mubr.f32.mxu0 0.0
        %1229 = vmatmul.mubr.f32.gmra.mrb[0].mxu0 %v1058
        %v1230 = vpop.f32.mrb[0].mxu0
        %v1231 = vadd.f32 0.0, %v1230
        %v1232 = vpop.f32.mrb[0].mxu0
        %1233 = vmatprep.mubr.f32.mxu0 0.0
        %1234 = vmatmul.mubr.f32.gmra.mrb[0].mxu0 %v1061
        %v1235 = vpop.f32.mrb[0].mxu0
        %v1236 = vadd.f32 0.0, %v1235
        %v1237 = vpop.f32.mrb[0].mxu0
        %1238 = vmatprep.mubr.f32.mxu0 0.0
        %1239 = vmatmul.mubr.f32.gmra.mrb[0].mxu0 %v1064
        %v1240 = vpop.f32.mrb[0].mxu0
        %v1241 = vpop.f32.mrb[0].mxu0
        %1242 = vdwg.mxu0
        %s1243 = scalar_lea.vmem [#allocation9], 16
        %v1244 = vld [vmem:[%s1243] sm:$0xff]
        %v1245 = vld [vmem:[%s1243 + $0x8] sm:$0xff]
        %1246 = vmatprep.subr.mxu0 0.0
        %1247 = vmatpush1.msra.mxu0 %v1244
        %1248 = vmatprep.subr.mxu0 0.0
        %1249 = vmatpush1.msra.mxu0 %v1245
        %1250 = vmatprep.subr.mxu0 0.0
        %1251 = vmatpush1.msra.mxu0 0.0
        %1252 = vmatprep.subr.mxu0 0.0
        %1253 = vmatpush1.msra.mxu0 0.0
        %1254 = vmatprep.subr.mxu0 0.0
        %1255 = vmatpush1.msra.mxu0 0.0
        %1256 = vmatprep.subr.mxu0 0.0
        %1257 = vmatpush1.msra.mxu0 0.0
        %1258 = vmatprep.subr.mxu0 0.0
        %1259 = vmatpush1.msra.mxu0 0.0
        %1260 = vmatprep.subr.mxu0 0.0
        %1261 = vmatpush1.msra.mxu0 0.0
        %1262 = vmatprep.subr.mxu0 0.0
        %1263 = vmatpush1.msra.mxu0 0.0
        %1264 = vmatprep.subr.mxu0 0.0
        %1265 = vmatpush1.msra.mxu0 0.0
        %1266 = vmatprep.subr.mxu0 0.0
        %1267 = vmatpush1.msra.mxu0 0.0
        %1268 = vmatprep.subr.mxu0 0.0
        %1269 = vmatpush1.msra.mxu0 0.0
        %1270 = vmatprep.subr.mxu0 0.0
        %1271 = vmatpush1.msra.mxu0 0.0
        %1272 = vmatprep.subr.mxu0 0.0
        %1273 = vmatpush1.msra.mxu0 0.0
        %1274 = vmatprep.subr.mxu0 0.0
        %1275 = vmatpush1.msra.mxu0 0.0
        %1276 = vmatprep.subr.mxu0 0.0
        %1277 = vmatpush1.msra.mxu0 0.0
        %1278 = vmatprep.subr.mxu0 0.0
        %1279 = vmatpush1.msra.mxu0 0.0
        %1280 = vmatprep.subr.mxu0 0.0
        %1281 = vmatpush1.msra.mxu0 0.0
        %1282 = vmatprep.subr.mxu0 0.0
        %1283 = vmatpush1.msra.mxu0 0.0
        %1284 = vmatprep.subr.mxu0 0.0
        %1285 = vmatpush1.msra.mxu0 0.0
        %1286 = vmatprep.subr.mxu0 0.0
        %1287 = vmatpush1.msra.mxu0 0.0
        %1288 = vmatprep.subr.mxu0 0.0
        %1289 = vmatpush1.msra.mxu0 0.0
        %1290 = vmatprep.subr.mxu0 0.0
        %1291 = vmatpush1.msra.mxu0 0.0
        %1292 = vmatprep.subr.mxu0 0.0
        %1293 = vmatpush1.msra.mxu0 0.0
        %1294 = vmatprep.subr.mxu0 0.0
        %1295 = vmatpush1.msra.mxu0 0.0
        %1296 = vmatprep.subr.mxu0 0.0
        %1297 = vmatpush1.msra.mxu0 0.0
        %1298 = vmatprep.subr.mxu0 0.0
        %1299 = vmatpush1.msra.mxu0 0.0
        %1300 = vmatprep.subr.mxu0 0.0
        %1301 = vmatpush1.msra.mxu0 0.0
        %1302 = vmatprep.subr.mxu0 0.0
        %1303 = vmatpush1.msra.mxu0 0.0
        %1304 = vmatprep.subr.mxu0 0.0
        %1305 = vmatpush1.msra.mxu0 0.0
        %1306 = vmatprep.subr.mxu0 0.0
        %1307 = vmatpush1.msra.mxu0 0.0
        %1308 = vmatprep.subr.mxu0 0.0
        %1309 = vmatpush1.msra.mxu0 0.0
        %1310 = vmatprep.mubr.f32.mxu0 0.0
        %1311 = vmatmul.mubr.f32.gmra.mrb[0].mxu0 %v995
        %v1312 = vpop.f32.mrb[0].mxu0
        %v1313 = vadd.f32 0.0, %v1312
        %v1314 = vpop.f32.mrb[0].mxu0
        %1315 = vmatprep.mubr.f32.mxu0 0.0
        %1316 = vmatmul.mubr.f32.gmra.mrb[0].mxu0 %v998
        %v1317 = vpop.f32.mrb[0].mxu0
        %v1318 = vadd.f32 0.0, %v1317
        %v1319 = vpop.f32.mrb[0].mxu0
        %1320 = vmatprep.mubr.f32.mxu0 0.0
        %1321 = vmatmul.mubr.f32.gmra.mrb[0].mxu0 %v1001
        %v1322 = vpop.f32.mrb[0].mxu0
        %v1323 = vadd.f32 0.0, %v1322
        %v1324 = vpop.f32.mrb[0].mxu0
        %1325 = vmatprep.mubr.f32.mxu0 0.0
        %1326 = vmatmul.mubr.f32.gmra.mrb[0].mxu0 %v1004
        %v1327 = vpop.f32.mrb[0].mxu0
        %v1328 = vadd.f32 0.0, %v1327
        %v1329 = vpop.f32.mrb[0].mxu0
        %1330 = vmatprep.mubr.f32.mxu0 0.0
        %1331 = vmatmul.mubr.f32.gmra.mrb[0].mxu0 %v1007
        %v1332 = vpop.f32.mrb[0].mxu0
        %v1333 = vadd.f32 0.0, %v1332
        %v1334 = vpop.f32.mrb[0].mxu0
        %1335 = vmatprep.mubr.f32.mxu0 0.0
        %1336 = vmatmul.mubr.f32.gmra.mrb[0].mxu0 %v1010
        %v1337 = vpop.f32.mrb[0].mxu0
        %v1338 = vadd.f32 0.0, %v1337
        %v1339 = vpop.f32.mrb[0].mxu0
        %1340 = vmatprep.mubr.f32.mxu0 0.0
        %1341 = vmatmul.mubr.f32.gmra.mrb[0].mxu0 %v1013
        %v1342 = vpop.f32.mrb[0].mxu0
        %v1343 = vadd.f32 0.0, %v1342
        %v1344 = vpop.f32.mrb[0].mxu0
        %1345 = vmatprep.mubr.f32.mxu0 0.0
        %1346 = vmatmul.mubr.f32.gmra.mrb[0].mxu0 %v1016
        %v1347 = vpop.f32.mrb[0].mxu0
        %v1348 = vadd.f32 0.0, %v1347
        %v1349 = vpop.f32.mrb[0].mxu0
        %1350 = vmatprep.mubr.f32.mxu0 0.0
        %1351 = vmatmul.mubr.f32.gmra.mrb[0].mxu0 %v1019
        %v1352 = vpop.f32.mrb[0].mxu0
        %v1353 = vadd.f32 0.0, %v1352
        %v1354 = vpop.f32.mrb[0].mxu0
        %1355 = vmatprep.mubr.f32.mxu0 0.0
        %1356 = vmatmul.mubr.f32.gmra.mrb[0].mxu0 %v1022
        %v1357 = vpop.f32.mrb[0].mxu0
        %v1358 = vadd.f32 0.0, %v1357
        %v1359 = vpop.f32.mrb[0].mxu0
        %1360 = vmatprep.mubr.f32.mxu0 0.0
        %1361 = vmatmul.mubr.f32.gmra.mrb[0].mxu0 %v1025
        %v1362 = vpop.f32.mrb[0].mxu0
        %v1363 = vadd.f32 0.0, %v1362
        %v1364 = vpop.f32.mrb[0].mxu0
        %1365 = vmatprep.mubr.f32.mxu0 0.0
        %1366 = vmatmul.mubr.f32.gmra.mrb[0].mxu0 %v1028
        %v1367 = vpop.f32.mrb[0].mxu0
        %v1368 = vadd.f32 0.0, %v1367
        %v1369 = vpop.f32.mrb[0].mxu0
        %1370 = vmatprep.mubr.f32.mxu0 0.0
        %1371 = vmatmul.mubr.f32.gmra.mrb[0].mxu0 %v1031
        %v1372 = vpop.f32.mrb[0].mxu0
        %v1373 = vadd.f32 0.0, %v1372
        %v1374 = vpop.f32.mrb[0].mxu0
        %1375 = vmatprep.mubr.f32.mxu0 0.0
        %1376 = vmatmul.mubr.f32.gmra.mrb[0].mxu0 %v1034
        %v1377 = vpop.f32.mrb[0].mxu0
        %v1378 = vadd.f32 0.0, %v1377
        %v1379 = vpop.f32.mrb[0].mxu0
        %1380 = vmatprep.mubr.f32.mxu0 0.0
        %1381 = vmatmul.mubr.f32.gmra.mrb[0].mxu0 %v1037
        %v1382 = vpop.f32.mrb[0].mxu0
        %v1383 = vadd.f32 0.0, %v1382
        %v1384 = vpop.f32.mrb[0].mxu0
        %1385 = vmatprep.mubr.f32.mxu0 0.0
        %1386 = vmatmul.mubr.f32.gmra.mrb[0].mxu0 %v1040
        %v1387 = vpop.f32.mrb[0].mxu0
        %v1388 = vadd.f32 0.0, %v1387
        %v1389 = vpop.f32.mrb[0].mxu0
        %1390 = vmatprep.mubr.f32.mxu0 0.0
        %1391 = vmatmul.mubr.f32.gmra.mrb[0].mxu0 %v1043
        %v1392 = vpop.f32.mrb[0].mxu0
        %v1393 = vadd.f32 0.0, %v1392
        %v1394 = vpop.f32.mrb[0].mxu0
        %1395 = vmatprep.mubr.f32.mxu0 0.0
        %1396 = vmatmul.mubr.f32.gmra.mrb[0].mxu0 %v1046
        %v1397 = vpop.f32.mrb[0].mxu0
        %v1398 = vadd.f32 0.0, %v1397
        %v1399 = vpop.f32.mrb[0].mxu0
        %1400 = vmatprep.mubr.f32.mxu0 0.0
        %1401 = vmatmul.mubr.f32.gmra.mrb[0].mxu0 %v1049
        %v1402 = vpop.f32.mrb[0].mxu0
        %v1403 = vadd.f32 0.0, %v1402
        %v1404 = vpop.f32.mrb[0].mxu0
        %1405 = vmatprep.mubr.f32.mxu0 0.0
        %1406 = vmatmul.mubr.f32.gmra.mrb[0].mxu0 %v1052
        %v1407 = vpop.f32.mrb[0].mxu0
        %v1408 = vadd.f32 0.0, %v1407
        %v1409 = vpop.f32.mrb[0].mxu0
        %1410 = vmatprep.mubr.f32.mxu0 0.0
        %1411 = vmatmul.mubr.f32.gmra.mrb[0].mxu0 %v1055
        %v1412 = vpop.f32.mrb[0].mxu0
        %v1413 = vadd.f32 0.0, %v1412
        %v1414 = vpop.f32.mrb[0].mxu0
        %1415 = vmatprep.mubr.f32.mxu0 0.0
        %1416 = vmatmul.mubr.f32.gmra.mrb[0].mxu0 %v1058
        %v1417 = vpop.f32.mrb[0].mxu0
        %v1418 = vadd.f32 0.0, %v1417
        %v1419 = vpop.f32.mrb[0].mxu0
        %1420 = vmatprep.mubr.f32.mxu0 0.0
        %1421 = vmatmul.mubr.f32.gmra.mrb[0].mxu0 %v1061
        %v1422 = vpop.f32.mrb[0].mxu0
        %v1423 = vadd.f32 0.0, %v1422
        %v1424 = vpop.f32.mrb[0].mxu0
        %1425 = vmatprep.mubr.f32.mxu0 0.0
        %1426 = vmatmul.mubr.f32.gmra.mrb[0].mxu0 %v1064
        %v1427 = vpop.f32.mrb[0].mxu0
        %v1428 = vadd.f32 0.0, %v1427
        %v1429 = vpop.f32.mrb[0].mxu0
        %1430 = vdwg.mxu0
        %vm1455 = vcmask 1046528
        %v1456 = vrot.slane %v1313, 1
        %v1457 = vrot.slane %v1318, 1
        %v1458 = vsel %vm1455, %v1456, %v1457
        %v1459 = vrot.slane %v1323, 1
        %v1460 = vsel %vm1455, %v1457, %v1459
        %v1461 = vrot.slane %v1328, 1
        %v1462 = vrot.slane %v1333, 1
        %v1463 = vsel %vm1455, %v1461, %v1462
        %v1464 = vrot.slane %v1338, 1
        %v1465 = vsel %vm1455, %v1462, %v1464
        %v1466 = vrot.slane %v1343, 1
        %v1467 = vrot.slane %v1348, 1
        %v1468 = vsel %vm1455, %v1466, %v1467
        %v1469 = vrot.slane %v1353, 1
        %v1470 = vsel %vm1455, %v1467, %v1469
        %v1471 = vrot.slane %v1358, 1
        %v1472 = vrot.slane %v1363, 1
        %v1473 = vsel %vm1455, %v1471, %v1472
        %v1474 = vrot.slane %v1368, 1
        %v1475 = vsel %vm1455, %v1472, %v1474
        %v1476 = vrot.slane %v1373, 1
        %v1477 = vrot.slane %v1378, 1
        %v1478 = vsel %vm1455, %v1476, %v1477
        %v1479 = vrot.slane %v1383, 1
        %v1480 = vsel %vm1455, %v1477, %v1479
        %v1481 = vrot.slane %v1388, 1
        %v1482 = vrot.slane %v1393, 1
        %v1483 = vsel %vm1455, %v1481, %v1482
        %v1484 = vrot.slane %v1398, 1
        %v1485 = vsel %vm1455, %v1482, %v1484
        %v1486 = vrot.slane %v1403, 1
        %v1487 = vrot.slane %v1408, 1
        %v1488 = vsel %vm1455, %v1486, %v1487
        %v1489 = vrot.slane %v1413, 1
        %v1490 = vsel %vm1455, %v1487, %v1489
        %v1491 = vrot.slane %v1418, 1
        %v1492 = vrot.slane %v1423, 1
        %v1493 = vsel %vm1455, %v1491, %v1492
        %v1494 = vrot.slane %v1428, 1
        %v1495 = vsel %vm1455, %v1492, %v1494
        %v1512 = vadd.f32 %v1133, %v1458
        %v1513 = vadd.f32 %v1138, %v1460
        %v1514 = vadd.f32 %v1147, %v1463
        %v1515 = vadd.f32 %v1152, %v1465
        %v1516 = vadd.f32 %v1161, %v1468
        %v1517 = vadd.f32 %v1166, %v1470
        %v1518 = vadd.f32 %v1175, %v1473
        %v1519 = vadd.f32 %v1180, %v1475
        %v1520 = vadd.f32 %v1189, %v1478
        %v1521 = vadd.f32 %v1194, %v1480
        %v1522 = vadd.f32 %v1203, %v1483
        %v1523 = vadd.f32 %v1208, %v1485
        %v1524 = vadd.f32 %v1217, %v1488
        %v1525 = vadd.f32 %v1222, %v1490
        %v1526 = vadd.f32 %v1231, %v1493
        %v1527 = vadd.f32 %v1236, %v1495
        %s1528 = scalar_lea.vmem [#allocation9], 32
        %v1529 = vld [vmem:[%s1528] sm:$0xff]
        %v1530 = vld [vmem:[%s1528 + $0x8] sm:$0xff]
        %1531 = vmatprep.subr.mxu0 0.0
        %1532 = vmatpush1.msra.mxu0 %v1529
        %1533 = vmatprep.subr.mxu0 0.0
        %1534 = vmatpush1.msra.mxu0 %v1530
        %1535 = vmatprep.subr.mxu0 0.0
        %1536 = vmatpush1.msra.mxu0 0.0
        %1537 = vmatprep.subr.mxu0 0.0
        %1538 = vmatpush1.msra.mxu0 0.0
        %1539 = vmatprep.subr.mxu0 0.0
        %1540 = vmatpush1.msra.mxu0 0.0
        %1541 = vmatprep.subr.mxu0 0.0
        %1542 = vmatpush1.msra.mxu0 0.0
        %1543 = vmatprep.subr.mxu0 0.0
        %1544 = vmatpush1.msra.mxu0 0.0
        %1545 = vmatprep.subr.mxu0 0.0
        %1546 = vmatpush1.msra.mxu0 0.0
        %1547 = vmatprep.subr.mxu0 0.0
        %1548 = vmatpush1.msra.mxu0 0.0
        %1549 = vmatprep.subr.mxu0 0.0
        %1550 = vmatpush1.msra.mxu0 0.0
        %1551 = vmatprep.subr.mxu0 0.0
        %1552 = vmatpush1.msra.mxu0 0.0
        %1553 = vmatprep.subr.mxu0 0.0
        %1554 = vmatpush1.msra.mxu0 0.0
        %1555 = vmatprep.subr.mxu0 0.0
        %1556 = vmatpush1.msra.mxu0 0.0
        %1557 = vmatprep.subr.mxu0 0.0
        %1558 = vmatpush1.msra.mxu0 0.0
        %1559 = vmatprep.subr.mxu0 0.0
        %1560 = vmatpush1.msra.mxu0 0.0
        %1561 = vmatprep.subr.mxu0 0.0
        %1562 = vmatpush1.msra.mxu0 0.0
        %1563 = vmatprep.subr.mxu0 0.0
        %1564 = vmatpush1.msra.mxu0 0.0
        %1565 = vmatprep.subr.mxu0 0.0
        %1566 = vmatpush1.msra.mxu0 0.0
        %1567 = vmatprep.subr.mxu0 0.0
        %1568 = vmatpush1.msra.mxu0 0.0
        %1569 = vmatprep.subr.mxu0 0.0
        %1570 = vmatpush1.msra.mxu0 0.0
        %1571 = vmatprep.subr.mxu0 0.0
        %1572 = vmatpush1.msra.mxu0 0.0
        %1573 = vmatprep.subr.mxu0 0.0
        %1574 = vmatpush1.msra.mxu0 0.0
        %1575 = vmatprep.subr.mxu0 0.0
        %1576 = vmatpush1.msra.mxu0 0.0
        %1577 = vmatprep.subr.mxu0 0.0
        %1578 = vmatpush1.msra.mxu0 0.0
        %1579 = vmatprep.subr.mxu0 0.0
        %1580 = vmatpush1.msra.mxu0 0.0
        %1581 = vmatprep.subr.mxu0 0.0
        %1582 = vmatpush1.msra.mxu0 0.0
        %1583 = vmatprep.subr.mxu0 0.0
        %1584 = vmatpush1.msra.mxu0 0.0
        %1585 = vmatprep.subr.mxu0 0.0
        %1586 = vmatpush1.msra.mxu0 0.0
        %1587 = vmatprep.subr.mxu0 0.0
        %1588 = vmatpush1.msra.mxu0 0.0
        %1589 = vmatprep.subr.mxu0 0.0
        %1590 = vmatpush1.msra.mxu0 0.0
        %1591 = vmatprep.subr.mxu0 0.0
        %1592 = vmatpush1.msra.mxu0 0.0
        %1593 = vmatprep.subr.mxu0 0.0
        %1594 = vmatpush1.msra.mxu0 0.0
        %1595 = vmatprep.mubr.f32.mxu0 0.0
        %1596 = vmatmul.mubr.f32.gmra.mrb[0].mxu0 %v995
        %v1597 = vpop.f32.mrb[0].mxu0
        %v1598 = vadd.f32 0.0, %v1597
        %v1599 = vpop.f32.mrb[0].mxu0
        %1600 = vmatprep.mubr.f32.mxu0 0.0
        %1601 = vmatmul.mubr.f32.gmra.mrb[0].mxu0 %v998
        %v1602 = vpop.f32.mrb[0].mxu0
        %v1603 = vadd.f32 0.0, %v1602
        %v1604 = vpop.f32.mrb[0].mxu0
        %1605 = vmatprep.mubr.f32.mxu0 0.0
        %1606 = vmatmul.mubr.f32.gmra.mrb[0].mxu0 %v1001
        %v1607 = vpop.f32.mrb[0].mxu0
        %v1608 = vadd.f32 0.0, %v1607
        %v1609 = vpop.f32.mrb[0].mxu0
        %1610 = vmatprep.mubr.f32.mxu0 0.0
        %1611 = vmatmul.mubr.f32.gmra.mrb[0].mxu0 %v1004
        %v1612 = vpop.f32.mrb[0].mxu0
        %v1613 = vadd.f32 0.0, %v1612
        %v1614 = vpop.f32.mrb[0].mxu0
        %1615 = vmatprep.mubr.f32.mxu0 0.0
        %1616 = vmatmul.mubr.f32.gmra.mrb[0].mxu0 %v1007
        %v1617 = vpop.f32.mrb[0].mxu0
        %v1618 = vadd.f32 0.0, %v1617
        %v1619 = vpop.f32.mrb[0].mxu0
        %1620 = vmatprep.mubr.f32.mxu0 0.0
        %1621 = vmatmul.mubr.f32.gmra.mrb[0].mxu0 %v1010
        %v1622 = vpop.f32.mrb[0].mxu0
        %v1623 = vadd.f32 0.0, %v1622
        %v1624 = vpop.f32.mrb[0].mxu0
        %1625 = vmatprep.mubr.f32.mxu0 0.0
        %1626 = vmatmul.mubr.f32.gmra.mrb[0].mxu0 %v1013
        %v1627 = vpop.f32.mrb[0].mxu0
        %v1628 = vadd.f32 0.0, %v1627
        %v1629 = vpop.f32.mrb[0].mxu0
        %1630 = vmatprep.mubr.f32.mxu0 0.0
        %1631 = vmatmul.mubr.f32.gmra.mrb[0].mxu0 %v1016
        %v1632 = vpop.f32.mrb[0].mxu0
        %v1633 = vadd.f32 0.0, %v1632
        %v1634 = vpop.f32.mrb[0].mxu0
        %1635 = vmatprep.mubr.f32.mxu0 0.0
        %1636 = vmatmul.mubr.f32.gmra.mrb[0].mxu0 %v1019
        %v1637 = vpop.f32.mrb[0].mxu0
        %v1638 = vadd.f32 0.0, %v1637
        %v1639 = vpop.f32.mrb[0].mxu0
        %1640 = vmatprep.mubr.f32.mxu0 0.0
        %1641 = vmatmul.mubr.f32.gmra.mrb[0].mxu0 %v1022
        %v1642 = vpop.f32.mrb[0].mxu0
        %v1643 = vadd.f32 0.0, %v1642
        %v1644 = vpop.f32.mrb[0].mxu0
        %1645 = vmatprep.mubr.f32.mxu0 0.0
        %1646 = vmatmul.mubr.f32.gmra.mrb[0].mxu0 %v1025
        %v1647 = vpop.f32.mrb[0].mxu0
        %v1648 = vadd.f32 0.0, %v1647
        %v1649 = vpop.f32.mrb[0].mxu0
        %1650 = vmatprep.mubr.f32.mxu0 0.0
        %1651 = vmatmul.mubr.f32.gmra.mrb[0].mxu0 %v1028
        %v1652 = vpop.f32.mrb[0].mxu0
        %v1653 = vadd.f32 0.0, %v1652
        %v1654 = vpop.f32.mrb[0].mxu0
        %1655 = vmatprep.mubr.f32.mxu0 0.0
        %1656 = vmatmul.mubr.f32.gmra.mrb[0].mxu0 %v1031
        %v1657 = vpop.f32.mrb[0].mxu0
        %v1658 = vadd.f32 0.0, %v1657
        %v1659 = vpop.f32.mrb[0].mxu0
        %1660 = vmatprep.mubr.f32.mxu0 0.0
        %1661 = vmatmul.mubr.f32.gmra.mrb[0].mxu0 %v1034
        %v1662 = vpop.f32.mrb[0].mxu0
        %v1663 = vadd.f32 0.0, %v1662
        %v1664 = vpop.f32.mrb[0].mxu0
        %1665 = vmatprep.mubr.f32.mxu0 0.0
        %1666 = vmatmul.mubr.f32.gmra.mrb[0].mxu0 %v1037
        %v1667 = vpop.f32.mrb[0].mxu0
        %v1668 = vadd.f32 0.0, %v1667
        %v1669 = vpop.f32.mrb[0].mxu0
        %1670 = vmatprep.mubr.f32.mxu0 0.0
        %1671 = vmatmul.mubr.f32.gmra.mrb[0].mxu0 %v1040
        %v1672 = vpop.f32.mrb[0].mxu0
        %v1673 = vadd.f32 0.0, %v1672
        %v1674 = vpop.f32.mrb[0].mxu0
        %1675 = vmatprep.mubr.f32.mxu0 0.0
        %1676 = vmatmul.mubr.f32.gmra.mrb[0].mxu0 %v1043
        %v1677 = vpop.f32.mrb[0].mxu0
        %v1678 = vadd.f32 0.0, %v1677
        %v1679 = vpop.f32.mrb[0].mxu0
        %1680 = vmatprep.mubr.f32.mxu0 0.0
        %1681 = vmatmul.mubr.f32.gmra.mrb[0].mxu0 %v1046
        %v1682 = vpop.f32.mrb[0].mxu0
        %v1683 = vadd.f32 0.0, %v1682
        %v1684 = vpop.f32.mrb[0].mxu0
        %1685 = vmatprep.mubr.f32.mxu0 0.0
        %1686 = vmatmul.mubr.f32.gmra.mrb[0].mxu0 %v1049
        %v1687 = vpop.f32.mrb[0].mxu0
        %v1688 = vadd.f32 0.0, %v1687
        %v1689 = vpop.f32.mrb[0].mxu0
        %1690 = vmatprep.mubr.f32.mxu0 0.0
        %1691 = vmatmul.mubr.f32.gmra.mrb[0].mxu0 %v1052
        %v1692 = vpop.f32.mrb[0].mxu0
        %v1693 = vadd.f32 0.0, %v1692
        %v1694 = vpop.f32.mrb[0].mxu0
        %1695 = vmatprep.mubr.f32.mxu0 0.0
        %1696 = vmatmul.mubr.f32.gmra.mrb[0].mxu0 %v1055
        %v1697 = vpop.f32.mrb[0].mxu0
        %v1698 = vadd.f32 0.0, %v1697
        %v1699 = vpop.f32.mrb[0].mxu0
        %1700 = vmatprep.mubr.f32.mxu0 0.0
        %1701 = vmatmul.mubr.f32.gmra.mrb[0].mxu0 %v1058
        %v1702 = vpop.f32.mrb[0].mxu0
        %v1703 = vadd.f32 0.0, %v1702
        %v1704 = vpop.f32.mrb[0].mxu0
        %1705 = vmatprep.mubr.f32.mxu0 0.0
        %1706 = vmatmul.mubr.f32.gmra.mrb[0].mxu0 %v1061
        %v1707 = vpop.f32.mrb[0].mxu0
        %v1708 = vadd.f32 0.0, %v1707
        %v1709 = vpop.f32.mrb[0].mxu0
        %1710 = vmatprep.mubr.f32.mxu0 0.0
        %1711 = vmatmul.mubr.f32.gmra.mrb[0].mxu0 %v1064
        %v1712 = vpop.f32.mrb[0].mxu0
        %v1713 = vadd.f32 0.0, %v1712
        %v1714 = vpop.f32.mrb[0].mxu0
        %1715 = vdwg.mxu0
        %vm1740 = vcmask 1045504
        %v1741 = vrot.slane %v1598, 2
        %v1742 = vrot.slane %v1603, 2
        %v1743 = vsel %vm1740, %v1741, %v1742
        %v1744 = vrot.slane %v1608, 2
        %v1745 = vsel %vm1740, %v1742, %v1744
        %v1746 = vrot.slane %v1613, 2
        %v1747 = vrot.slane %v1618, 2
        %v1748 = vsel %vm1740, %v1746, %v1747
        %v1749 = vrot.slane %v1623, 2
        %v1750 = vsel %vm1740, %v1747, %v1749
        %v1751 = vrot.slane %v1628, 2
        %v1752 = vrot.slane %v1633, 2
        %v1753 = vsel %vm1740, %v1751, %v1752
        %v1754 = vrot.slane %v1638, 2
        %v1755 = vsel %vm1740, %v1752, %v1754
        %v1756 = vrot.slane %v1643, 2
        %v1757 = vrot.slane %v1648, 2
        %v1758 = vsel %vm1740, %v1756, %v1757
        %v1759 = vrot.slane %v1653, 2
        %v1760 = vsel %vm1740, %v1757, %v1759
        %v1761 = vrot.slane %v1658, 2
        %v1762 = vrot.slane %v1663, 2
        %v1763 = vsel %vm1740, %v1761, %v1762
        %v1764 = vrot.slane %v1668, 2
        %v1765 = vsel %vm1740, %v1762, %v1764
        %v1766 = vrot.slane %v1673, 2
        %v1767 = vrot.slane %v1678, 2
        %v1768 = vsel %vm1740, %v1766, %v1767
        %v1769 = vrot.slane %v1683, 2
        %v1770 = vsel %vm1740, %v1767, %v1769
        %v1771 = vrot.slane %v1688, 2
        %v1772 = vrot.slane %v1693, 2
        %v1773 = vsel %vm1740, %v1771, %v1772
        %v1774 = vrot.slane %v1698, 2
        %v1775 = vsel %vm1740, %v1772, %v1774
        %v1776 = vrot.slane %v1703, 2
        %v1777 = vrot.slane %v1708, 2
        %v1778 = vsel %vm1740, %v1776, %v1777
        %v1779 = vrot.slane %v1713, 2
        %v1780 = vsel %vm1740, %v1777, %v1779
        %v1797 = vadd.f32 %v1512, %v1743
        %v1798 = vadd.f32 %v1513, %v1745
        %v1799 = vadd.f32 %v1514, %v1748
        %v1800 = vadd.f32 %v1515, %v1750
        %v1801 = vadd.f32 %v1516, %v1753
        %v1802 = vadd.f32 %v1517, %v1755
        %v1803 = vadd.f32 %v1518, %v1758
        %v1804 = vadd.f32 %v1519, %v1760
        %v1805 = vadd.f32 %v1520, %v1763
        %v1806 = vadd.f32 %v1521, %v1765
        %v1807 = vadd.f32 %v1522, %v1768
        %v1808 = vadd.f32 %v1523, %v1770
        %v1809 = vadd.f32 %v1524, %v1773
        %v1810 = vadd.f32 %v1525, %v1775
        %v1811 = vadd.f32 %v1526, %v1778
        %v1812 = vadd.f32 %v1527, %v1780
        %v1813 = vld [vmem:[%s741] sm:$0xff]
        %v1814 = vld [vmem:[%s741 + $0x8] sm:$0xff]
        %v1815 = vld [vmem:[%s741 + $0x10] sm:$0xff]
        %v1816 = vld [vmem:[%s741 + $0x18] sm:$0xff]
        %v1817 = vld [vmem:[%s741 + $0x20] sm:$0xff]
        %v1818 = vld [vmem:[%s741 + $0x28] sm:$0xff]
        %v1819 = vld [vmem:[%s741 + $0x30] sm:$0xff]
        %v1820 = vld [vmem:[%s741 + $0x38] sm:$0xff]
        %v1821 = vld [vmem:[%s741 + $0x40] sm:$0xff]
        %v1822 = vld [vmem:[%s741 + $0x48] sm:$0xff]
        %v1823 = vld [vmem:[%s741 + $0x50] sm:$0xff]
        %v1824 = vld [vmem:[%s741 + $0x58] sm:$0xff]
        %v1825 = vld [vmem:[%s741 + $0x60] sm:$0xff]
        %v1826 = vld [vmem:[%s741 + $0x68] sm:$0xff]
        %v1827 = vld [vmem:[%s741 + $0x70] sm:$0xff]
        %v1828 = vld [vmem:[%s741 + $0x78] sm:$0xff]
        %v1829 = vld [vmem:[%s741 + $0x80] sm:$0xff]
        %v1830 = vld [vmem:[%s741 + $0x88] sm:$0xff]
        %v1831 = vld [vmem:[%s741 + $0x90] sm:$0xff]
        %v1832 = vld [vmem:[%s741 + $0x98] sm:$0xff]
        %v1833 = vld [vmem:[%s741 + $0xa0] sm:$0xff]
        %v1834 = vld [vmem:[%s741 + $0xa8] sm:$0xff]
        %v1835 = vld [vmem:[%s741 + $0xb0] sm:$0xff]
        %v1836 = vld [vmem:[%s741 + $0xb8] sm:$0xff]
        %s1837 = scalar_lea.vmem [#allocation9], 48
        %v1838 = vld [vmem:[%s1837] sm:$0xff]
        %v1839 = vld [vmem:[%s1837 + $0x8] sm:$0xff]
        %v1841 = vsel %vm742, %v1813, 0
        %v1844 = vsel %vm742, %v1814, 0
        %v1847 = vsel %vm742, %v1815, 0
        %v1850 = vsel %vm742, %v1816, 0
        %v1853 = vsel %vm742, %v1817, 0
        %v1856 = vsel %vm742, %v1818, 0
        %v1859 = vsel %vm742, %v1819, 0
        %v1862 = vsel %vm742, %v1820, 0
        %v1865 = vsel %vm742, %v1821, 0
        %v1868 = vsel %vm742, %v1822, 0
        %v1871 = vsel %vm742, %v1823, 0
        %v1874 = vsel %vm742, %v1824, 0
        %v1877 = vsel %vm742, %v1825, 0
        %v1880 = vsel %vm742, %v1826, 0
        %v1883 = vsel %vm742, %v1827, 0
        %v1886 = vsel %vm742, %v1828, 0
        %v1889 = vsel %vm742, %v1829, 0
        %v1892 = vsel %vm742, %v1830, 0
        %v1895 = vsel %vm742, %v1831, 0
        %v1898 = vsel %vm742, %v1832, 0
        %v1901 = vsel %vm742, %v1833, 0
        %v1904 = vsel %vm742, %v1834, 0
        %v1907 = vsel %vm742, %v1835, 0
        %v1910 = vsel %vm742, %v1836, 0
        %1912 = vmatprep.subr.mxu0 0.0
        %1913 = vmatpush1.msra.mxu0 %v1838
        %1914 = vmatprep.subr.mxu0 0.0
        %1915 = vmatpush1.msra.mxu0 %v1839
        %1916 = vmatprep.subr.mxu0 0.0
        %1917 = vmatpush1.msra.mxu0 0.0
        %1918 = vmatprep.subr.mxu0 0.0
        %1919 = vmatpush1.msra.mxu0 0.0
        %1920 = vmatprep.subr.mxu0 0.0
        %1921 = vmatpush1.msra.mxu0 0.0
        %1922 = vmatprep.subr.mxu0 0.0
        %1923 = vmatpush1.msra.mxu0 0.0
        %1924 = vmatprep.subr.mxu0 0.0
        %1925 = vmatpush1.msra.mxu0 0.0
        %1926 = vmatprep.subr.mxu0 0.0
        %1927 = vmatpush1.msra.mxu0 0.0
        %1928 = vmatprep.subr.mxu0 0.0
        %1929 = vmatpush1.msra.mxu0 0.0
        %1930 = vmatprep.subr.mxu0 0.0
        %1931 = vmatpush1.msra.mxu0 0.0
        %1932 = vmatprep.subr.mxu0 0.0
        %1933 = vmatpush1.msra.mxu0 0.0
        %1934 = vmatprep.subr.mxu0 0.0
        %1935 = vmatpush1.msra.mxu0 0.0
        %1936 = vmatprep.subr.mxu0 0.0
        %1937 = vmatpush1.msra.mxu0 0.0
        %1938 = vmatprep.subr.mxu0 0.0
        %1939 = vmatpush1.msra.mxu0 0.0
        %1940 = vmatprep.subr.mxu0 0.0
        %1941 = vmatpush1.msra.mxu0 0.0
        %1942 = vmatprep.subr.mxu0 0.0
        %1943 = vmatpush1.msra.mxu0 0.0
        %1944 = vmatprep.subr.mxu0 0.0
        %1945 = vmatpush1.msra.mxu0 0.0
        %1946 = vmatprep.subr.mxu0 0.0
        %1947 = vmatpush1.msra.mxu0 0.0
        %1948 = vmatprep.subr.mxu0 0.0
        %1949 = vmatpush1.msra.mxu0 0.0
        %1950 = vmatprep.subr.mxu0 0.0
        %1951 = vmatpush1.msra.mxu0 0.0
        %1952 = vmatprep.subr.mxu0 0.0
        %1953 = vmatpush1.msra.mxu0 0.0
        %1954 = vmatprep.subr.mxu0 0.0
        %1955 = vmatpush1.msra.mxu0 0.0
        %1956 = vmatprep.subr.mxu0 0.0
        %1957 = vmatpush1.msra.mxu0 0.0
        %1958 = vmatprep.subr.mxu0 0.0
        %1959 = vmatpush1.msra.mxu0 0.0
        %1960 = vmatprep.subr.mxu0 0.0
        %1961 = vmatpush1.msra.mxu0 0.0
        %1962 = vmatprep.subr.mxu0 0.0
        %1963 = vmatpush1.msra.mxu0 0.0
        %1964 = vmatprep.subr.mxu0 0.0
        %1965 = vmatpush1.msra.mxu0 0.0
        %1966 = vmatprep.subr.mxu0 0.0
        %1967 = vmatpush1.msra.mxu0 0.0
        %1968 = vmatprep.subr.mxu0 0.0
        %1969 = vmatpush1.msra.mxu0 0.0
        %1970 = vmatprep.subr.mxu0 0.0
        %1971 = vmatpush1.msra.mxu0 0.0
        %1972 = vmatprep.subr.mxu0 0.0
        %1973 = vmatpush1.msra.mxu0 0.0
        %1974 = vmatprep.subr.mxu0 0.0
        %1975 = vmatpush1.msra.mxu0 0.0
        %1976 = vmatprep.mubr.f32.mxu0 0.0
        %1977 = vmatmul.mubr.f32.gmra.mrb[0].mxu0 %v1841
        %v1978 = vpop.f32.mrb[0].mxu0
        %v1979 = vadd.f32 0.0, %v1978
        %v1980 = vpop.f32.mrb[0].mxu0
        %1981 = vmatprep.mubr.f32.mxu0 0.0
        %1982 = vmatmul.mubr.f32.gmra.mrb[0].mxu0 %v1844
        %v1983 = vpop.f32.mrb[0].mxu0
        %v1984 = vadd.f32 0.0, %v1983
        %v1985 = vpop.f32.mrb[0].mxu0
        %1986 = vmatprep.mubr.f32.mxu0 0.0
        %1987 = vmatmul.mubr.f32.gmra.mrb[0].mxu0 %v1847
        %v1988 = vpop.f32.mrb[0].mxu0
        %v1989 = vpop.f32.mrb[0].mxu0
        %1990 = vmatprep.mubr.f32.mxu0 0.0
        %1991 = vmatmul.mubr.f32.gmra.mrb[0].mxu0 %v1850
        %v1992 = vpop.f32.mrb[0].mxu0
        %v1993 = vadd.f32 0.0, %v1992
        %v1994 = vpop.f32.mrb[0].mxu0
        %1995 = vmatprep.mubr.f32.mxu0 0.0
        %1996 = vmatmul.mubr.f32.gmra.mrb[0].mxu0 %v1853
        %v1997 = vpop.f32.mrb[0].mxu0
        %v1998 = vadd.f32 0.0, %v1997
        %v1999 = vpop.f32.mrb[0].mxu0
        %2000 = vmatprep.mubr.f32.mxu0 0.0
        %2001 = vmatmul.mubr.f32.gmra.mrb[0].mxu0 %v1856
        %v2002 = vpop.f32.mrb[0].mxu0
        %v2003 = vpop.f32.mrb[0].mxu0
        %2004 = vmatprep.mubr.f32.mxu0 0.0
        %2005 = vmatmul.mubr.f32.gmra.mrb[0].mxu0 %v1859
        %v2006 = vpop.f32.mrb[0].mxu0
        %v2007 = vadd.f32 0.0, %v2006
        %v2008 = vpop.f32.mrb[0].mxu0
        %2009 = vmatprep.mubr.f32.mxu0 0.0
        %2010 = vmatmul.mubr.f32.gmra.mrb[0].mxu0 %v1862
        %v2011 = vpop.f32.mrb[0].mxu0
        %v2012 = vadd.f32 0.0, %v2011
        %v2013 = vpop.f32.mrb[0].mxu0
        %2014 = vmatprep.mubr.f32.mxu0 0.0
        %2015 = vmatmul.mubr.f32.gmra.mrb[0].mxu0 %v1865
        %v2016 = vpop.f32.mrb[0].mxu0
        %v2017 = vpop.f32.mrb[0].mxu0
        %2018 = vmatprep.mubr.f32.mxu0 0.0
        %2019 = vmatmul.mubr.f32.gmra.mrb[0].mxu0 %v1868
        %v2020 = vpop.f32.mrb[0].mxu0
        %v2021 = vadd.f32 0.0, %v2020
        %v2022 = vpop.f32.mrb[0].mxu0
        %2023 = vmatprep.mubr.f32.mxu0 0.0
        %2024 = vmatmul.mubr.f32.gmra.mrb[0].mxu0 %v1871
        %v2025 = vpop.f32.mrb[0].mxu0
        %v2026 = vadd.f32 0.0, %v2025
        %v2027 = vpop.f32.mrb[0].mxu0
        %2028 = vmatprep.mubr.f32.mxu0 0.0
        %2029 = vmatmul.mubr.f32.gmra.mrb[0].mxu0 %v1874
        %v2030 = vpop.f32.mrb[0].mxu0
        %v2031 = vpop.f32.mrb[0].mxu0
        %2032 = vmatprep.mubr.f32.mxu0 0.0
        %2033 = vmatmul.mubr.f32.gmra.mrb[0].mxu0 %v1877
        %v2034 = vpop.f32.mrb[0].mxu0
        %v2035 = vadd.f32 0.0, %v2034
        %v2036 = vpop.f32.mrb[0].mxu0
        %2037 = vmatprep.mubr.f32.mxu0 0.0
        %2038 = vmatmul.mubr.f32.gmra.mrb[0].mxu0 %v1880
        %v2039 = vpop.f32.mrb[0].mxu0
        %v2040 = vadd.f32 0.0, %v2039
        %v2041 = vpop.f32.mrb[0].mxu0
        %2042 = vmatprep.mubr.f32.mxu0 0.0
        %2043 = vmatmul.mubr.f32.gmra.mrb[0].mxu0 %v1883
        %v2044 = vpop.f32.mrb[0].mxu0
        %v2045 = vpop.f32.mrb[0].mxu0
        %2046 = vmatprep.mubr.f32.mxu0 0.0
        %2047 = vmatmul.mubr.f32.gmra.mrb[0].mxu0 %v1886
        %v2048 = vpop.f32.mrb[0].mxu0
        %v2049 = vadd.f32 0.0, %v2048
        %v2050 = vpop.f32.mrb[0].mxu0
        %2051 = vmatprep.mubr.f32.mxu0 0.0
        %2052 = vmatmul.mubr.f32.gmra.mrb[0].mxu0 %v1889
        %v2053 = vpop.f32.mrb[0].mxu0
        %v2054 = vadd.f32 0.0, %v2053
        %v2055 = vpop.f32.mrb[0].mxu0
        %2056 = vmatprep.mubr.f32.mxu0 0.0
        %2057 = vmatmul.mubr.f32.gmra.mrb[0].mxu0 %v1892
        %v2058 = vpop.f32.mrb[0].mxu0
        %v2059 = vpop.f32.mrb[0].mxu0
        %2060 = vmatprep.mubr.f32.mxu0 0.0
        %2061 = vmatmul.mubr.f32.gmra.mrb[0].mxu0 %v1895
        %v2062 = vpop.f32.mrb[0].mxu0
        %v2063 = vadd.f32 0.0, %v2062
        %v2064 = vpop.f32.mrb[0].mxu0
        %2065 = vmatprep.mubr.f32.mxu0 0.0
        %2066 = vmatmul.mubr.f32.gmra.mrb[0].mxu0 %v1898
        %v2067 = vpop.f32.mrb[0].mxu0
        %v2068 = vadd.f32 0.0, %v2067
        %v2069 = vpop.f32.mrb[0].mxu0
        %2070 = vmatprep.mubr.f32.mxu0 0.0
        %2071 = vmatmul.mubr.f32.gmra.mrb[0].mxu0 %v1901
        %v2072 = vpop.f32.mrb[0].mxu0
        %v2073 = vpop.f32.mrb[0].mxu0
        %2074 = vmatprep.mubr.f32.mxu0 0.0
        %2075 = vmatmul.mubr.f32.gmra.mrb[0].mxu0 %v1904
        %v2076 = vpop.f32.mrb[0].mxu0
        %v2077 = vadd.f32 0.0, %v2076
        %v2078 = vpop.f32.mrb[0].mxu0
        %2079 = vmatprep.mubr.f32.mxu0 0.0
        %2080 = vmatmul.mubr.f32.gmra.mrb[0].mxu0 %v1907
        %v2081 = vpop.f32.mrb[0].mxu0
        %v2082 = vadd.f32 0.0, %v2081
        %v2083 = vpop.f32.mrb[0].mxu0
        %2084 = vmatprep.mubr.f32.mxu0 0.0
        %2085 = vmatmul.mubr.f32.gmra.mrb[0].mxu0 %v1910
        %v2086 = vpop.f32.mrb[0].mxu0
        %v2087 = vpop.f32.mrb[0].mxu0
        %2088 = vdwg.mxu0
        %v2089 = vadd.f32 %v1797, %v1979
        %v2090 = vadd.f32 %v1798, %v1984
        %v2091 = vadd.f32 %v1799, %v1993
        %v2092 = vadd.f32 %v1800, %v1998
        %v2093 = vadd.f32 %v1801, %v2007
        %v2094 = vadd.f32 %v1802, %v2012
        %v2095 = vadd.f32 %v1803, %v2021
        %v2096 = vadd.f32 %v1804, %v2026
        %v2097 = vadd.f32 %v1805, %v2035
        %v2098 = vadd.f32 %v1806, %v2040
        %v2099 = vadd.f32 %v1807, %v2049
        %v2100 = vadd.f32 %v1808, %v2054
        %v2101 = vadd.f32 %v1809, %v2063
        %v2102 = vadd.f32 %v1810, %v2068
        %v2103 = vadd.f32 %v1811, %v2077
        %v2104 = vadd.f32 %v1812, %v2082
        %s2105 = scalar_lea.vmem [#allocation9], 64
        %v2106 = vld [vmem:[%s2105] sm:$0xff]
        %v2107 = vld [vmem:[%s2105 + $0x8] sm:$0xff]
        %2108 = vmatprep.subr.mxu0 0.0
        %2109 = vmatpush1.msra.mxu0 %v2106
        %2110 = vmatprep.subr.mxu0 0.0
        %2111 = vmatpush1.msra.mxu0 %v2107
        %2112 = vmatprep.subr.mxu0 0.0
        %2113 = vmatpush1.msra.mxu0 0.0
        %2114 = vmatprep.subr.mxu0 0.0
        %2115 = vmatpush1.msra.mxu0 0.0
        %2116 = vmatprep.subr.mxu0 0.0
        %2117 = vmatpush1.msra.mxu0 0.0
        %2118 = vmatprep.subr.mxu0 0.0
        %2119 = vmatpush1.msra.mxu0 0.0
        %2120 = vmatprep.subr.mxu0 0.0
        %2121 = vmatpush1.msra.mxu0 0.0
        %2122 = vmatprep.subr.mxu0 0.0
        %2123 = vmatpush1.msra.mxu0 0.0
        %2124 = vmatprep.subr.mxu0 0.0
        %2125 = vmatpush1.msra.mxu0 0.0
        %2126 = vmatprep.subr.mxu0 0.0
        %2127 = vmatpush1.msra.mxu0 0.0
        %2128 = vmatprep.subr.mxu0 0.0
        %2129 = vmatpush1.msra.mxu0 0.0
        %2130 = vmatprep.subr.mxu0 0.0
        %2131 = vmatpush1.msra.mxu0 0.0
        %2132 = vmatprep.subr.mxu0 0.0
        %2133 = vmatpush1.msra.mxu0 0.0
        %2134 = vmatprep.subr.mxu0 0.0
        %2135 = vmatpush1.msra.mxu0 0.0
        %2136 = vmatprep.subr.mxu0 0.0
        %2137 = vmatpush1.msra.mxu0 0.0
        %2138 = vmatprep.subr.mxu0 0.0
        %2139 = vmatpush1.msra.mxu0 0.0
        %2140 = vmatprep.subr.mxu0 0.0
        %2141 = vmatpush1.msra.mxu0 0.0
        %2142 = vmatprep.subr.mxu0 0.0
        %2143 = vmatpush1.msra.mxu0 0.0
        %2144 = vmatprep.subr.mxu0 0.0
        %2145 = vmatpush1.msra.mxu0 0.0
        %2146 = vmatprep.subr.mxu0 0.0
        %2147 = vmatpush1.msra.mxu0 0.0
        %2148 = vmatprep.subr.mxu0 0.0
        %2149 = vmatpush1.msra.mxu0 0.0
        %2150 = vmatprep.subr.mxu0 0.0
        %2151 = vmatpush1.msra.mxu0 0.0
        %2152 = vmatprep.subr.mxu0 0.0
        %2153 = vmatpush1.msra.mxu0 0.0
        %2154 = vmatprep.subr.mxu0 0.0
        %2155 = vmatpush1.msra.mxu0 0.0
        %2156 = vmatprep.subr.mxu0 0.0
        %2157 = vmatpush1.msra.mxu0 0.0
        %2158 = vmatprep.subr.mxu0 0.0
        %2159 = vmatpush1.msra.mxu0 0.0
        %2160 = vmatprep.subr.mxu0 0.0
        %2161 = vmatpush1.msra.mxu0 0.0
        %2162 = vmatprep.subr.mxu0 0.0
        %2163 = vmatpush1.msra.mxu0 0.0
        %2164 = vmatprep.subr.mxu0 0.0
        %2165 = vmatpush1.msra.mxu0 0.0
        %2166 = vmatprep.subr.mxu0 0.0
        %2167 = vmatpush1.msra.mxu0 0.0
        %2168 = vmatprep.subr.mxu0 0.0
        %2169 = vmatpush1.msra.mxu0 0.0
        %2170 = vmatprep.subr.mxu0 0.0
        %2171 = vmatpush1.msra.mxu0 0.0
        %2172 = vmatprep.mubr.f32.mxu0 0.0
        %2173 = vmatmul.mubr.f32.gmra.mrb[0].mxu0 %v1841
        %v2174 = vpop.f32.mrb[0].mxu0
        %v2175 = vadd.f32 0.0, %v2174
        %v2176 = vpop.f32.mrb[0].mxu0
        %2177 = vmatprep.mubr.f32.mxu0 0.0
        %2178 = vmatmul.mubr.f32.gmra.mrb[0].mxu0 %v1844
        %v2179 = vpop.f32.mrb[0].mxu0
        %v2180 = vadd.f32 0.0, %v2179
        %v2181 = vpop.f32.mrb[0].mxu0
        %2182 = vmatprep.mubr.f32.mxu0 0.0
        %2183 = vmatmul.mubr.f32.gmra.mrb[0].mxu0 %v1847
        %v2184 = vpop.f32.mrb[0].mxu0
        %v2185 = vadd.f32 0.0, %v2184
        %v2186 = vpop.f32.mrb[0].mxu0
        %2187 = vmatprep.mubr.f32.mxu0 0.0
        %2188 = vmatmul.mubr.f32.gmra.mrb[0].mxu0 %v1850
        %v2189 = vpop.f32.mrb[0].mxu0
        %v2190 = vadd.f32 0.0, %v2189
        %v2191 = vpop.f32.mrb[0].mxu0
        %2192 = vmatprep.mubr.f32.mxu0 0.0
        %2193 = vmatmul.mubr.f32.gmra.mrb[0].mxu0 %v1853
        %v2194 = vpop.f32.mrb[0].mxu0
        %v2195 = vadd.f32 0.0, %v2194
        %v2196 = vpop.f32.mrb[0].mxu0
        %2197 = vmatprep.mubr.f32.mxu0 0.0
        %2198 = vmatmul.mubr.f32.gmra.mrb[0].mxu0 %v1856
        %v2199 = vpop.f32.mrb[0].mxu0
        %v2200 = vadd.f32 0.0, %v2199
        %v2201 = vpop.f32.mrb[0].mxu0
        %2202 = vmatprep.mubr.f32.mxu0 0.0
        %2203 = vmatmul.mubr.f32.gmra.mrb[0].mxu0 %v1859
        %v2204 = vpop.f32.mrb[0].mxu0
        %v2205 = vadd.f32 0.0, %v2204
        %v2206 = vpop.f32.mrb[0].mxu0
        %2207 = vmatprep.mubr.f32.mxu0 0.0
        %2208 = vmatmul.mubr.f32.gmra.mrb[0].mxu0 %v1862
        %v2209 = vpop.f32.mrb[0].mxu0
        %v2210 = vadd.f32 0.0, %v2209
        %v2211 = vpop.f32.mrb[0].mxu0
        %2212 = vmatprep.mubr.f32.mxu0 0.0
        %2213 = vmatmul.mubr.f32.gmra.mrb[0].mxu0 %v1865
        %v2214 = vpop.f32.mrb[0].mxu0
        %v2215 = vadd.f32 0.0, %v2214
        %v2216 = vpop.f32.mrb[0].mxu0
        %2217 = vmatprep.mubr.f32.mxu0 0.0
        %2218 = vmatmul.mubr.f32.gmra.mrb[0].mxu0 %v1868
        %v2219 = vpop.f32.mrb[0].mxu0
        %v2220 = vadd.f32 0.0, %v2219
        %v2221 = vpop.f32.mrb[0].mxu0
        %2222 = vmatprep.mubr.f32.mxu0 0.0
        %2223 = vmatmul.mubr.f32.gmra.mrb[0].mxu0 %v1871
        %v2224 = vpop.f32.mrb[0].mxu0
        %v2225 = vadd.f32 0.0, %v2224
        %v2226 = vpop.f32.mrb[0].mxu0
        %2227 = vmatprep.mubr.f32.mxu0 0.0
        %2228 = vmatmul.mubr.f32.gmra.mrb[0].mxu0 %v1874
        %v2229 = vpop.f32.mrb[0].mxu0
        %v2230 = vadd.f32 0.0, %v2229
        %v2231 = vpop.f32.mrb[0].mxu0
        %2232 = vmatprep.mubr.f32.mxu0 0.0
        %2233 = vmatmul.mubr.f32.gmra.mrb[0].mxu0 %v1877
        %v2234 = vpop.f32.mrb[0].mxu0
        %v2235 = vadd.f32 0.0, %v2234
        %v2236 = vpop.f32.mrb[0].mxu0
        %2237 = vmatprep.mubr.f32.mxu0 0.0
        %2238 = vmatmul.mubr.f32.gmra.mrb[0].mxu0 %v1880
        %v2239 = vpop.f32.mrb[0].mxu0
        %v2240 = vadd.f32 0.0, %v2239
        %v2241 = vpop.f32.mrb[0].mxu0
        %2242 = vmatprep.mubr.f32.mxu0 0.0
        %2243 = vmatmul.mubr.f32.gmra.mrb[0].mxu0 %v1883
        %v2244 = vpop.f32.mrb[0].mxu0
        %v2245 = vadd.f32 0.0, %v2244
        %v2246 = vpop.f32.mrb[0].mxu0
        %2247 = vmatprep.mubr.f32.mxu0 0.0
        %2248 = vmatmul.mubr.f32.gmra.mrb[0].mxu0 %v1886
        %v2249 = vpop.f32.mrb[0].mxu0
        %v2250 = vadd.f32 0.0, %v2249
        %v2251 = vpop.f32.mrb[0].mxu0
        %2252 = vmatprep.mubr.f32.mxu0 0.0
        %2253 = vmatmul.mubr.f32.gmra.mrb[0].mxu0 %v1889
        %v2254 = vpop.f32.mrb[0].mxu0
        %v2255 = vadd.f32 0.0, %v2254
        %v2256 = vpop.f32.mrb[0].mxu0
        %2257 = vmatprep.mubr.f32.mxu0 0.0
        %2258 = vmatmul.mubr.f32.gmra.mrb[0].mxu0 %v1892
        %v2259 = vpop.f32.mrb[0].mxu0
        %v2260 = vadd.f32 0.0, %v2259
        %v2261 = vpop.f32.mrb[0].mxu0
        %2262 = vmatprep.mubr.f32.mxu0 0.0
        %2263 = vmatmul.mubr.f32.gmra.mrb[0].mxu0 %v1895
        %v2264 = vpop.f32.mrb[0].mxu0
        %v2265 = vadd.f32 0.0, %v2264
        %v2266 = vpop.f32.mrb[0].mxu0
        %2267 = vmatprep.mubr.f32.mxu0 0.0
        %2268 = vmatmul.mubr.f32.gmra.mrb[0].mxu0 %v1898
        %v2269 = vpop.f32.mrb[0].mxu0
        %v2270 = vadd.f32 0.0, %v2269
        %v2271 = vpop.f32.mrb[0].mxu0
        %2272 = vmatprep.mubr.f32.mxu0 0.0
        %2273 = vmatmul.mubr.f32.gmra.mrb[0].mxu0 %v1901
        %v2274 = vpop.f32.mrb[0].mxu0
        %v2275 = vadd.f32 0.0, %v2274
        %v2276 = vpop.f32.mrb[0].mxu0
        %2277 = vmatprep.mubr.f32.mxu0 0.0
        %2278 = vmatmul.mubr.f32.gmra.mrb[0].mxu0 %v1904
        %v2279 = vpop.f32.mrb[0].mxu0
        %v2280 = vadd.f32 0.0, %v2279
        %v2281 = vpop.f32.mrb[0].mxu0
        %2282 = vmatprep.mubr.f32.mxu0 0.0
        %2283 = vmatmul.mubr.f32.gmra.mrb[0].mxu0 %v1907
        %v2284 = vpop.f32.mrb[0].mxu0
        %v2285 = vadd.f32 0.0, %v2284
        %v2286 = vpop.f32.mrb[0].mxu0
        %2287 = vmatprep.mubr.f32.mxu0 0.0
        %2288 = vmatmul.mubr.f32.gmra.mrb[0].mxu0 %v1910
        %v2289 = vpop.f32.mrb[0].mxu0
        %v2290 = vadd.f32 0.0, %v2289
        %v2291 = vpop.f32.mrb[0].mxu0
        %2292 = vdwg.mxu0
        %v2317 = vrot.slane %v2175, 1
        %v2318 = vrot.slane %v2180, 1
        %v2319 = vsel %vm1455, %v2317, %v2318
        %v2320 = vrot.slane %v2185, 1
        %v2321 = vsel %vm1455, %v2318, %v2320
        %v2322 = vrot.slane %v2190, 1
        %v2323 = vrot.slane %v2195, 1
        %v2324 = vsel %vm1455, %v2322, %v2323
        %v2325 = vrot.slane %v2200, 1
        %v2326 = vsel %vm1455, %v2323, %v2325
        %v2327 = vrot.slane %v2205, 1
        %v2328 = vrot.slane %v2210, 1
        %v2329 = vsel %vm1455, %v2327, %v2328
        %v2330 = vrot.slane %v2215, 1
        %v2331 = vsel %vm1455, %v2328, %v2330
        %v2332 = vrot.slane %v2220, 1
        %v2333 = vrot.slane %v2225, 1
        %v2334 = vsel %vm1455, %v2332, %v2333
        %v2335 = vrot.slane %v2230, 1
        %v2336 = vsel %vm1455, %v2333, %v2335
        %v2337 = vrot.slane %v2235, 1
        %v2338 = vrot.slane %v2240, 1
        %v2339 = vsel %vm1455, %v2337, %v2338
        %v2340 = vrot.slane %v2245, 1
        %v2341 = vsel %vm1455, %v2338, %v2340
        %v2342 = vrot.slane %v2250, 1
        %v2343 = vrot.slane %v2255, 1
        %v2344 = vsel %vm1455, %v2342, %v2343
        %v2345 = vrot.slane %v2260, 1
        %v2346 = vsel %vm1455, %v2343, %v2345
        %v2347 = vrot.slane %v2265, 1
        %v2348 = vrot.slane %v2270, 1
        %v2349 = vsel %vm1455, %v2347, %v2348
        %v2350 = vrot.slane %v2275, 1
        %v2351 = vsel %vm1455, %v2348, %v2350
        %v2352 = vrot.slane %v2280, 1
        %v2353 = vrot.slane %v2285, 1
        %v2354 = vsel %vm1455, %v2352, %v2353
        %v2355 = vrot.slane %v2290, 1
        %v2356 = vsel %vm1455, %v2353, %v2355
        %v2373 = vadd.f32 %v2089, %v2319
        %v2374 = vadd.f32 %v2090, %v2321
        %v2375 = vadd.f32 %v2091, %v2324
        %v2376 = vadd.f32 %v2092, %v2326
        %v2377 = vadd.f32 %v2093, %v2329
        %v2378 = vadd.f32 %v2094, %v2331
        %v2379 = vadd.f32 %v2095, %v2334
        %v2380 = vadd.f32 %v2096, %v2336
        %v2381 = vadd.f32 %v2097, %v2339
        %v2382 = vadd.f32 %v2098, %v2341
        %v2383 = vadd.f32 %v2099, %v2344
        %v2384 = vadd.f32 %v2100, %v2346
        %v2385 = vadd.f32 %v2101, %v2349
        %v2386 = vadd.f32 %v2102, %v2351
        %v2387 = vadd.f32 %v2103, %v2354
        %v2388 = vadd.f32 %v2104, %v2356
        %s2389 = scalar_lea.vmem [#allocation9], 80
        %v2390 = vld [vmem:[%s2389] sm:$0xff]
        %v2391 = vld [vmem:[%s2389 + $0x8] sm:$0xff]
        %2392 = vmatprep.subr.mxu0 0.0
        %2393 = vmatpush1.msra.mxu0 %v2390
        %2394 = vmatprep.subr.mxu0 0.0
        %2395 = vmatpush1.msra.mxu0 %v2391
        %2396 = vmatprep.subr.mxu0 0.0
        %2397 = vmatpush1.msra.mxu0 0.0
        %2398 = vmatprep.subr.mxu0 0.0
        %2399 = vmatpush1.msra.mxu0 0.0
        %2400 = vmatprep.subr.mxu0 0.0
        %2401 = vmatpush1.msra.mxu0 0.0
        %2402 = vmatprep.subr.mxu0 0.0
        %2403 = vmatpush1.msra.mxu0 0.0
        %2404 = vmatprep.subr.mxu0 0.0
        %2405 = vmatpush1.msra.mxu0 0.0
        %2406 = vmatprep.subr.mxu0 0.0
        %2407 = vmatpush1.msra.mxu0 0.0
        %2408 = vmatprep.subr.mxu0 0.0
        %2409 = vmatpush1.msra.mxu0 0.0
        %2410 = vmatprep.subr.mxu0 0.0
        %2411 = vmatpush1.msra.mxu0 0.0
        %2412 = vmatprep.subr.mxu0 0.0
        %2413 = vmatpush1.msra.mxu0 0.0
        %2414 = vmatprep.subr.mxu0 0.0
        %2415 = vmatpush1.msra.mxu0 0.0
        %2416 = vmatprep.subr.mxu0 0.0
        %2417 = vmatpush1.msra.mxu0 0.0
        %2418 = vmatprep.subr.mxu0 0.0
        %2419 = vmatpush1.msra.mxu0 0.0
        %2420 = vmatprep.subr.mxu0 0.0
        %2421 = vmatpush1.msra.mxu0 0.0
        %2422 = vmatprep.subr.mxu0 0.0
        %2423 = vmatpush1.msra.mxu0 0.0
        %2424 = vmatprep.subr.mxu0 0.0
        %2425 = vmatpush1.msra.mxu0 0.0
        %2426 = vmatprep.subr.mxu0 0.0
        %2427 = vmatpush1.msra.mxu0 0.0
        %2428 = vmatprep.subr.mxu0 0.0
        %2429 = vmatpush1.msra.mxu0 0.0
        %2430 = vmatprep.subr.mxu0 0.0
        %2431 = vmatpush1.msra.mxu0 0.0
        %2432 = vmatprep.subr.mxu0 0.0
        %2433 = vmatpush1.msra.mxu0 0.0
        %2434 = vmatprep.subr.mxu0 0.0
        %2435 = vmatpush1.msra.mxu0 0.0
        %2436 = vmatprep.subr.mxu0 0.0
        %2437 = vmatpush1.msra.mxu0 0.0
        %2438 = vmatprep.subr.mxu0 0.0
        %2439 = vmatpush1.msra.mxu0 0.0
        %2440 = vmatprep.subr.mxu0 0.0
        %2441 = vmatpush1.msra.mxu0 0.0
        %2442 = vmatprep.subr.mxu0 0.0
        %2443 = vmatpush1.msra.mxu0 0.0
        %2444 = vmatprep.subr.mxu0 0.0
        %2445 = vmatpush1.msra.mxu0 0.0
        %2446 = vmatprep.subr.mxu0 0.0
        %2447 = vmatpush1.msra.mxu0 0.0
        %2448 = vmatprep.subr.mxu0 0.0
        %2449 = vmatpush1.msra.mxu0 0.0
        %2450 = vmatprep.subr.mxu0 0.0
        %2451 = vmatpush1.msra.mxu0 0.0
        %2452 = vmatprep.subr.mxu0 0.0
        %2453 = vmatpush1.msra.mxu0 0.0
        %2454 = vmatprep.subr.mxu0 0.0
        %2455 = vmatpush1.msra.mxu0 0.0
        %2456 = vmatprep.mubr.f32.mxu0 0.0
        %2457 = vmatmul.mubr.f32.gmra.mrb[0].mxu0 %v1841
        %v2458 = vpop.f32.mrb[0].mxu0
        %v2459 = vadd.f32 0.0, %v2458
        %v2460 = vpop.f32.mrb[0].mxu0
        %2461 = vmatprep.mubr.f32.mxu0 0.0
        %2462 = vmatmul.mubr.f32.gmra.mrb[0].mxu0 %v1844
        %v2463 = vpop.f32.mrb[0].mxu0
        %v2464 = vadd.f32 0.0, %v2463
        %v2465 = vpop.f32.mrb[0].mxu0
        %2466 = vmatprep.mubr.f32.mxu0 0.0
        %2467 = vmatmul.mubr.f32.gmra.mrb[0].mxu0 %v1847
        %v2468 = vpop.f32.mrb[0].mxu0
        %v2469 = vadd.f32 0.0, %v2468
        %v2470 = vpop.f32.mrb[0].mxu0
        %2471 = vmatprep.mubr.f32.mxu0 0.0
        %2472 = vmatmul.mubr.f32.gmra.mrb[0].mxu0 %v1850
        %v2473 = vpop.f32.mrb[0].mxu0
        %v2474 = vadd.f32 0.0, %v2473
        %v2475 = vpop.f32.mrb[0].mxu0
        %2476 = vmatprep.mubr.f32.mxu0 0.0
        %2477 = vmatmul.mubr.f32.gmra.mrb[0].mxu0 %v1853
        %v2478 = vpop.f32.mrb[0].mxu0
        %v2479 = vadd.f32 0.0, %v2478
        %v2480 = vpop.f32.mrb[0].mxu0
        %2481 = vmatprep.mubr.f32.mxu0 0.0
        %2482 = vmatmul.mubr.f32.gmra.mrb[0].mxu0 %v1856
        %v2483 = vpop.f32.mrb[0].mxu0
        %v2484 = vadd.f32 0.0, %v2483
        %v2485 = vpop.f32.mrb[0].mxu0
        %2486 = vmatprep.mubr.f32.mxu0 0.0
        %2487 = vmatmul.mubr.f32.gmra.mrb[0].mxu0 %v1859
        %v2488 = vpop.f32.mrb[0].mxu0
        %v2489 = vadd.f32 0.0, %v2488
        %v2490 = vpop.f32.mrb[0].mxu0
        %2491 = vmatprep.mubr.f32.mxu0 0.0
        %2492 = vmatmul.mubr.f32.gmra.mrb[0].mxu0 %v1862
        %v2493 = vpop.f32.mrb[0].mxu0
        %v2494 = vadd.f32 0.0, %v2493
        %v2495 = vpop.f32.mrb[0].mxu0
        %2496 = vmatprep.mubr.f32.mxu0 0.0
        %2497 = vmatmul.mubr.f32.gmra.mrb[0].mxu0 %v1865
        %v2498 = vpop.f32.mrb[0].mxu0
        %v2499 = vadd.f32 0.0, %v2498
        %v2500 = vpop.f32.mrb[0].mxu0
        %2501 = vmatprep.mubr.f32.mxu0 0.0
        %2502 = vmatmul.mubr.f32.gmra.mrb[0].mxu0 %v1868
        %v2503 = vpop.f32.mrb[0].mxu0
        %v2504 = vadd.f32 0.0, %v2503
        %v2505 = vpop.f32.mrb[0].mxu0
        %2506 = vmatprep.mubr.f32.mxu0 0.0
        %2507 = vmatmul.mubr.f32.gmra.mrb[0].mxu0 %v1871
        %v2508 = vpop.f32.mrb[0].mxu0
        %v2509 = vadd.f32 0.0, %v2508
        %v2510 = vpop.f32.mrb[0].mxu0
        %2511 = vmatprep.mubr.f32.mxu0 0.0
        %2512 = vmatmul.mubr.f32.gmra.mrb[0].mxu0 %v1874
        %v2513 = vpop.f32.mrb[0].mxu0
        %v2514 = vadd.f32 0.0, %v2513
        %v2515 = vpop.f32.mrb[0].mxu0
        %2516 = vmatprep.mubr.f32.mxu0 0.0
        %2517 = vmatmul.mubr.f32.gmra.mrb[0].mxu0 %v1877
        %v2518 = vpop.f32.mrb[0].mxu0
        %v2519 = vadd.f32 0.0, %v2518
        %v2520 = vpop.f32.mrb[0].mxu0
        %2521 = vmatprep.mubr.f32.mxu0 0.0
        %2522 = vmatmul.mubr.f32.gmra.mrb[0].mxu0 %v1880
        %v2523 = vpop.f32.mrb[0].mxu0
        %v2524 = vadd.f32 0.0, %v2523
        %v2525 = vpop.f32.mrb[0].mxu0
        %2526 = vmatprep.mubr.f32.mxu0 0.0
        %2527 = vmatmul.mubr.f32.gmra.mrb[0].mxu0 %v1883
        %v2528 = vpop.f32.mrb[0].mxu0
        %v2529 = vadd.f32 0.0, %v2528
        %v2530 = vpop.f32.mrb[0].mxu0
        %2531 = vmatprep.mubr.f32.mxu0 0.0
        %2532 = vmatmul.mubr.f32.gmra.mrb[0].mxu0 %v1886
        %v2533 = vpop.f32.mrb[0].mxu0
        %v2534 = vadd.f32 0.0, %v2533
        %v2535 = vpop.f32.mrb[0].mxu0
        %2536 = vmatprep.mubr.f32.mxu0 0.0
        %2537 = vmatmul.mubr.f32.gmra.mrb[0].mxu0 %v1889
        %v2538 = vpop.f32.mrb[0].mxu0
        %v2539 = vadd.f32 0.0, %v2538
        %v2540 = vpop.f32.mrb[0].mxu0
        %2541 = vmatprep.mubr.f32.mxu0 0.0
        %2542 = vmatmul.mubr.f32.gmra.mrb[0].mxu0 %v1892
        %v2543 = vpop.f32.mrb[0].mxu0
        %v2544 = vadd.f32 0.0, %v2543
        %v2545 = vpop.f32.mrb[0].mxu0
        %2546 = vmatprep.mubr.f32.mxu0 0.0
        %2547 = vmatmul.mubr.f32.gmra.mrb[0].mxu0 %v1895
        %v2548 = vpop.f32.mrb[0].mxu0
        %v2549 = vadd.f32 0.0, %v2548
        %v2550 = vpop.f32.mrb[0].mxu0
        %2551 = vmatprep.mubr.f32.mxu0 0.0
        %2552 = vmatmul.mubr.f32.gmra.mrb[0].mxu0 %v1898
        %v2553 = vpop.f32.mrb[0].mxu0
        %v2554 = vadd.f32 0.0, %v2553
        %v2555 = vpop.f32.mrb[0].mxu0
        %2556 = vmatprep.mubr.f32.mxu0 0.0
        %2557 = vmatmul.mubr.f32.gmra.mrb[0].mxu0 %v1901
        %v2558 = vpop.f32.mrb[0].mxu0
        %v2559 = vadd.f32 0.0, %v2558
        %v2560 = vpop.f32.mrb[0].mxu0
        %2561 = vmatprep.mubr.f32.mxu0 0.0
        %2562 = vmatmul.mubr.f32.gmra.mrb[0].mxu0 %v1904
        %v2563 = vpop.f32.mrb[0].mxu0
        %v2564 = vadd.f32 0.0, %v2563
        %v2565 = vpop.f32.mrb[0].mxu0
        %2566 = vmatprep.mubr.f32.mxu0 0.0
        %2567 = vmatmul.mubr.f32.gmra.mrb[0].mxu0 %v1907
        %v2568 = vpop.f32.mrb[0].mxu0
        %v2569 = vadd.f32 0.0, %v2568
        %v2570 = vpop.f32.mrb[0].mxu0
        %2571 = vmatprep.mubr.f32.mxu0 0.0
        %2572 = vmatmul.mubr.f32.gmra.mrb[0].mxu0 %v1910
        %v2573 = vpop.f32.mrb[0].mxu0
        %v2574 = vadd.f32 0.0, %v2573
        %v2575 = vpop.f32.mrb[0].mxu0
        %2576 = vdwg.mxu0
        %v2601 = vrot.slane %v2459, 2
        %v2602 = vrot.slane %v2464, 2
        %v2603 = vsel %vm1740, %v2601, %v2602
        %v2604 = vrot.slane %v2469, 2
        %v2605 = vsel %vm1740, %v2602, %v2604
        %v2606 = vrot.slane %v2474, 2
        %v2607 = vrot.slane %v2479, 2
        %v2608 = vsel %vm1740, %v2606, %v2607
        %v2609 = vrot.slane %v2484, 2
        %v2610 = vsel %vm1740, %v2607, %v2609
        %v2611 = vrot.slane %v2489, 2
        %v2612 = vrot.slane %v2494, 2
        %v2613 = vsel %vm1740, %v2611, %v2612
        %v2614 = vrot.slane %v2499, 2
        %v2615 = vsel %vm1740, %v2612, %v2614
        %v2616 = vrot.slane %v2504, 2
        %v2617 = vrot.slane %v2509, 2
        %v2618 = vsel %vm1740, %v2616, %v2617
        %v2619 = vrot.slane %v2514, 2
        %v2620 = vsel %vm1740, %v2617, %v2619
        %v2621 = vrot.slane %v2519, 2
        %v2622 = vrot.slane %v2524, 2
        %v2623 = vsel %vm1740, %v2621, %v2622
        %v2624 = vrot.slane %v2529, 2
        %v2625 = vsel %vm1740, %v2622, %v2624
        %v2626 = vrot.slane %v2534, 2
        %v2627 = vrot.slane %v2539, 2
        %v2628 = vsel %vm1740, %v2626, %v2627
        %v2629 = vrot.slane %v2544, 2
        %v2630 = vsel %vm1740, %v2627, %v2629
        %v2631 = vrot.slane %v2549, 2
        %v2632 = vrot.slane %v2554, 2
        %v2633 = vsel %vm1740, %v2631, %v2632
        %v2634 = vrot.slane %v2559, 2
        %v2635 = vsel %vm1740, %v2632, %v2634
        %v2636 = vrot.slane %v2564, 2
        %v2637 = vrot.slane %v2569, 2
        %v2638 = vsel %vm1740, %v2636, %v2637
        %v2639 = vrot.slane %v2574, 2
        %v2640 = vsel %vm1740, %v2637, %v2639
        %v2657 = vadd.f32 %v2373, %v2603
        %v2658 = vadd.f32 %v2374, %v2605
        %v2659 = vadd.f32 %v2375, %v2608
        %v2660 = vadd.f32 %v2376, %v2610
        %v2661 = vadd.f32 %v2377, %v2613
        %v2662 = vadd.f32 %v2378, %v2615
        %v2663 = vadd.f32 %v2379, %v2618
        %v2664 = vadd.f32 %v2380, %v2620
        %v2665 = vadd.f32 %v2381, %v2623
        %v2666 = vadd.f32 %v2382, %v2625
        %v2667 = vadd.f32 %v2383, %v2628
        %v2668 = vadd.f32 %v2384, %v2630
        %v2669 = vadd.f32 %v2385, %v2633
        %v2670 = vadd.f32 %v2386, %v2635
        %v2671 = vadd.f32 %v2387, %v2638
        %v2672 = vadd.f32 %v2388, %v2640
        %s2673 = scalar_lea.vmem [#allocation2], 48
        %v2674 = vld [vmem:[%s2673] sm:$0xff]
        %v2675 = vld [vmem:[%s2673 + $0x8] sm:$0xff]
        %v2676 = vld [vmem:[%s2673 + $0x10] sm:$0xff]
        %v2677 = vld [vmem:[%s2673 + $0x18] sm:$0xff]
        %v2678 = vld [vmem:[%s2673 + $0x20] sm:$0xff]
        %v2679 = vld [vmem:[%s2673 + $0x28] sm:$0xff]
        %v2680 = vld [vmem:[%s2673 + $0x30] sm:$0xff]
        %v2681 = vld [vmem:[%s2673 + $0x38] sm:$0xff]
        %v2682 = vld [vmem:[%s2673 + $0x40] sm:$0xff]
        %v2683 = vld [vmem:[%s2673 + $0x48] sm:$0xff]
        %v2684 = vld [vmem:[%s2673 + $0x50] sm:$0xff]
        %v2685 = vld [vmem:[%s2673 + $0x58] sm:$0xff]
        %v2686 = vld [vmem:[%s2673 + $0x60] sm:$0xff]
        %v2687 = vld [vmem:[%s2673 + $0x68] sm:$0xff]
        %v2688 = vld [vmem:[%s2673 + $0x70] sm:$0xff]
        %v2689 = vld [vmem:[%s2673 + $0x78] sm:$0xff]
        %v2690 = vld [vmem:[%s2673 + $0x80] sm:$0xff]
        %v2691 = vld [vmem:[%s2673 + $0x88] sm:$0xff]
        %v2692 = vld [vmem:[%s2673 + $0x90] sm:$0xff]
        %v2693 = vld [vmem:[%s2673 + $0x98] sm:$0xff]
        %v2694 = vld [vmem:[%s2673 + $0xa0] sm:$0xff]
        %v2695 = vld [vmem:[%s2673 + $0xa8] sm:$0xff]
        %v2696 = vld [vmem:[%s2673 + $0xb0] sm:$0xff]
        %v2697 = vld [vmem:[%s2673 + $0xb8] sm:$0xff]
        %s2698 = scalar_lea.vmem [#allocation9], 96
        %v2699 = vld [vmem:[%s2698] sm:$0xff]
        %v2700 = vld [vmem:[%s2698 + $0x8] sm:$0xff]
        %v2702 = vsel %vm742, %v2674, 0
        %v2705 = vsel %vm742, %v2675, 0
        %v2708 = vsel %vm742, %v2676, 0
        %v2711 = vsel %vm742, %v2677, 0
        %v2714 = vsel %vm742, %v2678, 0
        %v2717 = vsel %vm742, %v2679, 0
        %v2720 = vsel %vm742, %v2680, 0
        %v2723 = vsel %vm742, %v2681, 0
        %v2726 = vsel %vm742, %v2682, 0
        %v2729 = vsel %vm742, %v2683, 0
        %v2732 = vsel %vm742, %v2684, 0
        %v2735 = vsel %vm742, %v2685, 0
        %v2738 = vsel %vm742, %v2686, 0
        %v2741 = vsel %vm742, %v2687, 0
        %v2744 = vsel %vm742, %v2688, 0
        %v2747 = vsel %vm742, %v2689, 0
        %v2750 = vsel %vm742, %v2690, 0
        %v2753 = vsel %vm742, %v2691, 0
        %v2756 = vsel %vm742, %v2692, 0
        %v2759 = vsel %vm742, %v2693, 0
        %v2762 = vsel %vm742, %v2694, 0
        %v2765 = vsel %vm742, %v2695, 0
        %v2768 = vsel %vm742, %v2696, 0
        %v2771 = vsel %vm742, %v2697, 0
        %2773 = vmatprep.subr.mxu0 0.0
        %2774 = vmatpush1.msra.mxu0 %v2699
        %2775 = vmatprep.subr.mxu0 0.0
        %2776 = vmatpush1.msra.mxu0 %v2700
        %2777 = vmatprep.subr.mxu0 0.0
        %2778 = vmatpush1.msra.mxu0 0.0
        %2779 = vmatprep.subr.mxu0 0.0
        %2780 = vmatpush1.msra.mxu0 0.0
        %2781 = vmatprep.subr.mxu0 0.0
        %2782 = vmatpush1.msra.mxu0 0.0
        %2783 = vmatprep.subr.mxu0 0.0
        %2784 = vmatpush1.msra.mxu0 0.0
        %2785 = vmatprep.subr.mxu0 0.0
        %2786 = vmatpush1.msra.mxu0 0.0
        %2787 = vmatprep.subr.mxu0 0.0
        %2788 = vmatpush1.msra.mxu0 0.0
        %2789 = vmatprep.subr.mxu0 0.0
        %2790 = vmatpush1.msra.mxu0 0.0
        %2791 = vmatprep.subr.mxu0 0.0
        %2792 = vmatpush1.msra.mxu0 0.0
        %2793 = vmatprep.subr.mxu0 0.0
        %2794 = vmatpush1.msra.mxu0 0.0
        %2795 = vmatprep.subr.mxu0 0.0
        %2796 = vmatpush1.msra.mxu0 0.0
        %2797 = vmatprep.subr.mxu0 0.0
        %2798 = vmatpush1.msra.mxu0 0.0
        %2799 = vmatprep.subr.mxu0 0.0
        %2800 = vmatpush1.msra.mxu0 0.0
        %2801 = vmatprep.subr.mxu0 0.0
        %2802 = vmatpush1.msra.mxu0 0.0
        %2803 = vmatprep.subr.mxu0 0.0
        %2804 = vmatpush1.msra.mxu0 0.0
        %2805 = vmatprep.subr.mxu0 0.0
        %2806 = vmatpush1.msra.mxu0 0.0
        %2807 = vmatprep.subr.mxu0 0.0
        %2808 = vmatpush1.msra.mxu0 0.0
        %2809 = vmatprep.subr.mxu0 0.0
        %2810 = vmatpush1.msra.mxu0 0.0
        %2811 = vmatprep.subr.mxu0 0.0
        %2812 = vmatpush1.msra.mxu0 0.0
        %2813 = vmatprep.subr.mxu0 0.0
        %2814 = vmatpush1.msra.mxu0 0.0
        %2815 = vmatprep.subr.mxu0 0.0
        %2816 = vmatpush1.msra.mxu0 0.0
        %2817 = vmatprep.subr.mxu0 0.0
        %2818 = vmatpush1.msra.mxu0 0.0
        %2819 = vmatprep.subr.mxu0 0.0
        %2820 = vmatpush1.msra.mxu0 0.0
        %2821 = vmatprep.subr.mxu0 0.0
        %2822 = vmatpush1.msra.mxu0 0.0
        %2823 = vmatprep.subr.mxu0 0.0
        %2824 = vmatpush1.msra.mxu0 0.0
        %2825 = vmatprep.subr.mxu0 0.0
        %2826 = vmatpush1.msra.mxu0 0.0
        %2827 = vmatprep.subr.mxu0 0.0
        %2828 = vmatpush1.msra.mxu0 0.0
        %2829 = vmatprep.subr.mxu0 0.0
        %2830 = vmatpush1.msra.mxu0 0.0
        %2831 = vmatprep.subr.mxu0 0.0
        %2832 = vmatpush1.msra.mxu0 0.0
        %2833 = vmatprep.subr.mxu0 0.0
        %2834 = vmatpush1.msra.mxu0 0.0
        %2835 = vmatprep.subr.mxu0 0.0
        %2836 = vmatpush1.msra.mxu0 0.0
        %2837 = vmatprep.mubr.f32.mxu0 0.0
        %2838 = vmatmul.mubr.f32.gmra.mrb[0].mxu0 %v2702
        %v2839 = vpop.f32.mrb[0].mxu0
        %v2840 = vadd.f32 0.0, %v2839
        %v2841 = vpop.f32.mrb[0].mxu0
        %2842 = vmatprep.mubr.f32.mxu0 0.0
        %2843 = vmatmul.mubr.f32.gmra.mrb[0].mxu0 %v2705
        %v2844 = vpop.f32.mrb[0].mxu0
        %v2845 = vadd.f32 0.0, %v2844
        %v2846 = vpop.f32.mrb[0].mxu0
        %2847 = vmatprep.mubr.f32.mxu0 0.0
        %2848 = vmatmul.mubr.f32.gmra.mrb[0].mxu0 %v2708
        %v2849 = vpop.f32.mrb[0].mxu0
        %v2850 = vpop.f32.mrb[0].mxu0
        %2851 = vmatprep.mubr.f32.mxu0 0.0
        %2852 = vmatmul.mubr.f32.gmra.mrb[0].mxu0 %v2711
        %v2853 = vpop.f32.mrb[0].mxu0
        %v2854 = vadd.f32 0.0, %v2853
        %v2855 = vpop.f32.mrb[0].mxu0
        %2856 = vmatprep.mubr.f32.mxu0 0.0
        %2857 = vmatmul.mubr.f32.gmra.mrb[0].mxu0 %v2714
        %v2858 = vpop.f32.mrb[0].mxu0
        %v2859 = vadd.f32 0.0, %v2858
        %v2860 = vpop.f32.mrb[0].mxu0
        %2861 = vmatprep.mubr.f32.mxu0 0.0
        %2862 = vmatmul.mubr.f32.gmra.mrb[0].mxu0 %v2717
        %v2863 = vpop.f32.mrb[0].mxu0
        %v2864 = vpop.f32.mrb[0].mxu0
        %2865 = vmatprep.mubr.f32.mxu0 0.0
        %2866 = vmatmul.mubr.f32.gmra.mrb[0].mxu0 %v2720
        %v2867 = vpop.f32.mrb[0].mxu0
        %v2868 = vadd.f32 0.0, %v2867
        %v2869 = vpop.f32.mrb[0].mxu0
        %2870 = vmatprep.mubr.f32.mxu0 0.0
        %2871 = vmatmul.mubr.f32.gmra.mrb[0].mxu0 %v2723
        %v2872 = vpop.f32.mrb[0].mxu0
        %v2873 = vadd.f32 0.0, %v2872
        %v2874 = vpop.f32.mrb[0].mxu0
        %2875 = vmatprep.mubr.f32.mxu0 0.0
        %2876 = vmatmul.mubr.f32.gmra.mrb[0].mxu0 %v2726
        %v2877 = vpop.f32.mrb[0].mxu0
        %v2878 = vpop.f32.mrb[0].mxu0
        %2879 = vmatprep.mubr.f32.mxu0 0.0
        %2880 = vmatmul.mubr.f32.gmra.mrb[0].mxu0 %v2729
        %v2881 = vpop.f32.mrb[0].mxu0
        %v2882 = vadd.f32 0.0, %v2881
        %v2883 = vpop.f32.mrb[0].mxu0
        %2884 = vmatprep.mubr.f32.mxu0 0.0
        %2885 = vmatmul.mubr.f32.gmra.mrb[0].mxu0 %v2732
        %v2886 = vpop.f32.mrb[0].mxu0
        %v2887 = vadd.f32 0.0, %v2886
        %v2888 = vpop.f32.mrb[0].mxu0
        %2889 = vmatprep.mubr.f32.mxu0 0.0
        %2890 = vmatmul.mubr.f32.gmra.mrb[0].mxu0 %v2735
        %v2891 = vpop.f32.mrb[0].mxu0
        %v2892 = vpop.f32.mrb[0].mxu0
        %2893 = vmatprep.mubr.f32.mxu0 0.0
        %2894 = vmatmul.mubr.f32.gmra.mrb[0].mxu0 %v2738
        %v2895 = vpop.f32.mrb[0].mxu0
        %v2896 = vadd.f32 0.0, %v2895
        %v2897 = vpop.f32.mrb[0].mxu0
        %2898 = vmatprep.mubr.f32.mxu0 0.0
        %2899 = vmatmul.mubr.f32.gmra.mrb[0].mxu0 %v2741
        %v2900 = vpop.f32.mrb[0].mxu0
        %v2901 = vadd.f32 0.0, %v2900
        %v2902 = vpop.f32.mrb[0].mxu0
        %2903 = vmatprep.mubr.f32.mxu0 0.0
        %2904 = vmatmul.mubr.f32.gmra.mrb[0].mxu0 %v2744
        %v2905 = vpop.f32.mrb[0].mxu0
        %v2906 = vpop.f32.mrb[0].mxu0
        %2907 = vmatprep.mubr.f32.mxu0 0.0
        %2908 = vmatmul.mubr.f32.gmra.mrb[0].mxu0 %v2747
        %v2909 = vpop.f32.mrb[0].mxu0
        %v2910 = vadd.f32 0.0, %v2909
        %v2911 = vpop.f32.mrb[0].mxu0
        %2912 = vmatprep.mubr.f32.mxu0 0.0
        %2913 = vmatmul.mubr.f32.gmra.mrb[0].mxu0 %v2750
        %v2914 = vpop.f32.mrb[0].mxu0
        %v2915 = vadd.f32 0.0, %v2914
        %v2916 = vpop.f32.mrb[0].mxu0
        %2917 = vmatprep.mubr.f32.mxu0 0.0
        %2918 = vmatmul.mubr.f32.gmra.mrb[0].mxu0 %v2753
        %v2919 = vpop.f32.mrb[0].mxu0
        %v2920 = vpop.f32.mrb[0].mxu0
        %2921 = vmatprep.mubr.f32.mxu0 0.0
        %2922 = vmatmul.mubr.f32.gmra.mrb[0].mxu0 %v2756
        %v2923 = vpop.f32.mrb[0].mxu0
        %v2924 = vadd.f32 0.0, %v2923
        %v2925 = vpop.f32.mrb[0].mxu0
        %2926 = vmatprep.mubr.f32.mxu0 0.0
        %2927 = vmatmul.mubr.f32.gmra.mrb[0].mxu0 %v2759
        %v2928 = vpop.f32.mrb[0].mxu0
        %v2929 = vadd.f32 0.0, %v2928
        %v2930 = vpop.f32.mrb[0].mxu0
        %2931 = vmatprep.mubr.f32.mxu0 0.0
        %2932 = vmatmul.mubr.f32.gmra.mrb[0].mxu0 %v2762
        %v2933 = vpop.f32.mrb[0].mxu0
        %v2934 = vpop.f32.mrb[0].mxu0
        %2935 = vmatprep.mubr.f32.mxu0 0.0
        %2936 = vmatmul.mubr.f32.gmra.mrb[0].mxu0 %v2765
        %v2937 = vpop.f32.mrb[0].mxu0
        %v2938 = vadd.f32 0.0, %v2937
        %v2939 = vpop.f32.mrb[0].mxu0
        %2940 = vmatprep.mubr.f32.mxu0 0.0
        %2941 = vmatmul.mubr.f32.gmra.mrb[0].mxu0 %v2768
        %v2942 = vpop.f32.mrb[0].mxu0
        %v2943 = vadd.f32 0.0, %v2942
        %v2944 = vpop.f32.mrb[0].mxu0
        %2945 = vmatprep.mubr.f32.mxu0 0.0
        %2946 = vmatmul.mubr.f32.gmra.mrb[0].mxu0 %v2771
        %v2947 = vpop.f32.mrb[0].mxu0
        %v2948 = vpop.f32.mrb[0].mxu0
        %2949 = vdwg.mxu0
        %v2950 = vadd.f32 %v2657, %v2840
        %v2951 = vadd.f32 %v2658, %v2845
        %v2952 = vadd.f32 %v2659, %v2854
        %v2953 = vadd.f32 %v2660, %v2859
        %v2954 = vadd.f32 %v2661, %v2868
        %v2955 = vadd.f32 %v2662, %v2873
        %v2956 = vadd.f32 %v2663, %v2882
        %v2957 = vadd.f32 %v2664, %v2887
        %v2958 = vadd.f32 %v2665, %v2896
        %v2959 = vadd.f32 %v2666, %v2901
        %v2960 = vadd.f32 %v2667, %v2910
        %v2961 = vadd.f32 %v2668, %v2915
        %v2962 = vadd.f32 %v2669, %v2924
        %v2963 = vadd.f32 %v2670, %v2929
        %v2964 = vadd.f32 %v2671, %v2938
        %v2965 = vadd.f32 %v2672, %v2943
        %s2966 = scalar_lea.vmem [#allocation9], 112
        %v2967 = vld [vmem:[%s2966] sm:$0xff]
        %v2968 = vld [vmem:[%s2966 + $0x8] sm:$0xff]
        %2969 = vmatprep.subr.mxu0 0.0
        %2970 = vmatpush1.msra.mxu0 %v2967
        %2971 = vmatprep.subr.mxu0 0.0
        %2972 = vmatpush1.msra.mxu0 %v2968
        %2973 = vmatprep.subr.mxu0 0.0
        %2974 = vmatpush1.msra.mxu0 0.0
        %2975 = vmatprep.subr.mxu0 0.0
        %2976 = vmatpush1.msra.mxu0 0.0
        %2977 = vmatprep.subr.mxu0 0.0
        %2978 = vmatpush1.msra.mxu0 0.0
        %2979 = vmatprep.subr.mxu0 0.0
        %2980 = vmatpush1.msra.mxu0 0.0
        %2981 = vmatprep.subr.mxu0 0.0
        %2982 = vmatpush1.msra.mxu0 0.0
        %2983 = vmatprep.subr.mxu0 0.0
        %2984 = vmatpush1.msra.mxu0 0.0
        %2985 = vmatprep.subr.mxu0 0.0
        %2986 = vmatpush1.msra.mxu0 0.0
        %2987 = vmatprep.subr.mxu0 0.0
        %2988 = vmatpush1.msra.mxu0 0.0
        %2989 = vmatprep.subr.mxu0 0.0
        %2990 = vmatpush1.msra.mxu0 0.0
        %2991 = vmatprep.subr.mxu0 0.0
        %2992 = vmatpush1.msra.mxu0 0.0
        %2993 = vmatprep.subr.mxu0 0.0
        %2994 = vmatpush1.msra.mxu0 0.0
        %2995 = vmatprep.subr.mxu0 0.0
        %2996 = vmatpush1.msra.mxu0 0.0
        %2997 = vmatprep.subr.mxu0 0.0
        %2998 = vmatpush1.msra.mxu0 0.0
        %2999 = vmatprep.subr.mxu0 0.0
        %3000 = vmatpush1.msra.mxu0 0.0
        %3001 = vmatprep.subr.mxu0 0.0
        %3002 = vmatpush1.msra.mxu0 0.0
        %3003 = vmatprep.subr.mxu0 0.0
        %3004 = vmatpush1.msra.mxu0 0.0
        %3005 = vmatprep.subr.mxu0 0.0
        %3006 = vmatpush1.msra.mxu0 0.0
        %3007 = vmatprep.subr.mxu0 0.0
        %3008 = vmatpush1.msra.mxu0 0.0
        %3009 = vmatprep.subr.mxu0 0.0
        %3010 = vmatpush1.msra.mxu0 0.0
        %3011 = vmatprep.subr.mxu0 0.0
        %3012 = vmatpush1.msra.mxu0 0.0
        %3013 = vmatprep.subr.mxu0 0.0
        %3014 = vmatpush1.msra.mxu0 0.0
        %3015 = vmatprep.subr.mxu0 0.0
        %3016 = vmatpush1.msra.mxu0 0.0
        %3017 = vmatprep.subr.mxu0 0.0
        %3018 = vmatpush1.msra.mxu0 0.0
        %3019 = vmatprep.subr.mxu0 0.0
        %3020 = vmatpush1.msra.mxu0 0.0
        %3021 = vmatprep.subr.mxu0 0.0
        %3022 = vmatpush1.msra.mxu0 0.0
        %3023 = vmatprep.subr.mxu0 0.0
        %3024 = vmatpush1.msra.mxu0 0.0
        %3025 = vmatprep.subr.mxu0 0.0
        %3026 = vmatpush1.msra.mxu0 0.0
        %3027 = vmatprep.subr.mxu0 0.0
        %3028 = vmatpush1.msra.mxu0 0.0
        %3029 = vmatprep.subr.mxu0 0.0
        %3030 = vmatpush1.msra.mxu0 0.0
        %3031 = vmatprep.subr.mxu0 0.0
        %3032 = vmatpush1.msra.mxu0 0.0
        %3033 = vmatprep.mubr.f32.mxu0 0.0
        %3034 = vmatmul.mubr.f32.gmra.mrb[0].mxu0 %v2702
        %v3035 = vpop.f32.mrb[0].mxu0
        %v3036 = vadd.f32 0.0, %v3035
        %v3037 = vpop.f32.mrb[0].mxu0
        %3038 = vmatprep.mubr.f32.mxu0 0.0
        %3039 = vmatmul.mubr.f32.gmra.mrb[0].mxu0 %v2705
        %v3040 = vpop.f32.mrb[0].mxu0
        %v3041 = vadd.f32 0.0, %v3040
        %v3042 = vpop.f32.mrb[0].mxu0
        %3043 = vmatprep.mubr.f32.mxu0 0.0
        %3044 = vmatmul.mubr.f32.gmra.mrb[0].mxu0 %v2708
        %v3045 = vpop.f32.mrb[0].mxu0
        %v3046 = vadd.f32 0.0, %v3045
        %v3047 = vpop.f32.mrb[0].mxu0
        %3048 = vmatprep.mubr.f32.mxu0 0.0
        %3049 = vmatmul.mubr.f32.gmra.mrb[0].mxu0 %v2711
        %v3050 = vpop.f32.mrb[0].mxu0
        %v3051 = vadd.f32 0.0, %v3050
        %v3052 = vpop.f32.mrb[0].mxu0
        %3053 = vmatprep.mubr.f32.mxu0 0.0
        %3054 = vmatmul.mubr.f32.gmra.mrb[0].mxu0 %v2714
        %v3055 = vpop.f32.mrb[0].mxu0
        %v3056 = vadd.f32 0.0, %v3055
        %v3057 = vpop.f32.mrb[0].mxu0
        %3058 = vmatprep.mubr.f32.mxu0 0.0
        %3059 = vmatmul.mubr.f32.gmra.mrb[0].mxu0 %v2717
        %v3060 = vpop.f32.mrb[0].mxu0
        %v3061 = vadd.f32 0.0, %v3060
        %v3062 = vpop.f32.mrb[0].mxu0
        %3063 = vmatprep.mubr.f32.mxu0 0.0
        %3064 = vmatmul.mubr.f32.gmra.mrb[0].mxu0 %v2720
        %v3065 = vpop.f32.mrb[0].mxu0
        %v3066 = vadd.f32 0.0, %v3065
        %v3067 = vpop.f32.mrb[0].mxu0
        %3068 = vmatprep.mubr.f32.mxu0 0.0
        %3069 = vmatmul.mubr.f32.gmra.mrb[0].mxu0 %v2723
        %v3070 = vpop.f32.mrb[0].mxu0
        %v3071 = vadd.f32 0.0, %v3070
        %v3072 = vpop.f32.mrb[0].mxu0
        %3073 = vmatprep.mubr.f32.mxu0 0.0
        %3074 = vmatmul.mubr.f32.gmra.mrb[0].mxu0 %v2726
        %v3075 = vpop.f32.mrb[0].mxu0
        %v3076 = vadd.f32 0.0, %v3075
        %v3077 = vpop.f32.mrb[0].mxu0
        %3078 = vmatprep.mubr.f32.mxu0 0.0
        %3079 = vmatmul.mubr.f32.gmra.mrb[0].mxu0 %v2729
        %v3080 = vpop.f32.mrb[0].mxu0
        %v3081 = vadd.f32 0.0, %v3080
        %v3082 = vpop.f32.mrb[0].mxu0
        %3083 = vmatprep.mubr.f32.mxu0 0.0
        %3084 = vmatmul.mubr.f32.gmra.mrb[0].mxu0 %v2732
        %v3085 = vpop.f32.mrb[0].mxu0
        %v3086 = vadd.f32 0.0, %v3085
        %v3087 = vpop.f32.mrb[0].mxu0
        %3088 = vmatprep.mubr.f32.mxu0 0.0
        %3089 = vmatmul.mubr.f32.gmra.mrb[0].mxu0 %v2735
        %v3090 = vpop.f32.mrb[0].mxu0
        %v3091 = vadd.f32 0.0, %v3090
        %v3092 = vpop.f32.mrb[0].mxu0
        %3093 = vmatprep.mubr.f32.mxu0 0.0
        %3094 = vmatmul.mubr.f32.gmra.mrb[0].mxu0 %v2738
        %v3095 = vpop.f32.mrb[0].mxu0
        %v3096 = vadd.f32 0.0, %v3095
        %v3097 = vpop.f32.mrb[0].mxu0
        %3098 = vmatprep.mubr.f32.mxu0 0.0
        %3099 = vmatmul.mubr.f32.gmra.mrb[0].mxu0 %v2741
        %v3100 = vpop.f32.mrb[0].mxu0
        %v3101 = vadd.f32 0.0, %v3100
        %v3102 = vpop.f32.mrb[0].mxu0
        %3103 = vmatprep.mubr.f32.mxu0 0.0
        %3104 = vmatmul.mubr.f32.gmra.mrb[0].mxu0 %v2744
        %v3105 = vpop.f32.mrb[0].mxu0
        %v3106 = vadd.f32 0.0, %v3105
        %v3107 = vpop.f32.mrb[0].mxu0
        %3108 = vmatprep.mubr.f32.mxu0 0.0
        %3109 = vmatmul.mubr.f32.gmra.mrb[0].mxu0 %v2747
        %v3110 = vpop.f32.mrb[0].mxu0
        %v3111 = vadd.f32 0.0, %v3110
        %v3112 = vpop.f32.mrb[0].mxu0
        %3113 = vmatprep.mubr.f32.mxu0 0.0
        %3114 = vmatmul.mubr.f32.gmra.mrb[0].mxu0 %v2750
        %v3115 = vpop.f32.mrb[0].mxu0
        %v3116 = vadd.f32 0.0, %v3115
        %v3117 = vpop.f32.mrb[0].mxu0
        %3118 = vmatprep.mubr.f32.mxu0 0.0
        %3119 = vmatmul.mubr.f32.gmra.mrb[0].mxu0 %v2753
        %v3120 = vpop.f32.mrb[0].mxu0
        %v3121 = vadd.f32 0.0, %v3120
        %v3122 = vpop.f32.mrb[0].mxu0
        %3123 = vmatprep.mubr.f32.mxu0 0.0
        %3124 = vmatmul.mubr.f32.gmra.mrb[0].mxu0 %v2756
        %v3125 = vpop.f32.mrb[0].mxu0
        %v3126 = vadd.f32 0.0, %v3125
        %v3127 = vpop.f32.mrb[0].mxu0
        %3128 = vmatprep.mubr.f32.mxu0 0.0
        %3129 = vmatmul.mubr.f32.gmra.mrb[0].mxu0 %v2759
        %v3130 = vpop.f32.mrb[0].mxu0
        %v3131 = vadd.f32 0.0, %v3130
        %v3132 = vpop.f32.mrb[0].mxu0
        %3133 = vmatprep.mubr.f32.mxu0 0.0
        %3134 = vmatmul.mubr.f32.gmra.mrb[0].mxu0 %v2762
        %v3135 = vpop.f32.mrb[0].mxu0
        %v3136 = vadd.f32 0.0, %v3135
        %v3137 = vpop.f32.mrb[0].mxu0
        %3138 = vmatprep.mubr.f32.mxu0 0.0
        %3139 = vmatmul.mubr.f32.gmra.mrb[0].mxu0 %v2765
        %v3140 = vpop.f32.mrb[0].mxu0
        %v3141 = vadd.f32 0.0, %v3140
        %v3142 = vpop.f32.mrb[0].mxu0
        %3143 = vmatprep.mubr.f32.mxu0 0.0
        %3144 = vmatmul.mubr.f32.gmra.mrb[0].mxu0 %v2768
        %v3145 = vpop.f32.mrb[0].mxu0
        %v3146 = vadd.f32 0.0, %v3145
        %v3147 = vpop.f32.mrb[0].mxu0
        %3148 = vmatprep.mubr.f32.mxu0 0.0
        %3149 = vmatmul.mubr.f32.gmra.mrb[0].mxu0 %v2771
        %v3150 = vpop.f32.mrb[0].mxu0
        %v3151 = vadd.f32 0.0, %v3150
        %v3152 = vpop.f32.mrb[0].mxu0
        %3153 = vdwg.mxu0
        %v3178 = vrot.slane %v3036, 1
        %v3179 = vrot.slane %v3041, 1
        %v3180 = vsel %vm1455, %v3178, %v3179
        %v3181 = vrot.slane %v3046, 1
        %v3182 = vsel %vm1455, %v3179, %v3181
        %v3183 = vrot.slane %v3051, 1
        %v3184 = vrot.slane %v3056, 1
        %v3185 = vsel %vm1455, %v3183, %v3184
        %v3186 = vrot.slane %v3061, 1
        %v3187 = vsel %vm1455, %v3184, %v3186
        %v3188 = vrot.slane %v3066, 1
        %v3189 = vrot.slane %v3071, 1
        %v3190 = vsel %vm1455, %v3188, %v3189
        %v3191 = vrot.slane %v3076, 1
        %v3192 = vsel %vm1455, %v3189, %v3191
        %v3193 = vrot.slane %v3081, 1
        %v3194 = vrot.slane %v3086, 1
        %v3195 = vsel %vm1455, %v3193, %v3194
        %v3196 = vrot.slane %v3091, 1
        %v3197 = vsel %vm1455, %v3194, %v3196
        %v3198 = vrot.slane %v3096, 1
        %v3199 = vrot.slane %v3101, 1
        %v3200 = vsel %vm1455, %v3198, %v3199
        %v3201 = vrot.slane %v3106, 1
        %v3202 = vsel %vm1455, %v3199, %v3201
        %v3203 = vrot.slane %v3111, 1
        %v3204 = vrot.slane %v3116, 1
        %v3205 = vsel %vm1455, %v3203, %v3204
        %v3206 = vrot.slane %v3121, 1
        %v3207 = vsel %vm1455, %v3204, %v3206
        %v3208 = vrot.slane %v3126, 1
        %v3209 = vrot.slane %v3131, 1
        %v3210 = vsel %vm1455, %v3208, %v3209
        %v3211 = vrot.slane %v3136, 1
        %v3212 = vsel %vm1455, %v3209, %v3211
        %v3213 = vrot.slane %v3141, 1
        %v3214 = vrot.slane %v3146, 1
        %v3215 = vsel %vm1455, %v3213, %v3214
        %v3216 = vrot.slane %v3151, 1
        %v3217 = vsel %vm1455, %v3214, %v3216
        %v3234 = vadd.f32 %v2950, %v3180
        %v3235 = vadd.f32 %v2951, %v3182
        %v3236 = vadd.f32 %v2952, %v3185
        %v3237 = vadd.f32 %v2953, %v3187
        %v3238 = vadd.f32 %v2954, %v3190
        %v3239 = vadd.f32 %v2955, %v3192
        %v3240 = vadd.f32 %v2956, %v3195
        %v3241 = vadd.f32 %v2957, %v3197
        %v3242 = vadd.f32 %v2958, %v3200
        %v3243 = vadd.f32 %v2959, %v3202
        %v3244 = vadd.f32 %v2960, %v3205
        %v3245 = vadd.f32 %v2961, %v3207
        %v3246 = vadd.f32 %v2962, %v3210
        %v3247 = vadd.f32 %v2963, %v3212
        %v3248 = vadd.f32 %v2964, %v3215
        %v3249 = vadd.f32 %v2965, %v3217
        %s3250 = scalar_lea.vmem [#allocation9], 128
        %v3251 = vld [vmem:[%s3250] sm:$0xff]
        %v3252 = vld [vmem:[%s3250 + $0x8] sm:$0xff]
        %3253 = vmatprep.subr.mxu0 0.0
        %3254 = vmatpush1.msra.mxu0 %v3251
        %3255 = vmatprep.subr.mxu0 0.0
        %3256 = vmatpush1.msra.mxu0 %v3252
        %3257 = vmatprep.subr.mxu0 0.0
        %3258 = vmatpush1.msra.mxu0 0.0
        %3259 = vmatprep.subr.mxu0 0.0
        %3260 = vmatpush1.msra.mxu0 0.0
        %3261 = vmatprep.subr.mxu0 0.0
        %3262 = vmatpush1.msra.mxu0 0.0
        %3263 = vmatprep.subr.mxu0 0.0
        %3264 = vmatpush1.msra.mxu0 0.0
        %3265 = vmatprep.subr.mxu0 0.0
        %3266 = vmatpush1.msra.mxu0 0.0
        %3267 = vmatprep.subr.mxu0 0.0
        %3268 = vmatpush1.msra.mxu0 0.0
        %3269 = vmatprep.subr.mxu0 0.0
        %3270 = vmatpush1.msra.mxu0 0.0
        %3271 = vmatprep.subr.mxu0 0.0
        %3272 = vmatpush1.msra.mxu0 0.0
        %3273 = vmatprep.subr.mxu0 0.0
        %3274 = vmatpush1.msra.mxu0 0.0
        %3275 = vmatprep.subr.mxu0 0.0
        %3276 = vmatpush1.msra.mxu0 0.0
        %3277 = vmatprep.subr.mxu0 0.0
        %3278 = vmatpush1.msra.mxu0 0.0
        %3279 = vmatprep.subr.mxu0 0.0
        %3280 = vmatpush1.msra.mxu0 0.0
        %3281 = vmatprep.subr.mxu0 0.0
        %3282 = vmatpush1.msra.mxu0 0.0
        %3283 = vmatprep.subr.mxu0 0.0
        %3284 = vmatpush1.msra.mxu0 0.0
        %3285 = vmatprep.subr.mxu0 0.0
        %3286 = vmatpush1.msra.mxu0 0.0
        %3287 = vmatprep.subr.mxu0 0.0
        %3288 = vmatpush1.msra.mxu0 0.0
        %3289 = vmatprep.subr.mxu0 0.0
        %3290 = vmatpush1.msra.mxu0 0.0
        %3291 = vmatprep.subr.mxu0 0.0
        %3292 = vmatpush1.msra.mxu0 0.0
        %3293 = vmatprep.subr.mxu0 0.0
        %3294 = vmatpush1.msra.mxu0 0.0
        %3295 = vmatprep.subr.mxu0 0.0
        %3296 = vmatpush1.msra.mxu0 0.0
        %3297 = vmatprep.subr.mxu0 0.0
        %3298 = vmatpush1.msra.mxu0 0.0
        %3299 = vmatprep.subr.mxu0 0.0
        %3300 = vmatpush1.msra.mxu0 0.0
        %3301 = vmatprep.subr.mxu0 0.0
        %3302 = vmatpush1.msra.mxu0 0.0
        %3303 = vmatprep.subr.mxu0 0.0
        %3304 = vmatpush1.msra.mxu0 0.0
        %3305 = vmatprep.subr.mxu0 0.0
        %3306 = vmatpush1.msra.mxu0 0.0
        %3307 = vmatprep.subr.mxu0 0.0
        %3308 = vmatpush1.msra.mxu0 0.0
        %3309 = vmatprep.subr.mxu0 0.0
        %3310 = vmatpush1.msra.mxu0 0.0
        %3311 = vmatprep.subr.mxu0 0.0
        %3312 = vmatpush1.msra.mxu0 0.0
        %3313 = vmatprep.subr.mxu0 0.0
        %3314 = vmatpush1.msra.mxu0 0.0
        %3315 = vmatprep.subr.mxu0 0.0
        %3316 = vmatpush1.msra.mxu0 0.0
        %3317 = vmatprep.mubr.f32.mxu0 0.0
        %3318 = vmatmul.mubr.f32.gmra.mrb[0].mxu0 %v2702
        %v3319 = vpop.f32.mrb[0].mxu0
        %v3320 = vadd.f32 0.0, %v3319
        %v3321 = vpop.f32.mrb[0].mxu0
        %3322 = vmatprep.mubr.f32.mxu0 0.0
        %3323 = vmatmul.mubr.f32.gmra.mrb[0].mxu0 %v2705
        %v3324 = vpop.f32.mrb[0].mxu0
        %v3325 = vadd.f32 0.0, %v3324
        %v3326 = vpop.f32.mrb[0].mxu0
        %3327 = vmatprep.mubr.f32.mxu0 0.0
        %3328 = vmatmul.mubr.f32.gmra.mrb[0].mxu0 %v2708
        %v3329 = vpop.f32.mrb[0].mxu0
        %v3330 = vadd.f32 0.0, %v3329
        %v3331 = vpop.f32.mrb[0].mxu0
        %3332 = vmatprep.mubr.f32.mxu0 0.0
        %3333 = vmatmul.mubr.f32.gmra.mrb[0].mxu0 %v2711
        %v3334 = vpop.f32.mrb[0].mxu0
        %v3335 = vadd.f32 0.0, %v3334
        %v3336 = vpop.f32.mrb[0].mxu0
        %3337 = vmatprep.mubr.f32.mxu0 0.0
        %3338 = vmatmul.mubr.f32.gmra.mrb[0].mxu0 %v2714
        %v3339 = vpop.f32.mrb[0].mxu0
        %v3340 = vadd.f32 0.0, %v3339
        %v3341 = vpop.f32.mrb[0].mxu0
        %3342 = vmatprep.mubr.f32.mxu0 0.0
        %3343 = vmatmul.mubr.f32.gmra.mrb[0].mxu0 %v2717
        %v3344 = vpop.f32.mrb[0].mxu0
        %v3345 = vadd.f32 0.0, %v3344
        %v3346 = vpop.f32.mrb[0].mxu0
        %3347 = vmatprep.mubr.f32.mxu0 0.0
        %3348 = vmatmul.mubr.f32.gmra.mrb[0].mxu0 %v2720
        %v3349 = vpop.f32.mrb[0].mxu0
        %v3350 = vadd.f32 0.0, %v3349
        %v3351 = vpop.f32.mrb[0].mxu0
        %3352 = vmatprep.mubr.f32.mxu0 0.0
        %3353 = vmatmul.mubr.f32.gmra.mrb[0].mxu0 %v2723
        %v3354 = vpop.f32.mrb[0].mxu0
        %v3355 = vadd.f32 0.0, %v3354
        %v3356 = vpop.f32.mrb[0].mxu0
        %3357 = vmatprep.mubr.f32.mxu0 0.0
        %3358 = vmatmul.mubr.f32.gmra.mrb[0].mxu0 %v2726
        %v3359 = vpop.f32.mrb[0].mxu0
        %v3360 = vadd.f32 0.0, %v3359
        %v3361 = vpop.f32.mrb[0].mxu0
        %3362 = vmatprep.mubr.f32.mxu0 0.0
        %3363 = vmatmul.mubr.f32.gmra.mrb[0].mxu0 %v2729
        %v3364 = vpop.f32.mrb[0].mxu0
        %v3365 = vadd.f32 0.0, %v3364
        %v3366 = vpop.f32.mrb[0].mxu0
        %3367 = vmatprep.mubr.f32.mxu0 0.0
        %3368 = vmatmul.mubr.f32.gmra.mrb[0].mxu0 %v2732
        %v3369 = vpop.f32.mrb[0].mxu0
        %v3370 = vadd.f32 0.0, %v3369
        %v3371 = vpop.f32.mrb[0].mxu0
        %3372 = vmatprep.mubr.f32.mxu0 0.0
        %3373 = vmatmul.mubr.f32.gmra.mrb[0].mxu0 %v2735
        %v3374 = vpop.f32.mrb[0].mxu0
        %v3375 = vadd.f32 0.0, %v3374
        %v3376 = vpop.f32.mrb[0].mxu0
        %3377 = vmatprep.mubr.f32.mxu0 0.0
        %3378 = vmatmul.mubr.f32.gmra.mrb[0].mxu0 %v2738
        %v3379 = vpop.f32.mrb[0].mxu0
        %v3380 = vadd.f32 0.0, %v3379
        %v3381 = vpop.f32.mrb[0].mxu0
        %3382 = vmatprep.mubr.f32.mxu0 0.0
        %3383 = vmatmul.mubr.f32.gmra.mrb[0].mxu0 %v2741
        %v3384 = vpop.f32.mrb[0].mxu0
        %v3385 = vadd.f32 0.0, %v3384
        %v3386 = vpop.f32.mrb[0].mxu0
        %3387 = vmatprep.mubr.f32.mxu0 0.0
        %3388 = vmatmul.mubr.f32.gmra.mrb[0].mxu0 %v2744
        %v3389 = vpop.f32.mrb[0].mxu0
        %v3390 = vadd.f32 0.0, %v3389
        %v3391 = vpop.f32.mrb[0].mxu0
        %3392 = vmatprep.mubr.f32.mxu0 0.0
        %3393 = vmatmul.mubr.f32.gmra.mrb[0].mxu0 %v2747
        %v3394 = vpop.f32.mrb[0].mxu0
        %v3395 = vadd.f32 0.0, %v3394
        %v3396 = vpop.f32.mrb[0].mxu0
        %3397 = vmatprep.mubr.f32.mxu0 0.0
        %3398 = vmatmul.mubr.f32.gmra.mrb[0].mxu0 %v2750
        %v3399 = vpop.f32.mrb[0].mxu0
        %v3400 = vadd.f32 0.0, %v3399
        %v3401 = vpop.f32.mrb[0].mxu0
        %3402 = vmatprep.mubr.f32.mxu0 0.0
        %3403 = vmatmul.mubr.f32.gmra.mrb[0].mxu0 %v2753
        %v3404 = vpop.f32.mrb[0].mxu0
        %v3405 = vadd.f32 0.0, %v3404
        %v3406 = vpop.f32.mrb[0].mxu0
        %3407 = vmatprep.mubr.f32.mxu0 0.0
        %3408 = vmatmul.mubr.f32.gmra.mrb[0].mxu0 %v2756
        %v3409 = vpop.f32.mrb[0].mxu0
        %v3410 = vadd.f32 0.0, %v3409
        %v3411 = vpop.f32.mrb[0].mxu0
        %3412 = vmatprep.mubr.f32.mxu0 0.0
        %3413 = vmatmul.mubr.f32.gmra.mrb[0].mxu0 %v2759
        %v3414 = vpop.f32.mrb[0].mxu0
        %v3415 = vadd.f32 0.0, %v3414
        %v3416 = vpop.f32.mrb[0].mxu0
        %3417 = vmatprep.mubr.f32.mxu0 0.0
        %3418 = vmatmul.mubr.f32.gmra.mrb[0].mxu0 %v2762
        %v3419 = vpop.f32.mrb[0].mxu0
        %v3420 = vadd.f32 0.0, %v3419
        %v3421 = vpop.f32.mrb[0].mxu0
        %3422 = vmatprep.mubr.f32.mxu0 0.0
        %3423 = vmatmul.mubr.f32.gmra.mrb[0].mxu0 %v2765
        %v3424 = vpop.f32.mrb[0].mxu0
        %v3425 = vadd.f32 0.0, %v3424
        %v3426 = vpop.f32.mrb[0].mxu0
        %3427 = vmatprep.mubr.f32.mxu0 0.0
        %3428 = vmatmul.mubr.f32.gmra.mrb[0].mxu0 %v2768
        %v3429 = vpop.f32.mrb[0].mxu0
        %v3430 = vadd.f32 0.0, %v3429
        %v3431 = vpop.f32.mrb[0].mxu0
        %3432 = vmatprep.mubr.f32.mxu0 0.0
        %3433 = vmatmul.mubr.f32.gmra.mrb[0].mxu0 %v2771
        %v3434 = vpop.f32.mrb[0].mxu0
        %v3435 = vadd.f32 0.0, %v3434
        %v3436 = vpop.f32.mrb[0].mxu0
        %3437 = vdwg.mxu0
        %v3462 = vrot.slane %v3320, 2
        %v3463 = vrot.slane %v3325, 2
        %v3464 = vsel %vm1740, %v3462, %v3463
        %v3465 = vrot.slane %v3330, 2
        %v3466 = vsel %vm1740, %v3463, %v3465
        %v3467 = vrot.slane %v3335, 2
        %v3468 = vrot.slane %v3340, 2
        %v3469 = vsel %vm1740, %v3467, %v3468
        %v3470 = vrot.slane %v3345, 2
        %v3471 = vsel %vm1740, %v3468, %v3470
        %v3472 = vrot.slane %v3350, 2
        %v3473 = vrot.slane %v3355, 2
        %v3474 = vsel %vm1740, %v3472, %v3473
        %v3475 = vrot.slane %v3360, 2
        %v3476 = vsel %vm1740, %v3473, %v3475
        %v3477 = vrot.slane %v3365, 2
        %v3478 = vrot.slane %v3370, 2
        %v3479 = vsel %vm1740, %v3477, %v3478
        %v3480 = vrot.slane %v3375, 2
        %v3481 = vsel %vm1740, %v3478, %v3480
        %v3482 = vrot.slane %v3380, 2
        %v3483 = vrot.slane %v3385, 2
        %v3484 = vsel %vm1740, %v3482, %v3483
        %v3485 = vrot.slane %v3390, 2
        %v3486 = vsel %vm1740, %v3483, %v3485
        %v3487 = vrot.slane %v3395, 2
        %v3488 = vrot.slane %v3400, 2
        %v3489 = vsel %vm1740, %v3487, %v3488
        %v3490 = vrot.slane %v3405, 2
        %v3491 = vsel %vm1740, %v3488, %v3490
        %v3492 = vrot.slane %v3410, 2
        %v3493 = vrot.slane %v3415, 2
        %v3494 = vsel %vm1740, %v3492, %v3493
        %v3495 = vrot.slane %v3420, 2
        %v3496 = vsel %vm1740, %v3493, %v3495
        %v3497 = vrot.slane %v3425, 2
        %v3498 = vrot.slane %v3430, 2
        %v3499 = vsel %vm1740, %v3497, %v3498
        %v3500 = vrot.slane %v3435, 2
        %v3501 = vsel %vm1740, %v3498, %v3500
        %v3518 = vadd.f32 %v3234, %v3464
        %v3519 = vadd.f32 %v3235, %v3466
        %v3520 = vadd.f32 %v3236, %v3469
        %v3521 = vadd.f32 %v3237, %v3471
        %v3522 = vadd.f32 %v3238, %v3474
        %v3523 = vadd.f32 %v3239, %v3476
        %v3524 = vadd.f32 %v3240, %v3479
        %v3525 = vadd.f32 %v3241, %v3481
        %v3526 = vadd.f32 %v3242, %v3484
        %v3527 = vadd.f32 %v3243, %v3486
        %v3528 = vadd.f32 %v3244, %v3489
        %v3529 = vadd.f32 %v3245, %v3491
        %v3530 = vadd.f32 %v3246, %v3494
        %v3531 = vadd.f32 %v3247, %v3496
        %v3532 = vadd.f32 %v3248, %v3499
        %v3533 = vadd.f32 %v3249, %v3501
        %v3534 = vld [vmem:[%s6] sm:$0x1]
        %v3536 = vlaneseq
        %v3537 = vshrl.u32 %v3536, 7
        %v3538 = vsub.s32 0, %v3537
        %v3539 = vrot.slane %v3534, %v3538
        %v3541 = vadd.f32 %v3518, %v3539
        %v3542 = vadd.f32 %v3519, %v3539
        %v3543 = vadd.f32 %v3520, %v3539
        %v3544 = vadd.f32 %v3521, %v3539
        %v3545 = vadd.f32 %v3522, %v3539
        %v3546 = vadd.f32 %v3523, %v3539
        %v3547 = vadd.f32 %v3524, %v3539
        %v3548 = vadd.f32 %v3525, %v3539
        %v3549 = vadd.f32 %v3526, %v3539
        %v3550 = vadd.f32 %v3527, %v3539
        %v3551 = vadd.f32 %v3528, %v3539
        %v3552 = vadd.f32 %v3529, %v3539
        %v3553 = vadd.f32 %v3530, %v3539
        %v3554 = vadd.f32 %v3531, %v3539
        %v3555 = vadd.f32 %v3532, %v3539
        %v3556 = vadd.f32 %v3533, %v3539
        %v3557 = vmax.f32 %v3541, 0.0
        %v3558 = vmax.f32 %v3542, 0.0
        %v3559 = vmax.f32 %v3543, 0.0
        %v3560 = vmax.f32 %v3544, 0.0
        %v3561 = vmax.f32 %v3545, 0.0
        %v3562 = vmax.f32 %v3546, 0.0
        %v3563 = vmax.f32 %v3547, 0.0
        %v3564 = vmax.f32 %v3548, 0.0
        %v3565 = vmax.f32 %v3549, 0.0
        %v3566 = vmax.f32 %v3550, 0.0
        %v3567 = vmax.f32 %v3551, 0.0
        %v3568 = vmax.f32 %v3552, 0.0
        %v3569 = vmax.f32 %v3553, 0.0
        %v3570 = vmax.f32 %v3554, 0.0
        %v3571 = vmax.f32 %v3555, 0.0
        %v3572 = vmax.f32 %v3556, 0.0
        %v3573 = vld [vmem:[%s7] sm:$0xff]
        %v3574 = vld [vmem:[%s7 + $0x8] sm:$0xff]
        %v3575 = vld [vmem:[%s8] sm:$0x1]
        %v3577 = vlaneseq
        %v3578 = vshrl.u32 %v3577, 7
        %v3579 = vsub.s32 0, %v3578
        %v3580 = vrot.slane %v3575, %v3579
        %v3583 = vsel %vm742, %v3557, 0
        %v3586 = vsel %vm742, %v3558, 0
        %v3589 = vsel %vm742, %v3559, 0
        %v3592 = vsel %vm742, %v3560, 0
        %v3595 = vsel %vm742, %v3561, 0
        %v3598 = vsel %vm742, %v3562, 0
        %v3601 = vsel %vm742, %v3563, 0
        %v3604 = vsel %vm742, %v3564, 0
        %v3607 = vsel %vm742, %v3565, 0
        %v3610 = vsel %vm742, %v3566, 0
        %v3613 = vsel %vm742, %v3567, 0
        %v3616 = vsel %vm742, %v3568, 0
        %v3619 = vsel %vm742, %v3569, 0
        %v3622 = vsel %vm742, %v3570, 0
        %v3625 = vsel %vm742, %v3571, 0
        %v3628 = vsel %vm742, %v3572, 0
        %3630 = vmatprep.subr.mxu0 0.0
        %3631 = vmatpush1.msra.mxu0 %v3573
        %3632 = vmatprep.subr.mxu0 0.0
        %3633 = vmatpush1.msra.mxu0 %v3574
        %3634 = vmatprep.subr.mxu0 0.0
        %3635 = vmatpush1.msra.mxu0 0.0
        %3636 = vmatprep.subr.mxu0 0.0
        %3637 = vmatpush1.msra.mxu0 0.0
        %3638 = vmatprep.subr.mxu0 0.0
        %3639 = vmatpush1.msra.mxu0 0.0
        %3640 = vmatprep.subr.mxu0 0.0
        %3641 = vmatpush1.msra.mxu0 0.0
        %3642 = vmatprep.subr.mxu0 0.0
        %3643 = vmatpush1.msra.mxu0 0.0
        %3644 = vmatprep.subr.mxu0 0.0
        %3645 = vmatpush1.msra.mxu0 0.0
        %3646 = vmatprep.subr.mxu0 0.0
        %3647 = vmatpush1.msra.mxu0 0.0
        %3648 = vmatprep.subr.mxu0 0.0
        %3649 = vmatpush1.msra.mxu0 0.0
        %3650 = vmatprep.subr.mxu0 0.0
        %3651 = vmatpush1.msra.mxu0 0.0
        %3652 = vmatprep.subr.mxu0 0.0
        %3653 = vmatpush1.msra.mxu0 0.0
        %3654 = vmatprep.subr.mxu0 0.0
        %3655 = vmatpush1.msra.mxu0 0.0
        %3656 = vmatprep.subr.mxu0 0.0
        %3657 = vmatpush1.msra.mxu0 0.0
        %3658 = vmatprep.subr.mxu0 0.0
        %3659 = vmatpush1.msra.mxu0 0.0
        %3660 = vmatprep.subr.mxu0 0.0
        %3661 = vmatpush1.msra.mxu0 0.0
        %3662 = vmatprep.subr.mxu0 0.0
        %3663 = vmatpush1.msra.mxu0 0.0
        %3664 = vmatprep.subr.mxu0 0.0
        %3665 = vmatpush1.msra.mxu0 0.0
        %3666 = vmatprep.subr.mxu0 0.0
        %3667 = vmatpush1.msra.mxu0 0.0
        %3668 = vmatprep.subr.mxu0 0.0
        %3669 = vmatpush1.msra.mxu0 0.0
        %3670 = vmatprep.subr.mxu0 0.0
        %3671 = vmatpush1.msra.mxu0 0.0
        %3672 = vmatprep.subr.mxu0 0.0
        %3673 = vmatpush1.msra.mxu0 0.0
        %3674 = vmatprep.subr.mxu0 0.0
        %3675 = vmatpush1.msra.mxu0 0.0
        %3676 = vmatprep.subr.mxu0 0.0
        %3677 = vmatpush1.msra.mxu0 0.0
        %3678 = vmatprep.subr.mxu0 0.0
        %3679 = vmatpush1.msra.mxu0 0.0
        %3680 = vmatprep.subr.mxu0 0.0
        %3681 = vmatpush1.msra.mxu0 0.0
        %3682 = vmatprep.subr.mxu0 0.0
        %3683 = vmatpush1.msra.mxu0 0.0
        %3684 = vmatprep.subr.mxu0 0.0
        %3685 = vmatpush1.msra.mxu0 0.0
        %3686 = vmatprep.subr.mxu0 0.0
        %3687 = vmatpush1.msra.mxu0 0.0
        %3688 = vmatprep.subr.mxu0 0.0
        %3689 = vmatpush1.msra.mxu0 0.0
        %3690 = vmatprep.subr.mxu0 0.0
        %3691 = vmatpush1.msra.mxu0 0.0
        %3692 = vmatprep.subr.mxu0 0.0
        %3693 = vmatpush1.msra.mxu0 0.0
        %3694 = vmatprep.mubr.f32.mxu0 0.0
        %3695 = vmatmul.mubr.f32.gmra.mrb[0].mxu0 %v3583
        %v3696 = vpop.f32.mrb[0].mxu0
        %v3697 = vadd.f32 %v3580, %v3696
        %v3698 = vpop.f32.mrb[0].mxu0
        %3699 = vmatprep.mubr.f32.mxu0 0.0
        %3700 = vmatmul.mubr.f32.gmra.mrb[0].mxu0 %v3586
        %v3701 = vpop.f32.mrb[0].mxu0
        %v3702 = vadd.f32 %v3580, %v3701
        %v3703 = vpop.f32.mrb[0].mxu0
        %3704 = vmatprep.mubr.f32.mxu0 0.0
        %3705 = vmatmul.mubr.f32.gmra.mrb[0].mxu0 %v3589
        %v3706 = vpop.f32.mrb[0].mxu0
        %v3707 = vadd.f32 %v3580, %v3706
        %v3708 = vpop.f32.mrb[0].mxu0
        %3709 = vmatprep.mubr.f32.mxu0 0.0
        %3710 = vmatmul.mubr.f32.gmra.mrb[0].mxu0 %v3592
        %v3711 = vpop.f32.mrb[0].mxu0
        %v3712 = vadd.f32 %v3580, %v3711
        %v3713 = vpop.f32.mrb[0].mxu0
        %3714 = vmatprep.mubr.f32.mxu0 0.0
        %3715 = vmatmul.mubr.f32.gmra.mrb[0].mxu0 %v3595
        %v3716 = vpop.f32.mrb[0].mxu0
        %v3717 = vadd.f32 %v3580, %v3716
        %v3718 = vpop.f32.mrb[0].mxu0
        %3719 = vmatprep.mubr.f32.mxu0 0.0
        %3720 = vmatmul.mubr.f32.gmra.mrb[0].mxu0 %v3598
        %v3721 = vpop.f32.mrb[0].mxu0
        %v3722 = vadd.f32 %v3580, %v3721
        %v3723 = vpop.f32.mrb[0].mxu0
        %3724 = vmatprep.mubr.f32.mxu0 0.0
        %3725 = vmatmul.mubr.f32.gmra.mrb[0].mxu0 %v3601
        %v3726 = vpop.f32.mrb[0].mxu0
        %v3727 = vadd.f32 %v3580, %v3726
        %v3728 = vpop.f32.mrb[0].mxu0
        %3729 = vmatprep.mubr.f32.mxu0 0.0
        %3730 = vmatmul.mubr.f32.gmra.mrb[0].mxu0 %v3604
        %v3731 = vpop.f32.mrb[0].mxu0
        %v3732 = vadd.f32 %v3580, %v3731
        %v3733 = vpop.f32.mrb[0].mxu0
        %3734 = vmatprep.mubr.f32.mxu0 0.0
        %3735 = vmatmul.mubr.f32.gmra.mrb[0].mxu0 %v3607
        %v3736 = vpop.f32.mrb[0].mxu0
        %v3737 = vadd.f32 %v3580, %v3736
        %v3738 = vpop.f32.mrb[0].mxu0
        %3739 = vmatprep.mubr.f32.mxu0 0.0
        %3740 = vmatmul.mubr.f32.gmra.mrb[0].mxu0 %v3610
        %v3741 = vpop.f32.mrb[0].mxu0
        %v3742 = vadd.f32 %v3580, %v3741
        %v3743 = vpop.f32.mrb[0].mxu0
        %3744 = vmatprep.mubr.f32.mxu0 0.0
        %3745 = vmatmul.mubr.f32.gmra.mrb[0].mxu0 %v3613
        %v3746 = vpop.f32.mrb[0].mxu0
        %v3747 = vadd.f32 %v3580, %v3746
        %v3748 = vpop.f32.mrb[0].mxu0
        %3749 = vmatprep.mubr.f32.mxu0 0.0
        %3750 = vmatmul.mubr.f32.gmra.mrb[0].mxu0 %v3616
        %v3751 = vpop.f32.mrb[0].mxu0
        %v3752 = vadd.f32 %v3580, %v3751
        %v3753 = vpop.f32.mrb[0].mxu0
        %3754 = vmatprep.mubr.f32.mxu0 0.0
        %3755 = vmatmul.mubr.f32.gmra.mrb[0].mxu0 %v3619
        %v3756 = vpop.f32.mrb[0].mxu0
        %v3757 = vadd.f32 %v3580, %v3756
        %v3758 = vpop.f32.mrb[0].mxu0
        %3759 = vmatprep.mubr.f32.mxu0 0.0
        %3760 = vmatmul.mubr.f32.gmra.mrb[0].mxu0 %v3622
        %v3761 = vpop.f32.mrb[0].mxu0
        %v3762 = vadd.f32 %v3580, %v3761
        %v3763 = vpop.f32.mrb[0].mxu0
        %3764 = vmatprep.mubr.f32.mxu0 0.0
        %3765 = vmatmul.mubr.f32.gmra.mrb[0].mxu0 %v3625
        %v3766 = vpop.f32.mrb[0].mxu0
        %v3767 = vadd.f32 %v3580, %v3766
        %v3768 = vpop.f32.mrb[0].mxu0
        %3769 = vmatprep.mubr.f32.mxu0 0.0
        %3770 = vmatmul.mubr.f32.gmra.mrb[0].mxu0 %v3628
        %v3771 = vpop.f32.mrb[0].mxu0
        %v3772 = vadd.f32 %v3580, %v3771
        %v3773 = vpop.f32.mrb[0].mxu0
        %3774 = vdwg.mxu0
        %v3775 = vadd.f32 %v3697, %v509
        %v3776 = vadd.f32 %v3702, %v510
        %v3777 = vadd.f32 %v3707, %v511
        %v3778 = vadd.f32 %v3712, %v512
        %v3779 = vadd.f32 %v3717, %v513
        %v3780 = vadd.f32 %v3722, %v514
        %v3781 = vadd.f32 %v3727, %v515
        %v3782 = vadd.f32 %v3732, %v516
        %v3783 = vadd.f32 %v3737, %v517
        %v3784 = vadd.f32 %v3742, %v518
        %v3785 = vadd.f32 %v3747, %v519
        %v3786 = vadd.f32 %v3752, %v520
        %v3787 = vadd.f32 %v3757, %v521
        %v3788 = vadd.f32 %v3762, %v522
        %v3789 = vadd.f32 %v3767, %v523
        %v3790 = vadd.f32 %v3772, %v524
        %3791 = vst.msk [vmem:[%s493] sm:$0xff] %vm531, %v3775
        %3792 = vst.msk [vmem:[%s493 + $0x8] sm:$0xff] %vm531, %v3776
        %3793 = vst.msk [vmem:[%s493 + $0x10] sm:$0xff] %vm531, %v3777
        %3794 = vst.msk [vmem:[%s493 + $0x18] sm:$0xff] %vm531, %v3778
        %3795 = vst.msk [vmem:[%s493 + $0x20] sm:$0xff] %vm531, %v3779
        %3796 = vst.msk [vmem:[%s493 + $0x28] sm:$0xff] %vm531, %v3780
        %3797 = vst.msk [vmem:[%s493 + $0x30] sm:$0xff] %vm531, %v3781
        %3798 = vst.msk [vmem:[%s493 + $0x38] sm:$0xff] %vm531, %v3782
        %3799 = vst.msk [vmem:[%s493 + $0x40] sm:$0xff] %vm531, %v3783
        %3800 = vst.msk [vmem:[%s493 + $0x48] sm:$0xff] %vm531, %v3784
        %3801 = vst.msk [vmem:[%s493 + $0x50] sm:$0xff] %vm531, %v3785
        %3802 = vst.msk [vmem:[%s493 + $0x58] sm:$0xff] %vm531, %v3786
        %3803 = vst.msk [vmem:[%s493 + $0x60] sm:$0xff] %vm531, %v3787
        %3804 = vst.msk [vmem:[%s493 + $0x68] sm:$0xff] %vm531, %v3788
        %3805 = vst.msk [vmem:[%s493 + $0x70] sm:$0xff] %vm531, %v3789
        %3806 = vst.msk [vmem:[%s493 + $0x78] sm:$0xff] %vm531, %v3790
        %s3807 = sand.u32 %s278, 1
        %s3808 = scalar_lea.sflag [#allocation5], %s3807
        %s3809 = sand.u32 %s278, 1
        %s3810 = smul.addr %s3809, 128
        %s3811 = scalar_lea.vmem [#allocation11], %s3810
        // Predicated region
        $region73: #{tpu_custom_call.1} parent=55 // pred_check
          %p3812 = pneg %p288
        $region74: #{tpu_custom_call.1} parent=55 // pred_check_branch
          %3814 = sbr.rel (%p3812) target = $region76
        $region75: #{tpu_custom_call.1} parent=55 // pred_region
          %s3815 = smul.u32 8, %s35
          %s3817 = ssub.s32 2048, 2048
          %3818 = vsyncadd %s3808, %s3817
          %s3819 = smul.addr %s3815, 2
          %s3820 = smul.addr %s34, 32
          %s3821 = sadd.s32 %s3819, %s3820
          %s3822 = smul.addr %s3821, 128
          %s3823 = scalar_lea.hbm %s9, %s3822
          %s3824 = sshll.u32 %s3811, 4
          %s3825 = int_to_ptr.vmem [resolvable:$true] %s3824
          %3830 = dma.vmem_to_hbm [thread:$0]  %s3825, 2048, %s3823, %s3808, 128, 128, 8
        $region76: #{tpu_custom_call.1} parent=55 // pred_fallthru
          _
      $region56: #{tpu_custom_call.1} parent=5 // pred_fallthru
        _
      %p3831 = scmp.le.s32.totalorder 2, %s25
      // Predicated region
      $region77: #{tpu_custom_call.1} parent=5 // pred_check
        %p3832 = pneg %p3831
      $region78: #{tpu_custom_call.1} parent=5 // pred_check_branch
        %3834 = sbr.rel (%p3832) target = $region80
      $region79: #{tpu_custom_call.1} parent=5 // pred_region
        %s3835 = ssub.s32 %s25, 2
        // Predicated region
        $region81: #{tpu_custom_call.1} parent=79 // pred_check
          %p3836 = pneg %p294
        $region82: #{tpu_custom_call.1} parent=79 // pred_check_branch
          %3838 = sbr.rel (%p3836) target = $region84
        $region83: #{tpu_custom_call.1} parent=79 // pred_region
          %s3839 = sand.u32 %s279, 1
          %s3840 = scalar_lea.sflag [#allocation5], %s3839
          %s3841 = sand.u32 %s279, 1
          %s3842 = smul.addr %s3841, 128
          %s3843 = scalar_lea.vmem [#allocation11], %s3842
          %3844 = dma.done %s3840, 2048
        $region84: #{tpu_custom_call.1} parent=79 // pred_fallthru
          _
      $region80: #{tpu_custom_call.1} parent=5 // pred_fallthru
        _
    $region6: #{tpu_custom_call.1} parent=1 // loop_footer
      %s29 = sadd.s32 1, %s25
    $region7: #{tpu_custom_call.1} parent=1 // loop_footer_branch
      %24 = sbr.rel target = $region3
    $region8: #{tpu_custom_call.1} parent=1 // loop_exit
      _
    %3845 = vsyncpa [#allocation4], 1
    %s3846 = scalar_lea.sflag [#allocation4], 1
    %3847 = vsyncpa %s3846, 1
    %3848 = vsyncpa [#allocation7], 1
    %s3849 = scalar_lea.sflag [#allocation7], 1
    %3850 = vsyncpa %s3849, 1
    %3851 = vsyncpa [#allocation10], 1
    %3852 = vsyncpa [#allocation5], 1
    %s3853 = scalar_lea.sflag [#allocation5], 1
    %3854 = vsyncpa %s3853, 1

</llo_original>
